<compile_context>
chip_gen: v6e
topology: v6e:2x2x1
jax: 0.10.0
libtpu: 0.0.40
codegen_flags: <defaults>
</compile_context>

<pallas_src>
import numpy as np
import jax
import jax.numpy as jnp
from jax import lax
from jax.experimental import pallas as pl
from jax.experimental.pallas import tpu as pltpu

EPS = 1e-5
ROW_TILE = 256          # pixel-rows per grid step (multiple of 8)
LANE = 128              # lane width: pad channel dims to multiples of this


def _round_up(x, m):
    return (x + m - 1) // m * m


# ---------------------------------------------------------------------------
# Pallas kernels: fused GEMM + folded-BN + ReLU (+ optional residual add)
# ---------------------------------------------------------------------------
def _gemm_bn_relu_kernel(x_ref, w_ref, s_ref, b_ref, o_ref):
    # x: (TR, Kp) bf16, w: (Kp, Cp) bf16, s/b: (1, Cp) f32 -> o: (TR, Cp) f32
    y = jnp.dot(x_ref[...], w_ref[...], preferred_element_type=jnp.float32)
    y = y * s_ref[...] + b_ref[...]
    o_ref[...] = jnp.maximum(y, 0.0).astype(o_ref.dtype)


def _gemm_bn_relu_add_kernel(x_ref, w_ref, s_ref, b_ref, r_ref, o_ref):
    # relu(bn(x @ w)) + residual   (residual add of hxin fused into last conv)
    y = jnp.dot(x_ref[...], w_ref[...], preferred_element_type=jnp.float32)
    y = jnp.maximum(y * s_ref[...] + b_ref[...], 0.0) + r_ref[...]
    o_ref[...] = y.astype(o_ref.dtype)


# ---------------------------------------------------------------------------
# REBNCONV wrapper: im2col (dilated 3x3 taps) + tiled fused Pallas GEMM
# ---------------------------------------------------------------------------
def _im2col(x_nhwc, dirate):
    """(N,H,W,C) -> (N,H,W,9*C): dilated 3x3 taps, (ky,kx)-major, C contiguous."""
    N, H, W, C = x_nhwc.shape
    d = dirate
    xp = jnp.pad(x_nhwc, ((0, 0), (d, d), (d, d), (0, 0)))
    taps = []
    for ky in range(3):
        for kx in range(3):
            taps.append(lax.slice(xp, (0, ky * d, kx * d, 0),
                                  (N, ky * d + H, kx * d + W, C)))
    return jnp.concatenate(taps, axis=-1)


def rebnconv_pallas(x_nhwc, p, residual=None):
    N, H, W, Cin = x_nhwc.shape
    Cout = p["cout"]
    dirate = p["dirate"]
    K = 9 * Cin
    Kp, Cp = p["w"].shape
    P = N * H * W

    patches = _im2col(x_nhwc, dirate).reshape(P, K)

    P8 = _round_up(P, 8)
    TR = min(ROW_TILE, P8)
    Pp = _round_up(P8, TR)
    grid = (Pp // TR,)

    x2d = jnp.pad(patches, ((0, Pp - P), (0, Kp - K))).astype(jnp.bfloat16)

    args = [x2d, p["w"], p["s"], p["b"]]
    in_specs = [
        pl.BlockSpec((TR, Kp), lambda i: (i, 0)),
        pl.BlockSpec((Kp, Cp), lambda i: (0, 0)),
        pl.BlockSpec((1, Cp), lambda i: (0, 0)),
        pl.BlockSpec((1, Cp), lambda i: (0, 0)),
    ]
    bytes_accessed = x2d.size * 2 + p["w"].size * 2 + 2 * Cp * 4 + Pp * Cp * 4

    if residual is not None:
        r2d = residual.reshape(P, Cout)
        r2d = jnp.pad(r2d, ((0, Pp - P), (0, Cp - Cout)))
        args.append(r2d)
        in_specs.append(pl.BlockSpec((TR, Cp), lambda i: (i, 0)))
        bytes_accessed += r2d.size * 4
        kernel = _gemm_bn_relu_add_kernel
    else:
        kernel = _gemm_bn_relu_kernel

    out2d = pl.pallas_call(
        kernel,
        out_shape=jax.ShapeDtypeStruct((Pp, Cp), jnp.float32),
        grid=grid,
        in_specs=in_specs,
        out_specs=pl.BlockSpec((TR, Cp), lambda i: (i, 0)),
        compiler_params=pltpu.CompilerParams(
            dimension_semantics=("parallel",)),
        cost_estimate=pl.CostEstimate(
            flops=2 * Pp * Kp * Cp,
            transcendentals=0,
            bytes_accessed=int(bytes_accessed)),
    )(*args)

    return out2d[:P, :Cout].reshape(N, H, W, Cout)


# ---------------------------------------------------------------------------
# Pool / upsample helpers (plain JAX data movement, NHWC)
# ---------------------------------------------------------------------------
def maxpool2x2_ceil(x):
    N, H, W, C = x.shape
    Ho, Wo = -(-H // 2), -(-W // 2)
    ph, pw = Ho * 2 - H, Wo * 2 - W
    xp = jnp.pad(x, ((0, 0), (0, ph), (0, pw), (0, 0)),
                 constant_values=-jnp.inf)
    return jnp.max(xp.reshape(N, Ho, 2, Wo, 2, C), axis=(2, 4))


def upsample_bilinear(x, out_h, out_w):
    """Bilinear, align_corners=False (matches F.interpolate)."""
    N, H, W, C = x.shape

    def coords(out_size, in_size):
        i = jnp.arange(out_size, dtype=jnp.float32)
        c = (i + 0.5) * (in_size / out_size) - 0.5
        c = jnp.clip(c, 0.0, in_size - 1)
        lo = jnp.floor(c).astype(jnp.int32)
        hi = jnp.minimum(lo + 1, in_size - 1)
        return lo, hi, c - lo.astype(jnp.float32)

    hlo, hhi, hf = coords(out_h, H)
    wlo, whi, wf = coords(out_w, W)
    top = x[:, hlo, :, :]
    bot = x[:, hhi, :, :]
    v = top * (1.0 - hf)[None, :, None, None] + bot * hf[None, :, None, None]
    left = v[:, :, wlo, :]
    right = v[:, :, whi, :]
    return left * (1.0 - wf)[None, None, :, None] + right * wf[None, None, :, None]


# ---------------------------------------------------------------------------
# RSU6 forward (Pallas path)
# ---------------------------------------------------------------------------
def rsu6_forward_pallas(x_nchw, kp):
    x = jnp.transpose(x_nchw, (0, 2, 3, 1))            # NCHW -> NHWC once

    hxin = rebnconv_pallas(x, kp["convin"])
    hx1 = rebnconv_pallas(hxin, kp["conv1"])
    hx = maxpool2x2_ceil(hx1)
    hx2 = rebnconv_pallas(hx, kp["conv2"])
    hx = maxpool2x2_ceil(hx2)
    hx3 = rebnconv_pallas(hx, kp["conv3"])
    hx = maxpool2x2_ceil(hx3)
    hx4 = rebnconv_pallas(hx, kp["conv4"])
    hx = maxpool2x2_ceil(hx4)
    hx5 = rebnconv_pallas(hx, kp["conv5"])
    hx6 = rebnconv_pallas(hx5, kp["conv6"])            # dirate=2

    hx5d = rebnconv_pallas(jnp.concatenate([hx6, hx5], -1), kp["conv5d"])
    hx5dup = upsample_bilinear(hx5d, hx4.shape[1], hx4.shape[2])
    hx4d = rebnconv_pallas(jnp.concatenate([hx5dup, hx4], -1), kp["conv4d"])
    hx4dup = upsample_bilinear(hx4d, hx3.shape[1], hx3.shape[2])
    hx3d = rebnconv_pallas(jnp.concatenate([hx4dup, hx3], -1), kp["conv3d"])
    hx3dup = upsample_bilinear(hx3d, hx2.shape[1], hx2.shape[2])
    hx2d = rebnconv_pallas(jnp.concatenate([hx3dup, hx2], -1), kp["conv2d"])
    hx2dup = upsample_bilinear(hx2d, hx1.shape[1], hx1.shape[2])
    # final REBNCONV with the `+ hxin` residual fused into the kernel
    out = rebnconv_pallas(jnp.concatenate([hx2dup, hx1], -1), kp["conv1d"],
                          residual=hxin)
    return jnp.transpose(out, (0, 3, 1, 2))            # back to NCHW


# ---------------------------------------------------------------------------
# Parameter construction (deterministic, synthetic; eval-mode BN folded)
# ---------------------------------------------------------------------------
def make_rebnconv_raw(key, cin, cout, dirate):
    std = float(np.sqrt(2.0 / (cin * 9)))
    w = jax.random.normal(key, (cout, cin, 3, 3), jnp.float32) * std
    w = w.astype(jnp.bfloat16).astype(jnp.float32)     # bf16-representable
    c = jnp.arange(cout, dtype=jnp.float32)
    return dict(w=w, gamma=1.0 + 0.05 * c, beta=0.02 * c - 0.1,
                mean=0.01 * c, var=1.0 + 0.03 * c, dirate=dirate)


def fold_for_kernel(raw):
    w = raw["w"]
    cout, cin = w.shape[0], w.shape[1]
    K = 9 * cin
    Kp = _round_up(K, LANE)
    Cp = _round_up(cout, LANE)
    # (Cout,Cin,kH,kW) -> (kH,kW,Cin,Cout) -> (9*Cin, Cout), padded, bf16
    w2d = jnp.transpose(w, (2, 3, 1, 0)).reshape(K, cout)
    w2d = jnp.pad(w2d, ((0, Kp - K), (0, Cp - cout))).astype(jnp.bfloat16)
    scale = raw["gamma"] / jnp.sqrt(raw["var"] + EPS)
    bias = raw["beta"] - raw["mean"] * scale
    return dict(w=w2d,
                s=jnp.pad(scale, (0, Cp - cout))[None, :],
                b=jnp.pad(bias, (0, Cp - cout))[None, :],
                scale=scale, bias=bias,
                cout=cout, dirate=raw["dirate"])


# ---------------------------------------------------------------------------
# Pure-JAX reference (lax.conv) for the numeric check
# ---------------------------------------------------------------------------
def rebnconv_ref(x_nhwc, raw, kpl):
    d = raw["dirate"]
    w_hwio = jnp.transpose(raw["w"], (2, 3, 1, 0)).astype(jnp.bfloat16)
    y = lax.conv_general_dilated(
        x_nhwc.astype(jnp.bfloat16), w_hwio, (1, 1),
        [(d, d), (d, d)], rhs_dilation=(d, d),
        dimension_numbers=("NHWC", "HWIO", "NHWC"),
        preferred_element_type=jnp.float32)
    y = y * kpl["scale"][None, None, None, :] + kpl["bias"][None, None, None, :]
    return jnp.maximum(y, 0.0)


def rsu6_forward_ref(x_nchw, raw, kp):
    x = jnp.transpose(x_nchw, (0, 2, 3, 1))

    def rc(h, name):
        return rebnconv_ref(h, raw[name], kp[name])

    hxin = rc(x, "convin")
    hx1 = rc(hxin, "conv1")
    hx = maxpool2x2_ceil(hx1)
    hx2 = rc(hx, "conv2")
    hx = maxpool2x2_ceil(hx2)
    hx3 = rc(hx, "conv3")
    hx = maxpool2x2_ceil(hx3)
    hx4 = rc(hx, "conv4")
    hx = maxpool2x2_ceil(hx4)
    hx5 = rc(hx, "conv5")
    hx6 = rc(hx5, "conv6")
    hx5d = rc(jnp.concatenate([hx6, hx5], -1), "conv5d")
    hx5dup = upsample_bilinear(hx5d, hx4.shape[1], hx4.shape[2])
    hx4d = rc(jnp.concatenate([hx5dup, hx4], -1), "conv4d")
    hx4dup = upsample_bilinear(hx4d, hx3.shape[1], hx3.shape[2])
    hx3d = rc(jnp.concatenate([hx4dup, hx3], -1), "conv3d")
    hx3dup = upsample_bilinear(hx3d, hx2.shape[1], hx2.shape[2])
    hx2d = rc(jnp.concatenate([hx3dup, hx2], -1), "conv2d")
    hx2dup = upsample_bilinear(hx2d, hx1.shape[1], hx1.shape[2])
    hx1d = rc(jnp.concatenate([hx2dup, hx1], -1), "conv1d")
    out = hx1d + hxin
    return jnp.transpose(out, (0, 3, 1, 2))


# ---------------------------------------------------------------------------
if __name__ == "__main__":
    N, in_ch, mid_ch, out_ch, H, W = 2, 3, 12, 3, 16, 16

    layer_defs = [
        ("convin", in_ch, out_ch, 1),
        ("conv1", out_ch, mid_ch, 1),
        ("conv2", mid_ch, mid_ch, 1),
        ("conv3", mid_ch, mid_ch, 1),
        ("conv4", mid_ch, mid_ch, 1),
        ("conv5", mid_ch, mid_ch, 1),
        ("conv6", mid_ch, mid_ch, 2),
        ("conv5d", 2 * mid_ch, mid_ch, 1),
        ("conv4d", 2 * mid_ch, mid_ch, 1),
        ("conv3d", 2 * mid_ch, mid_ch, 1),
        ("conv2d", 2 * mid_ch, mid_ch, 1),
        ("conv1d", 2 * mid_ch, out_ch, 1),
    ]

    key = jax.random.PRNGKey(0)
    keys = jax.random.split(key, len(layer_defs) + 1)
    x = jax.random.normal(keys[0], (N, in_ch, H, W), jnp.float32)

    raw, kp = {}, {}
    for i, (name, cin, cout, d) in enumerate(layer_defs):
        raw[name] = make_rebnconv_raw(keys[i + 1], cin, cout, d)
        kp[name] = fold_for_kernel(raw[name])

    fwd = jax.jit(lambda xx: rsu6_forward_pallas(xx, kp))
    out = jax.block_until_ready(fwd(x))
    assert out.shape == (N, out_ch, H, W)

    ref = jax.block_until_ready(rsu6_forward_ref(x, raw, kp))
    np.testing.assert_allclose(np.asarray(out), np.asarray(ref),
                               rtol=1e-2, atol=1e-2)

    print("KERNEL_OK")
</pallas_src>

<mosaic_0001>
module attributes {stable_mosaic.version = 11 : i64} {
  func.func @_gemm_bn_relu_kernel(%arg0: i32, %arg1: memref<256x128xbf16, #tpu.memory_space<vmem>>, %arg2: memref<128x128xbf16, #tpu.memory_space<vmem>>, %arg3: memref<1x128xf32, #tpu.memory_space<vmem>>, %arg4: memref<1x128xf32, #tpu.memory_space<vmem>>, %arg5: memref<256x128xf32, #tpu.memory_space<vmem>>) attributes {dimension_semantics = [#tpu.dimension_semantics<parallel>], iteration_bounds = array<i64: 2>, scalar_prefetch = 0 : i64, scratch_operands = 0 : i64, tpu.core_type = #tpu.core_type<tc>, window_params = [{transform_indices = @transform_0, window_bounds = array<i64: 256, 128>}, {pipeline_mode = #tpu.pipeline_mode<synchronous>, transform_indices = @transform_1, window_bounds = array<i64: 128, 128>}, {pipeline_mode = #tpu.pipeline_mode<synchronous>, transform_indices = @transform_2, window_bounds = array<i64: 1, 128>}, {pipeline_mode = #tpu.pipeline_mode<synchronous>, transform_indices = @transform_3, window_bounds = array<i64: 1, 128>}, {transform_indices = @transform_4, window_bounds = array<i64: 256, 128>}]} {
    %c0 = arith.constant 0 : index
    %c0_0 = arith.constant 0 : index
    %0 = vector.load %arg1[%c0, %c0_0] : memref<256x128xbf16, #tpu.memory_space<vmem>>, vector<256x128xbf16>
    %c0_1 = arith.constant 0 : index
    %c0_2 = arith.constant 0 : index
    %1 = vector.load %arg2[%c0_1, %c0_2] : memref<128x128xbf16, #tpu.memory_space<vmem>>, vector<128x128xbf16>
    %cst = arith.constant dense<0.000000e+00> : vector<256x128xf32>
    %2 = tpu.matmul %0, %1, %cst {dimension_numbers = #tpu.dot_dimension_numbers<[1], [0], [0], [1], [0, 0, 1, 1], [], []>} : vector<256x128xbf16>, vector<128x128xbf16>, vector<256x128xf32> -> vector<256x128xf32>
    %c0_3 = arith.constant 0 : index
    %c0_4 = arith.constant 0 : index
    %3 = vector.load %arg3[%c0_3, %c0_4] : memref<1x128xf32, #tpu.memory_space<vmem>>, vector<1x128xf32>
    %4 = vector.broadcast %3 : vector<1x128xf32> to vector<256x128xf32>
    %5 = arith.mulf %2, %4 : vector<256x128xf32>
    %c0_5 = arith.constant 0 : index
    %c0_6 = arith.constant 0 : index
    %6 = vector.load %arg4[%c0_5, %c0_6] : memref<1x128xf32, #tpu.memory_space<vmem>>, vector<1x128xf32>
    %7 = vector.broadcast %6 : vector<1x128xf32> to vector<256x128xf32>
    %8 = arith.addf %5, %7 : vector<256x128xf32>
    %cst_7 = arith.constant 0.000000e+00 : f32
    %9 = vector.broadcast %cst_7 : f32 to vector<256x128xf32>
    %10 = arith.maximumf %8, %9 : vector<256x128xf32>
    %c0_8 = arith.constant 0 : index
    %c0_9 = arith.constant 0 : index
    %11 = vector.load %arg5[%c0_8, %c0_9] : memref<256x128xf32, #tpu.memory_space<vmem>>, vector<256x128xf32>
    tpu.vector_store %arg5[%c0_8, %c0_9], %10 {strides = array<i32>} : memref<256x128xf32, #tpu.memory_space<vmem>>, vector<256x128xf32>,
    return
  }
  func.func @transform_0(%arg0: i32) -> (i32, i32) {
    %c0_i32 = arith.constant 0 : i32
    %c0_i32_0 = arith.constant 0 : i32
    return %arg0, %c0_i32 : i32, i32
  }
  func.func @transform_1(%arg0: i32) -> (i32, i32) {
    %c0_i32 = arith.constant 0 : i32
    %c0_i32_0 = arith.constant 0 : i32
    %c0_i32_1 = arith.constant 0 : i32
    return %c0_i32, %c0_i32_0 : i32, i32
  }
  func.func @transform_2(%arg0: i32) -> (i32, i32) {
    %c0_i32 = arith.constant 0 : i32
    %c0_i32_0 = arith.constant 0 : i32
    %c0_i32_1 = arith.constant 0 : i32
    return %c0_i32, %c0_i32_0 : i32, i32
  }
  func.func @transform_3(%arg0: i32) -> (i32, i32) {
    %c0_i32 = arith.constant 0 : i32
    %c0_i32_0 = arith.constant 0 : i32
    %c0_i32_1 = arith.constant 0 : i32
    return %c0_i32, %c0_i32_0 : i32, i32
  }
  func.func @transform_4(%arg0: i32) -> (i32, i32) {
    %c0_i32 = arith.constant 0 : i32
    %c0_i32_0 = arith.constant 0 : i32
    return %arg0, %c0_i32 : i32, i32
  }
}

module attributes {stable_mosaic.version = 11 : i64} {
  func.func @_gemm_bn_relu_kernel(%arg0: i32, %arg1: memref<128x128xbf16, #tpu.memory_space<vmem>>, %arg2: memref<128x128xbf16, #tpu.memory_space<vmem>>, %arg3: memref<1x128xf32, #tpu.memory_space<vmem>>, %arg4: memref<1x128xf32, #tpu.memory_space<vmem>>, %arg5: memref<128x128xf32, #tpu.memory_space<vmem>>) attributes {dimension_semantics = [#tpu.dimension_semantics<parallel>], iteration_bounds = array<i64: 1>, scalar_prefetch = 0 : i64, scratch_operands = 0 : i64, tpu.core_type = #tpu.core_type<tc>, window_params = [{transform_indices = @transform_0, window_bounds = array<i64: 128, 128>}, {pipeline_mode = #tpu.pipeline_mode<synchronous>, transform_indices = @transform_1, window_bounds = array<i64: 128, 128>}, {pipeline_mode = #tpu.pipeline_mode<synchronous>, transform_indices = @transform_2, window_bounds = array<i64: 1, 128>}, {pipeline_mode = #tpu.pipeline_mode<synchronous>, transform_indices = @transform_3, window_bounds = array<i64: 1, 128>}, {transform_indices = @transform_4, window_bounds = array<i64: 128, 128>}]} {
    %c0 = arith.constant 0 : index
    %c0_0 = arith.constant 0 : index
    %0 = vector.load %arg1[%c0, %c0_0] : memref<128x128xbf16, #tpu.memory_space<vmem>>, vector<128x128xbf16>
    %c0_1 = arith.constant 0 : index
    %c0_2 = arith.constant 0 : index
    %1 = vector.load %arg2[%c0_1, %c0_2] : memref<128x128xbf16, #tpu.memory_space<vmem>>, vector<128x128xbf16>
    %cst = arith.constant dense<0.000000e+00> : vector<128x128xf32>
    %2 = tpu.matmul %0, %1, %cst {dimension_numbers = #tpu.dot_dimension_numbers<[1], [0], [0], [1], [0, 0, 1, 1], [], []>} : vector<128x128xbf16>, vector<128x128xbf16>, vector<128x128xf32> -> vector<128x128xf32>
    %c0_3 = arith.constant 0 : index
    %c0_4 = arith.constant 0 : index
    %3 = vector.load %arg3[%c0_3, %c0_4] : memref<1x128xf32, #tpu.memory_space<vmem>>, vector<1x128xf32>
    %4 = vector.broadcast %3 : vector<1x128xf32> to vector<128x128xf32>
    %5 = arith.mulf %2, %4 : vector<128x128xf32>
    %c0_5 = arith.constant 0 : index
    %c0_6 = arith.constant 0 : index
    %6 = vector.load %arg4[%c0_5, %c0_6] : memref<1x128xf32, #tpu.memory_space<vmem>>, vector<1x128xf32>
    %7 = vector.broadcast %6 : vector<1x128xf32> to vector<128x128xf32>
    %8 = arith.addf %5, %7 : vector<128x128xf32>
    %cst_7 = arith.constant 0.000000e+00 : f32
    %9 = vector.broadcast %cst_7 : f32 to vector<128x128xf32>
    %10 = arith.maximumf %8, %9 : vector<128x128xf32>
    %c0_8 = arith.constant 0 : index
    %c0_9 = arith.constant 0 : index
    %11 = vector.load %arg5[%c0_8, %c0_9] : memref<128x128xf32, #tpu.memory_space<vmem>>, vector<128x128xf32>
    tpu.vector_store %arg5[%c0_8, %c0_9], %10 {strides = array<i32>} : memref<128x128xf32, #tpu.memory_space<vmem>>, vector<128x128xf32>,
    return
  }
  func.func @transform_0(%arg0: i32) -> (i32, i32) {
    %c0_i32 = arith.constant 0 : i32
    %c0_i32_0 = arith.constant 0 : i32
    return %arg0, %c0_i32 : i32, i32
  }
  func.func @transform_1(%arg0: i32) -> (i32, i32) {
    %c0_i32 = arith.constant 0 : i32
    %c0_i32_0 = arith.constant 0 : i32
    %c0_i32_1 = arith.constant 0 : i32
    return %c0_i32, %c0_i32_0 : i32, i32
  }
  func.func @transform_2(%arg0: i32) -> (i32, i32) {
    %c0_i32 = arith.constant 0 : i32
    %c0_i32_0 = arith.constant 0 : i32
    %c0_i32_1 = arith.constant 0 : i32
    return %c0_i32, %c0_i32_0 : i32, i32
  }
  func.func @transform_3(%arg0: i32) -> (i32, i32) {
    %c0_i32 = arith.constant 0 : i32
    %c0_i32_0 = arith.constant 0 : i32
    %c0_i32_1 = arith.constant 0 : i32
    return %c0_i32, %c0_i32_0 : i32, i32
  }
  func.func @transform_4(%arg0: i32) -> (i32, i32) {
    %c0_i32 = arith.constant 0 : i32
    %c0_i32_0 = arith.constant 0 : i32
    return %arg0, %c0_i32 : i32, i32
  }
}

module attributes {stable_mosaic.version = 11 : i64} {
  func.func @_gemm_bn_relu_kernel(%arg0: i32, %arg1: memref<32x128xbf16, #tpu.memory_space<vmem>>, %arg2: memref<128x128xbf16, #tpu.memory_space<vmem>>, %arg3: memref<1x128xf32, #tpu.memory_space<vmem>>, %arg4: memref<1x128xf32, #tpu.memory_space<vmem>>, %arg5: memref<32x128xf32, #tpu.memory_space<vmem>>) attributes {dimension_semantics = [#tpu.dimension_semantics<parallel>], iteration_bounds = array<i64: 1>, scalar_prefetch = 0 : i64, scratch_operands = 0 : i64, tpu.core_type = #tpu.core_type<tc>, window_params = [{transform_indices = @transform_0, window_bounds = array<i64: 32, 128>}, {pipeline_mode = #tpu.pipeline_mode<synchronous>, transform_indices = @transform_1, window_bounds = array<i64: 128, 128>}, {pipeline_mode = #tpu.pipeline_mode<synchronous>, transform_indices = @transform_2, window_bounds = array<i64: 1, 128>}, {pipeline_mode = #tpu.pipeline_mode<synchronous>, transform_indices = @transform_3, window_bounds = array<i64: 1, 128>}, {transform_indices = @transform_4, window_bounds = array<i64: 32, 128>}]} {
    %c0 = arith.constant 0 : index
    %c0_0 = arith.constant 0 : index
    %0 = vector.load %arg1[%c0, %c0_0] : memref<32x128xbf16, #tpu.memory_space<vmem>>, vector<32x128xbf16>
    %c0_1 = arith.constant 0 : index
    %c0_2 = arith.constant 0 : index
    %1 = vector.load %arg2[%c0_1, %c0_2] : memref<128x128xbf16, #tpu.memory_space<vmem>>, vector<128x128xbf16>
    %cst = arith.constant dense<0.000000e+00> : vector<32x128xf32>
    %2 = tpu.matmul %0, %1, %cst {dimension_numbers = #tpu.dot_dimension_numbers<[1], [0], [0], [1], [0, 0, 1, 1], [], []>} : vector<32x128xbf16>, vector<128x128xbf16>, vector<32x128xf32> -> vector<32x128xf32>
    %c0_3 = arith.constant 0 : index
    %c0_4 = arith.constant 0 : index
    %3 = vector.load %arg3[%c0_3, %c0_4] : memref<1x128xf32, #tpu.memory_space<vmem>>, vector<1x128xf32>
    %4 = vector.broadcast %3 : vector<1x128xf32> to vector<32x128xf32>
    %5 = arith.mulf %2, %4 : vector<32x128xf32>
    %c0_5 = arith.constant 0 : index
    %c0_6 = arith.constant 0 : index
    %6 = vector.load %arg4[%c0_5, %c0_6] : memref<1x128xf32, #tpu.memory_space<vmem>>, vector<1x128xf32>
    %7 = vector.broadcast %6 : vector<1x128xf32> to vector<32x128xf32>
    %8 = arith.addf %5, %7 : vector<32x128xf32>
    %cst_7 = arith.constant 0.000000e+00 : f32
    %9 = vector.broadcast %cst_7 : f32 to vector<32x128xf32>
    %10 = arith.maximumf %8, %9 : vector<32x128xf32>
    %c0_8 = arith.constant 0 : index
    %c0_9 = arith.constant 0 : index
    %11 = vector.load %arg5[%c0_8, %c0_9] : memref<32x128xf32, #tpu.memory_space<vmem>>, vector<32x128xf32>
    tpu.vector_store %arg5[%c0_8, %c0_9], %10 {strides = array<i32>} : memref<32x128xf32, #tpu.memory_space<vmem>>, vector<32x128xf32>,
    return
  }
  func.func @transform_0(%arg0: i32) -> (i32, i32) {
    %c0_i32 = arith.constant 0 : i32
    %c0_i32_0 = arith.constant 0 : i32
    return %arg0, %c0_i32 : i32, i32
  }
  func.func @transform_1(%arg0: i32) -> (i32, i32) {
    %c0_i32 = arith.constant 0 : i32
    %c0_i32_0 = arith.constant 0 : i32
    %c0_i32_1 = arith.constant 0 : i32
    return %c0_i32, %c0_i32_0 : i32, i32
  }
  func.func @transform_2(%arg0: i32) -> (i32, i32) {
    %c0_i32 = arith.constant 0 : i32
    %c0_i32_0 = arith.constant 0 : i32
    %c0_i32_1 = arith.constant 0 : i32
    return %c0_i32, %c0_i32_0 : i32, i32
  }
  func.func @transform_3(%arg0: i32) -> (i32, i32) {
    %c0_i32 = arith.constant 0 : i32
    %c0_i32_0 = arith.constant 0 : i32
    %c0_i32_1 = arith.constant 0 : i32
    return %c0_i32, %c0_i32_0 : i32, i32
  }
  func.func @transform_4(%arg0: i32) -> (i32, i32) {
    %c0_i32 = arith.constant 0 : i32
    %c0_i32_0 = arith.constant 0 : i32
    return %arg0, %c0_i32 : i32, i32
  }
}

module attributes {stable_mosaic.version = 11 : i64} {
  func.func @_gemm_bn_relu_kernel(%arg0: i32, %arg1: memref<8x128xbf16, #tpu.memory_space<vmem>>, %arg2: memref<128x128xbf16, #tpu.memory_space<vmem>>, %arg3: memref<1x128xf32, #tpu.memory_space<vmem>>, %arg4: memref<1x128xf32, #tpu.memory_space<vmem>>, %arg5: memref<8x128xf32, #tpu.memory_space<vmem>>) attributes {dimension_semantics = [#tpu.dimension_semantics<parallel>], iteration_bounds = array<i64: 1>, scalar_prefetch = 0 : i64, scratch_operands = 0 : i64, tpu.core_type = #tpu.core_type<tc>, window_params = [{transform_indices = @transform_0, window_bounds = array<i64: 8, 128>}, {pipeline_mode = #tpu.pipeline_mode<synchronous>, transform_indices = @transform_1, window_bounds = array<i64: 128, 128>}, {pipeline_mode = #tpu.pipeline_mode<synchronous>, transform_indices = @transform_2, window_bounds = array<i64: 1, 128>}, {pipeline_mode = #tpu.pipeline_mode<synchronous>, transform_indices = @transform_3, window_bounds = array<i64: 1, 128>}, {transform_indices = @transform_4, window_bounds = array<i64: 8, 128>}]} {
    %c0 = arith.constant 0 : index
    %c0_0 = arith.constant 0 : index
    %0 = vector.load %arg1[%c0, %c0_0] : memref<8x128xbf16, #tpu.memory_space<vmem>>, vector<8x128xbf16>
    %c0_1 = arith.constant 0 : index
    %c0_2 = arith.constant 0 : index
    %1 = vector.load %arg2[%c0_1, %c0_2] : memref<128x128xbf16, #tpu.memory_space<vmem>>, vector<128x128xbf16>
    %cst = arith.constant dense<0.000000e+00> : vector<8x128xf32>
    %2 = tpu.matmul %0, %1, %cst {dimension_numbers = #tpu.dot_dimension_numbers<[1], [0], [0], [1], [0, 0, 1, 1], [], []>} : vector<8x128xbf16>, vector<128x128xbf16>, vector<8x128xf32> -> vector<8x128xf32>
    %c0_3 = arith.constant 0 : index
    %c0_4 = arith.constant 0 : index
    %3 = vector.load %arg3[%c0_3, %c0_4] : memref<1x128xf32, #tpu.memory_space<vmem>>, vector<1x128xf32>
    %4 = vector.broadcast %3 : vector<1x128xf32> to vector<8x128xf32>
    %5 = arith.mulf %2, %4 : vector<8x128xf32>
    %c0_5 = arith.constant 0 : index
    %c0_6 = arith.constant 0 : index
    %6 = vector.load %arg4[%c0_5, %c0_6] : memref<1x128xf32, #tpu.memory_space<vmem>>, vector<1x128xf32>
    %7 = vector.broadcast %6 : vector<1x128xf32> to vector<8x128xf32>
    %8 = arith.addf %5, %7 : vector<8x128xf32>
    %cst_7 = arith.constant 0.000000e+00 : f32
    %9 = vector.broadcast %cst_7 : f32 to vector<8x128xf32>
    %10 = arith.maximumf %8, %9 : vector<8x128xf32>
    %c0_8 = arith.constant 0 : index
    %c0_9 = arith.constant 0 : index
    %11 = vector.load %arg5[%c0_8, %c0_9] : memref<8x128xf32, #tpu.memory_space<vmem>>, vector<8x128xf32>
    tpu.vector_store %arg5[%c0_8, %c0_9], %10 {strides = array<i32>} : memref<8x128xf32, #tpu.memory_space<vmem>>, vector<8x128xf32>,
    return
  }
  func.func @transform_0(%arg0: i32) -> (i32, i32) {
    %c0_i32 = arith.constant 0 : i32
    %c0_i32_0 = arith.constant 0 : i32
    return %arg0, %c0_i32 : i32, i32
  }
  func.func @transform_1(%arg0: i32) -> (i32, i32) {
    %c0_i32 = arith.constant 0 : i32
    %c0_i32_0 = arith.constant 0 : i32
    %c0_i32_1 = arith.constant 0 : i32
    return %c0_i32, %c0_i32_0 : i32, i32
  }
  func.func @transform_2(%arg0: i32) -> (i32, i32) {
    %c0_i32 = arith.constant 0 : i32
    %c0_i32_0 = arith.constant 0 : i32
    %c0_i32_1 = arith.constant 0 : i32
    return %c0_i32, %c0_i32_0 : i32, i32
  }
  func.func @transform_3(%arg0: i32) -> (i32, i32) {
    %c0_i32 = arith.constant 0 : i32
    %c0_i32_0 = arith.constant 0 : i32
    %c0_i32_1 = arith.constant 0 : i32
    return %c0_i32, %c0_i32_0 : i32, i32
  }
  func.func @transform_4(%arg0: i32) -> (i32, i32) {
    %c0_i32 = arith.constant 0 : i32
    %c0_i32_0 = arith.constant 0 : i32
    return %arg0, %c0_i32 : i32, i32
  }
}

module attributes {stable_mosaic.version = 11 : i64} {
  func.func @_gemm_bn_relu_kernel(%arg0: i32, %arg1: memref<8x256xbf16, #tpu.memory_space<vmem>>, %arg2: memref<256x128xbf16, #tpu.memory_space<vmem>>, %arg3: memref<1x128xf32, #tpu.memory_space<vmem>>, %arg4: memref<1x128xf32, #tpu.memory_space<vmem>>, %arg5: memref<8x128xf32, #tpu.memory_space<vmem>>) attributes {dimension_semantics = [#tpu.dimension_semantics<parallel>], iteration_bounds = array<i64: 1>, scalar_prefetch = 0 : i64, scratch_operands = 0 : i64, tpu.core_type = #tpu.core_type<tc>, window_params = [{transform_indices = @transform_0, window_bounds = array<i64: 8, 256>}, {pipeline_mode = #tpu.pipeline_mode<synchronous>, transform_indices = @transform_1, window_bounds = array<i64: 256, 128>}, {pipeline_mode = #tpu.pipeline_mode<synchronous>, transform_indices = @transform_2, window_bounds = array<i64: 1, 128>}, {pipeline_mode = #tpu.pipeline_mode<synchronous>, transform_indices = @transform_3, window_bounds = array<i64: 1, 128>}, {transform_indices = @transform_4, window_bounds = array<i64: 8, 128>}]} {
    %c0 = arith.constant 0 : index
    %c0_0 = arith.constant 0 : index
    %0 = vector.load %arg1[%c0, %c0_0] : memref<8x256xbf16, #tpu.memory_space<vmem>>, vector<8x256xbf16>
    %c0_1 = arith.constant 0 : index
    %c0_2 = arith.constant 0 : index
    %1 = vector.load %arg2[%c0_1, %c0_2] : memref<256x128xbf16, #tpu.memory_space<vmem>>, vector<256x128xbf16>
    %cst = arith.constant dense<0.000000e+00> : vector<8x128xf32>
    %2 = tpu.matmul %0, %1, %cst {dimension_numbers = #tpu.dot_dimension_numbers<[1], [0], [0], [1], [0, 0, 1, 1], [], []>} : vector<8x256xbf16>, vector<256x128xbf16>, vector<8x128xf32> -> vector<8x128xf32>
    %c0_3 = arith.constant 0 : index
    %c0_4 = arith.constant 0 : index
    %3 = vector.load %arg3[%c0_3, %c0_4] : memref<1x128xf32, #tpu.memory_space<vmem>>, vector<1x128xf32>
    %4 = vector.broadcast %3 : vector<1x128xf32> to vector<8x128xf32>
    %5 = arith.mulf %2, %4 : vector<8x128xf32>
    %c0_5 = arith.constant 0 : index
    %c0_6 = arith.constant 0 : index
    %6 = vector.load %arg4[%c0_5, %c0_6] : memref<1x128xf32, #tpu.memory_space<vmem>>, vector<1x128xf32>
    %7 = vector.broadcast %6 : vector<1x128xf32> to vector<8x128xf32>
    %8 = arith.addf %5, %7 : vector<8x128xf32>
    %cst_7 = arith.constant 0.000000e+00 : f32
    %9 = vector.broadcast %cst_7 : f32 to vector<8x128xf32>
    %10 = arith.maximumf %8, %9 : vector<8x128xf32>
    %c0_8 = arith.constant 0 : index
    %c0_9 = arith.constant 0 : index
    %11 = vector.load %arg5[%c0_8, %c0_9] : memref<8x128xf32, #tpu.memory_space<vmem>>, vector<8x128xf32>
    tpu.vector_store %arg5[%c0_8, %c0_9], %10 {strides = array<i32>} : memref<8x128xf32, #tpu.memory_space<vmem>>, vector<8x128xf32>,
    return
  }
  func.func @transform_0(%arg0: i32) -> (i32, i32) {
    %c0_i32 = arith.constant 0 : i32
    %c0_i32_0 = arith.constant 0 : i32
    return %arg0, %c0_i32 : i32, i32
  }
  func.func @transform_1(%arg0: i32) -> (i32, i32) {
    %c0_i32 = arith.constant 0 : i32
    %c0_i32_0 = arith.constant 0 : i32
    %c0_i32_1 = arith.constant 0 : i32
    return %c0_i32, %c0_i32_0 : i32, i32
  }
  func.func @transform_2(%arg0: i32) -> (i32, i32) {
    %c0_i32 = arith.constant 0 : i32
    %c0_i32_0 = arith.constant 0 : i32
    %c0_i32_1 = arith.constant 0 : i32
    return %c0_i32, %c0_i32_0 : i32, i32
  }
  func.func @transform_3(%arg0: i32) -> (i32, i32) {
    %c0_i32 = arith.constant 0 : i32
    %c0_i32_0 = arith.constant 0 : i32
    %c0_i32_1 = arith.constant 0 : i32
    return %c0_i32, %c0_i32_0 : i32, i32
  }
  func.func @transform_4(%arg0: i32) -> (i32, i32) {
    %c0_i32 = arith.constant 0 : i32
    %c0_i32_0 = arith.constant 0 : i32
    return %arg0, %c0_i32 : i32, i32
  }
}

module attributes {stable_mosaic.version = 11 : i64} {
  func.func @_gemm_bn_relu_kernel(%arg0: i32, %arg1: memref<32x256xbf16, #tpu.memory_space<vmem>>, %arg2: memref<256x128xbf16, #tpu.memory_space<vmem>>, %arg3: memref<1x128xf32, #tpu.memory_space<vmem>>, %arg4: memref<1x128xf32, #tpu.memory_space<vmem>>, %arg5: memref<32x128xf32, #tpu.memory_space<vmem>>) attributes {dimension_semantics = [#tpu.dimension_semantics<parallel>], iteration_bounds = array<i64: 1>, scalar_prefetch = 0 : i64, scratch_operands = 0 : i64, tpu.core_type = #tpu.core_type<tc>, window_params = [{transform_indices = @transform_0, window_bounds = array<i64: 32, 256>}, {pipeline_mode = #tpu.pipeline_mode<synchronous>, transform_indices = @transform_1, window_bounds = array<i64: 256, 128>}, {pipeline_mode = #tpu.pipeline_mode<synchronous>, transform_indices = @transform_2, window_bounds = array<i64: 1, 128>}, {pipeline_mode = #tpu.pipeline_mode<synchronous>, transform_indices = @transform_3, window_bounds = array<i64: 1, 128>}, {transform_indices = @transform_4, window_bounds = array<i64: 32, 128>}]} {
    %c0 = arith.constant 0 : index
    %c0_0 = arith.constant 0 : index
    %0 = vector.load %arg1[%c0, %c0_0] : memref<32x256xbf16, #tpu.memory_space<vmem>>, vector<32x256xbf16>
    %c0_1 = arith.constant 0 : index
    %c0_2 = arith.constant 0 : index
    %1 = vector.load %arg2[%c0_1, %c0_2] : memref<256x128xbf16, #tpu.memory_space<vmem>>, vector<256x128xbf16>
    %cst = arith.constant dense<0.000000e+00> : vector<32x128xf32>
    %2 = tpu.matmul %0, %1, %cst {dimension_numbers = #tpu.dot_dimension_numbers<[1], [0], [0], [1], [0, 0, 1, 1], [], []>} : vector<32x256xbf16>, vector<256x128xbf16>, vector<32x128xf32> -> vector<32x128xf32>
    %c0_3 = arith.constant 0 : index
    %c0_4 = arith.constant 0 : index
    %3 = vector.load %arg3[%c0_3, %c0_4] : memref<1x128xf32, #tpu.memory_space<vmem>>, vector<1x128xf32>
    %4 = vector.broadcast %3 : vector<1x128xf32> to vector<32x128xf32>
    %5 = arith.mulf %2, %4 : vector<32x128xf32>
    %c0_5 = arith.constant 0 : index
    %c0_6 = arith.constant 0 : index
    %6 = vector.load %arg4[%c0_5, %c0_6] : memref<1x128xf32, #tpu.memory_space<vmem>>, vector<1x128xf32>
    %7 = vector.broadcast %6 : vector<1x128xf32> to vector<32x128xf32>
    %8 = arith.addf %5, %7 : vector<32x128xf32>
    %cst_7 = arith.constant 0.000000e+00 : f32
    %9 = vector.broadcast %cst_7 : f32 to vector<32x128xf32>
    %10 = arith.maximumf %8, %9 : vector<32x128xf32>
    %c0_8 = arith.constant 0 : index
    %c0_9 = arith.constant 0 : index
    %11 = vector.load %arg5[%c0_8, %c0_9] : memref<32x128xf32, #tpu.memory_space<vmem>>, vector<32x128xf32>
    tpu.vector_store %arg5[%c0_8, %c0_9], %10 {strides = array<i32>} : memref<32x128xf32, #tpu.memory_space<vmem>>, vector<32x128xf32>,
    return
  }
  func.func @transform_0(%arg0: i32) -> (i32, i32) {
    %c0_i32 = arith.constant 0 : i32
    %c0_i32_0 = arith.constant 0 : i32
    return %arg0, %c0_i32 : i32, i32
  }
  func.func @transform_1(%arg0: i32) -> (i32, i32) {
    %c0_i32 = arith.constant 0 : i32
    %c0_i32_0 = arith.constant 0 : i32
    %c0_i32_1 = arith.constant 0 : i32
    return %c0_i32, %c0_i32_0 : i32, i32
  }
  func.func @transform_2(%arg0: i32) -> (i32, i32) {
    %c0_i32 = arith.constant 0 : i32
    %c0_i32_0 = arith.constant 0 : i32
    %c0_i32_1 = arith.constant 0 : i32
    return %c0_i32, %c0_i32_0 : i32, i32
  }
  func.func @transform_3(%arg0: i32) -> (i32, i32) {
    %c0_i32 = arith.constant 0 : i32
    %c0_i32_0 = arith.constant 0 : i32
    %c0_i32_1 = arith.constant 0 : i32
    return %c0_i32, %c0_i32_0 : i32, i32
  }
  func.func @transform_4(%arg0: i32) -> (i32, i32) {
    %c0_i32 = arith.constant 0 : i32
    %c0_i32_0 = arith.constant 0 : i32
    return %arg0, %c0_i32 : i32, i32
  }
}

module attributes {stable_mosaic.version = 11 : i64} {
  func.func @_gemm_bn_relu_kernel(%arg0: i32, %arg1: memref<128x256xbf16, #tpu.memory_space<vmem>>, %arg2: memref<256x128xbf16, #tpu.memory_space<vmem>>, %arg3: memref<1x128xf32, #tpu.memory_space<vmem>>, %arg4: memref<1x128xf32, #tpu.memory_space<vmem>>, %arg5: memref<128x128xf32, #tpu.memory_space<vmem>>) attributes {dimension_semantics = [#tpu.dimension_semantics<parallel>], iteration_bounds = array<i64: 1>, scalar_prefetch = 0 : i64, scratch_operands = 0 : i64, tpu.core_type = #tpu.core_type<tc>, window_params = [{transform_indices = @transform_0, window_bounds = array<i64: 128, 256>}, {pipeline_mode = #tpu.pipeline_mode<synchronous>, transform_indices = @transform_1, window_bounds = array<i64: 256, 128>}, {pipeline_mode = #tpu.pipeline_mode<synchronous>, transform_indices = @transform_2, window_bounds = array<i64: 1, 128>}, {pipeline_mode = #tpu.pipeline_mode<synchronous>, transform_indices = @transform_3, window_bounds = array<i64: 1, 128>}, {transform_indices = @transform_4, window_bounds = array<i64: 128, 128>}]} {
    %c0 = arith.constant 0 : index
    %c0_0 = arith.constant 0 : index
    %0 = vector.load %arg1[%c0, %c0_0] : memref<128x256xbf16, #tpu.memory_space<vmem>>, vector<128x256xbf16>
    %c0_1 = arith.constant 0 : index
    %c0_2 = arith.constant 0 : index
    %1 = vector.load %arg2[%c0_1, %c0_2] : memref<256x128xbf16, #tpu.memory_space<vmem>>, vector<256x128xbf16>
    %cst = arith.constant dense<0.000000e+00> : vector<128x128xf32>
    %2 = tpu.matmul %0, %1, %cst {dimension_numbers = #tpu.dot_dimension_numbers<[1], [0], [0], [1], [0, 0, 1, 1], [], []>} : vector<128x256xbf16>, vector<256x128xbf16>, vector<128x128xf32> -> vector<128x128xf32>
    %c0_3 = arith.constant 0 : index
    %c0_4 = arith.constant 0 : index
    %3 = vector.load %arg3[%c0_3, %c0_4] : memref<1x128xf32, #tpu.memory_space<vmem>>, vector<1x128xf32>
    %4 = vector.broadcast %3 : vector<1x128xf32> to vector<128x128xf32>
    %5 = arith.mulf %2, %4 : vector<128x128xf32>
    %c0_5 = arith.constant 0 : index
    %c0_6 = arith.constant 0 : index
    %6 = vector.load %arg4[%c0_5, %c0_6] : memref<1x128xf32, #tpu.memory_space<vmem>>, vector<1x128xf32>
    %7 = vector.broadcast %6 : vector<1x128xf32> to vector<128x128xf32>
    %8 = arith.addf %5, %7 : vector<128x128xf32>
    %cst_7 = arith.constant 0.000000e+00 : f32
    %9 = vector.broadcast %cst_7 : f32 to vector<128x128xf32>
    %10 = arith.maximumf %8, %9 : vector<128x128xf32>
    %c0_8 = arith.constant 0 : index
    %c0_9 = arith.constant 0 : index
    %11 = vector.load %arg5[%c0_8, %c0_9] : memref<128x128xf32, #tpu.memory_space<vmem>>, vector<128x128xf32>
    tpu.vector_store %arg5[%c0_8, %c0_9], %10 {strides = array<i32>} : memref<128x128xf32, #tpu.memory_space<vmem>>, vector<128x128xf32>,
    return
  }
  func.func @transform_0(%arg0: i32) -> (i32, i32) {
    %c0_i32 = arith.constant 0 : i32
    %c0_i32_0 = arith.constant 0 : i32
    return %arg0, %c0_i32 : i32, i32
  }
  func.func @transform_1(%arg0: i32) -> (i32, i32) {
    %c0_i32 = arith.constant 0 : i32
    %c0_i32_0 = arith.constant 0 : i32
    %c0_i32_1 = arith.constant 0 : i32
    return %c0_i32, %c0_i32_0 : i32, i32
  }
  func.func @transform_2(%arg0: i32) -> (i32, i32) {
    %c0_i32 = arith.constant 0 : i32
    %c0_i32_0 = arith.constant 0 : i32
    %c0_i32_1 = arith.constant 0 : i32
    return %c0_i32, %c0_i32_0 : i32, i32
  }
  func.func @transform_3(%arg0: i32) -> (i32, i32) {
    %c0_i32 = arith.constant 0 : i32
    %c0_i32_0 = arith.constant 0 : i32
    %c0_i32_1 = arith.constant 0 : i32
    return %c0_i32, %c0_i32_0 : i32, i32
  }
  func.func @transform_4(%arg0: i32) -> (i32, i32) {
    %c0_i32 = arith.constant 0 : i32
    %c0_i32_0 = arith.constant 0 : i32
    return %arg0, %c0_i32 : i32, i32
  }
}

module attributes {stable_mosaic.version = 11 : i64} {
  func.func @_gemm_bn_relu_add_kernel(%arg0: i32, %arg1: memref<256x256xbf16, #tpu.memory_space<vmem>>, %arg2: memref<256x128xbf16, #tpu.memory_space<vmem>>, %arg3: memref<1x128xf32, #tpu.memory_space<vmem>>, %arg4: memref<1x128xf32, #tpu.memory_space<vmem>>, %arg5: memref<256x128xf32, #tpu.memory_space<vmem>>, %arg6: memref<256x128xf32, #tpu.memory_space<vmem>>) attributes {dimension_semantics = [#tpu.dimension_semantics<parallel>], iteration_bounds = array<i64: 2>, scalar_prefetch = 0 : i64, scratch_operands = 0 : i64, tpu.core_type = #tpu.core_type<tc>, window_params = [{transform_indices = @transform_0, window_bounds = array<i64: 256, 256>}, {pipeline_mode = #tpu.pipeline_mode<synchronous>, transform_indices = @transform_1, window_bounds = array<i64: 256, 128>}, {pipeline_mode = #tpu.pipeline_mode<synchronous>, transform_indices = @transform_2, window_bounds = array<i64: 1, 128>}, {pipeline_mode = #tpu.pipeline_mode<synchronous>, transform_indices = @transform_3, window_bounds = array<i64: 1, 128>}, {transform_indices = @transform_4, window_bounds = array<i64: 256, 128>}, {transform_indices = @transform_5, window_bounds = array<i64: 256, 128>}]} {
    %c0 = arith.constant 0 : index
    %c0_0 = arith.constant 0 : index
    %0 = vector.load %arg1[%c0, %c0_0] : memref<256x256xbf16, #tpu.memory_space<vmem>>, vector<256x256xbf16>
    %c0_1 = arith.constant 0 : index
    %c0_2 = arith.constant 0 : index
    %1 = vector.load %arg2[%c0_1, %c0_2] : memref<256x128xbf16, #tpu.memory_space<vmem>>, vector<256x128xbf16>
    %cst = arith.constant dense<0.000000e+00> : vector<256x128xf32>
    %2 = tpu.matmul %0, %1, %cst {dimension_numbers = #tpu.dot_dimension_numbers<[1], [0], [0], [1], [0, 0, 1, 1], [], []>} : vector<256x256xbf16>, vector<256x128xbf16>, vector<256x128xf32> -> vector<256x128xf32>
    %c0_3 = arith.constant 0 : index
    %c0_4 = arith.constant 0 : index
    %3 = vector.load %arg3[%c0_3, %c0_4] : memref<1x128xf32, #tpu.memory_space<vmem>>, vector<1x128xf32>
    %4 = vector.broadcast %3 : vector<1x128xf32> to vector<256x128xf32>
    %5 = arith.mulf %2, %4 : vector<256x128xf32>
    %c0_5 = arith.constant 0 : index
    %c0_6 = arith.constant 0 : index
    %6 = vector.load %arg4[%c0_5, %c0_6] : memref<1x128xf32, #tpu.memory_space<vmem>>, vector<1x128xf32>
    %7 = vector.broadcast %6 : vector<1x128xf32> to vector<256x128xf32>
    %8 = arith.addf %5, %7 : vector<256x128xf32>
    %cst_7 = arith.constant 0.000000e+00 : f32
    %9 = vector.broadcast %cst_7 : f32 to vector<256x128xf32>
    %10 = arith.maximumf %8, %9 : vector<256x128xf32>
    %c0_8 = arith.constant 0 : index
    %c0_9 = arith.constant 0 : index
    %11 = vector.load %arg5[%c0_8, %c0_9] : memref<256x128xf32, #tpu.memory_space<vmem>>, vector<256x128xf32>
    %12 = arith.addf %10, %11 : vector<256x128xf32>
    %c0_10 = arith.constant 0 : index
    %c0_11 = arith.constant 0 : index
    %13 = vector.load %arg6[%c0_10, %c0_11] : memref<256x128xf32, #tpu.memory_space<vmem>>, vector<256x128xf32>
    tpu.vector_store %arg6[%c0_10, %c0_11], %12 {strides = array<i32>} : memref<256x128xf32, #tpu.memory_space<vmem>>, vector<256x128xf32>,
    return
  }
  func.func @transform_0(%arg0: i32) -> (i32, i32) {
    %c0_i32 = arith.constant 0 : i32
    %c0_i32_0 = arith.constant 0 : i32
    return %arg0, %c0_i32 : i32, i32
  }
  func.func @transform_1(%arg0: i32) -> (i32, i32) {
    %c0_i32 = arith.constant 0 : i32
    %c0_i32_0 = arith.constant 0 : i32
    %c0_i32_1 = arith.constant 0 : i32
    return %c0_i32, %c0_i32_0 : i32, i32
  }
  func.func @transform_2(%arg0: i32) -> (i32, i32) {
    %c0_i32 = arith.constant 0 : i32
    %c0_i32_0 = arith.constant 0 : i32
    %c0_i32_1 = arith.constant 0 : i32
    return %c0_i32, %c0_i32_0 : i32, i32
  }
  func.func @transform_3(%arg0: i32) -> (i32, i32) {
    %c0_i32 = arith.constant 0 : i32
    %c0_i32_0 = arith.constant 0 : i32
    %c0_i32_1 = arith.constant 0 : i32
    return %c0_i32, %c0_i32_0 : i32, i32
  }
  func.func @transform_4(%arg0: i32) -> (i32, i32) {
    %c0_i32 = arith.constant 0 : i32
    %c0_i32_0 = arith.constant 0 : i32
    return %arg0, %c0_i32 : i32, i32
  }
  func.func @transform_5(%arg0: i32) -> (i32, i32) {
    %c0_i32 = arith.constant 0 : i32
    %c0_i32_0 = arith.constant 0 : i32
    return %arg0, %c0_i32 : i32, i32
  }
}

</mosaic_0001>

<llo_original>
// kernel: _lambda_.12
$region0: #{_lambda_.12}
  #allocation0 [shape = 'u32[]', space=smem, size = 0x4, offset = 0x4, fixed_abs, tag = 'smem constant byte address 0x4 - core index']
  #allocation1 [shape = 'u32[144,128]{1,0:T(1,128)}', space=vmem, size = 0x12000, scoped, tag = 'internal scratch']
  %s0 = inlined_call_operand.vmem [shape: bf16[512,128], index: 0, kind: input, shape index: {}]
  %s1 = inlined_call_operand.vmem [shape: bf16[128,128], index: 1, kind: input, shape index: {}]
  %s2 = inlined_call_operand.vmem [shape: f32[1,128], index: 2, kind: input, shape index: {}]
  %s3 = inlined_call_operand.vmem [shape: f32[1,128], index: 3, kind: input, shape index: {}]
  %s4 = inlined_call_operand.vmem [shape: f32[512,128], index: 4, kind: output, shape index: {}]
  %s5 = sld [smem:[#allocation0]]
  $region49: #{_lambda_.12} parent=0
    _
  %s7 = ssub.s32 1, %s5
  %s8 = scalar_select 0, %s7, %s5
  loop: start=0, step=1, limit=4
  $region2: #{_lambda_.12} parent=0 // loop_pre_header
    _
  $region3: #{_lambda_.12} parent=0 // loop_header
    %s10 = sphi 0, %s14
    %p11 = scmp.ge.s32.totalorder %s10, 4
    %s20 = sphi 0, %s22
    %s23 = sphi 0, %s20
    %s24 = sphi 0, %s23
    %s40 = sphi 0, %s24
    %s44 = sphi 0, %s44
    %s46 = sphi 0, %s44
    %s47 = sphi 0, %s46
    %s61 = sphi 0, %s47
    %s65 = sphi 0, %s65
    %s67 = sphi 0, %s65
    %s68 = sphi 0, %s67
    %s82 = sphi 0, %s68
    %s86 = sphi 0, %s86
    %s88 = sphi 0, %s86
    %s89 = sphi 0, %s88
    %s103 = sphi 0, %s89
    %s109 = sphi 0, %s111
    %s112 = sphi 0, %s109
    %s113 = sphi 0, %s112
    %s129 = sphi 0, %s113
  $region4: #{_lambda_.12} parent=0 // loop_header_branch
    %13 = sbr.rel (%p11) target = $region8
  $region5: #{_lambda_.12} parent=0 // loop_body
    %s15 = ssub.s32 %s10, 1
    %s16 = ssub.s32 %s10, 2
    %s17 = sadd.s32 %s10, 1
    %s18 = ssub.s32 %s10, %s17
    %p19 = scmp.eq.s32.totalorder %s18, 0
    %s21 = sadd.s32 %s20, 1
    %s22 = scalar_select %p19, %s20, %s21
    %p25 = pneg %p19
    %p26 = scmp.eq.s32.totalorder %s10, 1
    %p27 = por %p25, %p26
    %p28 = scmp.ne.s32.totalorder %s20, %s23
    %p29 = scmp.eq.s32.totalorder %s10, 0
    %p30 = por %p28, %p29
    %p31 = scmp.ne.s32.totalorder %s20, %s23
    %p32 = scmp.eq.s32.totalorder %s15, 1
    %p33 = por %p31, %p32
    %p34 = scmp.ne.s32.totalorder %s23, %s24
    %p35 = scmp.eq.s32.totalorder %s15, 0
    %p36 = por %p34, %p35
    %p37 = scmp.ne.s32.totalorder %s23, %s24
    %p38 = scmp.eq.s32.totalorder %s16, 1
    %p39 = por %p37, %p38
    %p41 = scmp.ne.s32.totalorder %s24, %s40
    %p42 = scmp.eq.s32.totalorder %s16, 0
    %p43 = por %p41, %p42
    %s45 = sadd.s32 %s44, 1
    %p48 = scmp.eq.s32.totalorder %s10, 1
    %p49 = scmp.ne.s32.totalorder %s44, %s46
    %p50 = scmp.eq.s32.totalorder %s10, 0
    %p51 = por %p49, %p50
    %p52 = scmp.ne.s32.totalorder %s44, %s46
    %p53 = scmp.eq.s32.totalorder %s15, 1
    %p54 = por %p52, %p53
    %p55 = scmp.ne.s32.totalorder %s46, %s47
    %p56 = scmp.eq.s32.totalorder %s15, 0
    %p57 = por %p55, %p56
    %p58 = scmp.ne.s32.totalorder %s46, %s47
    %p59 = scmp.eq.s32.totalorder %s16, 1
    %p60 = por %p58, %p59
    %p62 = scmp.ne.s32.totalorder %s47, %s61
    %p63 = scmp.eq.s32.totalorder %s16, 0
    %p64 = por %p62, %p63
    %s66 = sadd.s32 %s65, 1
    %p69 = scmp.eq.s32.totalorder %s10, 1
    %p70 = scmp.ne.s32.totalorder %s65, %s67
    %p71 = scmp.eq.s32.totalorder %s10, 0
    %p72 = por %p70, %p71
    %p73 = scmp.ne.s32.totalorder %s65, %s67
    %p74 = scmp.eq.s32.totalorder %s15, 1
    %p75 = por %p73, %p74
    %p76 = scmp.ne.s32.totalorder %s67, %s68
    %p77 = scmp.eq.s32.totalorder %s15, 0
    %p78 = por %p76, %p77
    %p79 = scmp.ne.s32.totalorder %s67, %s68
    %p80 = scmp.eq.s32.totalorder %s16, 1
    %p81 = por %p79, %p80
    %p83 = scmp.ne.s32.totalorder %s68, %s82
    %p84 = scmp.eq.s32.totalorder %s16, 0
    %p85 = por %p83, %p84
    %s87 = sadd.s32 %s86, 1
    %p90 = scmp.eq.s32.totalorder %s10, 1
    %p91 = scmp.ne.s32.totalorder %s86, %s88
    %p92 = scmp.eq.s32.totalorder %s10, 0
    %p93 = por %p91, %p92
    %p94 = scmp.ne.s32.totalorder %s86, %s88
    %p95 = scmp.eq.s32.totalorder %s15, 1
    %p96 = por %p94, %p95
    %p97 = scmp.ne.s32.totalorder %s88, %s89
    %p98 = scmp.eq.s32.totalorder %s15, 0
    %p99 = por %p97, %p98
    %p100 = scmp.ne.s32.totalorder %s88, %s89
    %p101 = scmp.eq.s32.totalorder %s16, 1
    %p102 = por %p100, %p101
    %p104 = scmp.ne.s32.totalorder %s89, %s103
    %p105 = scmp.eq.s32.totalorder %s16, 0
    %p106 = por %p104, %p105
    %s107 = ssub.s32 %s10, %s17
    %p108 = scmp.eq.s32.totalorder %s107, 0
    %s110 = sadd.s32 %s109, 1
    %s111 = scalar_select %p108, %s109, %s110
    %p114 = pneg %p108
    %p115 = scmp.eq.s32.totalorder %s10, 1
    %p116 = por %p114, %p115
    %p117 = scmp.ne.s32.totalorder %s109, %s112
    %p118 = scmp.eq.s32.totalorder %s10, 0
    %p119 = por %p117, %p118
    %p120 = scmp.ne.s32.totalorder %s109, %s112
    %p121 = scmp.eq.s32.totalorder %s15, 1
    %p122 = por %p120, %p121
    %p123 = scmp.ne.s32.totalorder %s112, %s113
    %p124 = scmp.eq.s32.totalorder %s15, 0
    %p125 = por %p123, %p124
    %p126 = scmp.ne.s32.totalorder %s112, %s113
    %p127 = scmp.eq.s32.totalorder %s16, 1
    %p128 = por %p126, %p127
    %p130 = scmp.ne.s32.totalorder %s113, %s129
    %p131 = scmp.eq.s32.totalorder %s16, 0
    %p132 = por %p130, %p131
    %p133 = scmp.le.s32.totalorder 1, %s10
    %p134 = scmp.lt.s32.totalorder %s10, 3
    %p135 = pnand %p133, %p134
    %p136 = pneg %p135
    // Predicated region
    $region9: #{_lambda_.12} parent=5 // pred_check
      _
    $region10: #{_lambda_.12} parent=5 // pred_check_branch
      %138 = sbr.rel (%p135) target = $region12
    $region11: #{_lambda_.12} parent=5 // pred_region
      %s139 = ssub.s32 %s10, 1
      // Predicated region
      $region13: #{_lambda_.12} parent=11 // pred_check
        %p140 = pneg %p57
      $region14: #{_lambda_.12} parent=11 // pred_check_branch
        %142 = sbr.rel (%p140) target = $region16
      $region15: #{_lambda_.12} parent=11 // pred_region
        _
      $region16: #{_lambda_.12} parent=11 // pred_fallthru
        _
      // Predicated region
      $region17: #{_lambda_.12} parent=11 // pred_check
        %p143 = pneg %p78
      $region18: #{_lambda_.12} parent=11 // pred_check_branch
        %145 = sbr.rel (%p143) target = $region20
      $region19: #{_lambda_.12} parent=11 // pred_region
        _
      $region20: #{_lambda_.12} parent=11 // pred_fallthru
        _
      // Predicated region
      $region21: #{_lambda_.12} parent=11 // pred_check
        %p146 = pneg %p99
      $region22: #{_lambda_.12} parent=11 // pred_check_branch
        %148 = sbr.rel (%p146) target = $region24
      $region23: #{_lambda_.12} parent=11 // pred_region
        _
      $region24: #{_lambda_.12} parent=11 // pred_fallthru
        _
    $region12: #{_lambda_.12} parent=5 // pred_fallthru
      _
    %p149 = scmp.lt.s32.totalorder %s10, 2
    // Predicated region
    $region25: #{_lambda_.12} parent=5 // pred_check
      %p150 = pneg %p149
    $region26: #{_lambda_.12} parent=5 // pred_check_branch
      %152 = sbr.rel (%p150) target = $region28
    $region27: #{_lambda_.12} parent=5 // pred_region
      // Predicated region
      $region29: #{_lambda_.12} parent=27 // pred_check
        %p153 = pneg %p30
      $region30: #{_lambda_.12} parent=27 // pred_check_branch
        %155 = sbr.rel (%p153) target = $region32
      $region31: #{_lambda_.12} parent=27 // pred_region
        %s156 = smul.u32 32, %s10
        %p157 = scmp.lt.s32.totalorder %s156, 63
        %s158 = scalar_select %p157, %s156, 63
        %s159 = smul.addr %s158, 4
        %s160 = scalar_lea.vmem %s0, %s159
        %s161 = smul.u32 32, %s10
      $region32: #{_lambda_.12} parent=27 // pred_fallthru
        _
    $region28: #{_lambda_.12} parent=5 // pred_fallthru
      _
    %p162 = scmp.le.s32.totalorder 1, %s10
    %p163 = scmp.lt.s32.totalorder %s10, 3
    %p164 = pnand %p162, %p163
    %p165 = pneg %p164
    // Predicated region
    $region33: #{_lambda_.12} parent=5 // pred_check
      _
    $region34: #{_lambda_.12} parent=5 // pred_check_branch
      %167 = sbr.rel (%p164) target = $region36
    $region35: #{_lambda_.12} parent=5 // pred_region
      %s168 = ssub.s32 %s10, 1
      %s169 = smul.u32 32, %s15
      %p170 = scmp.lt.s32.totalorder %s169, 63
      %s171 = scalar_select %p170, %s169, 63
      %s172 = smul.addr %s171, 4
      %s173 = scalar_lea.vmem %s0, %s172
      %p174 = pneg %p36
      %p175 = pneg %p33
      %p176 = pneg %p57
      %p177 = pneg %p54
      %p178 = pneg %p78
      %p179 = pneg %p75
      %p180 = pneg %p99
      %p181 = pneg %p96
      %p182 = pneg %p125
      %p183 = pneg %p122
      %s184 = smul.u32 32, %s15
      %p185 = scmp.lt.s32.totalorder %s184, 63
      %s186 = scalar_select %p185, %s184, 63
      %s187 = smul.addr %s186, 8
      %s188 = scalar_lea.vmem %s4, %s187
      %s189 = smul.u32 32, %s15
      %p190 = scmp.lt.s32.totalorder %s189, 63
      %s191 = scalar_select %p190, %s189, 63
      %s192 = smul.addr %s191, 4
      %s193 = scalar_lea.vmem %s0, %s192
      %s194 = smul.u32 32, %s15
      %s195 = smul.u32 32, %s15
      %p196 = scmp.lt.s32.totalorder %s195, 63
      %s197 = scalar_select %p196, %s195, 63
      %s198 = smul.addr %s197, 8
      %s199 = scalar_lea.vmem %s4, %s198
      %s200 = smul.u32 32, %s15
      %v202 = vld [vmem:[%s193] sm:$0xf]
      %v203 = vld [vmem:[%s193 + $0x4] sm:$0xf]
      %v204 = vld [vmem:[%s193 + $0x8] sm:$0xf]
      %v205 = vld [vmem:[%s193 + $0xc] sm:$0xf]
      %v206 = vld [vmem:[%s193 + $0x10] sm:$0xf]
      %v207 = vld [vmem:[%s193 + $0x14] sm:$0xf]
      %v208 = vld [vmem:[%s193 + $0x18] sm:$0xf]
      %v209 = vld [vmem:[%s193 + $0x1c] sm:$0xf]
      %v210 = vld [vmem:[%s193 + $0x20] sm:$0xf]
      %v211 = vld [vmem:[%s193 + $0x24] sm:$0xf]
      %v212 = vld [vmem:[%s193 + $0x28] sm:$0xf]
      %v213 = vld [vmem:[%s193 + $0x2c] sm:$0xf]
      %v214 = vld [vmem:[%s193 + $0x30] sm:$0xf]
      %v215 = vld [vmem:[%s193 + $0x34] sm:$0xf]
      %v216 = vld [vmem:[%s193 + $0x38] sm:$0xf]
      %v217 = vld [vmem:[%s193 + $0x3c] sm:$0xf]
      %v218 = vld [vmem:[%s193 + $0x40] sm:$0xf]
      %v219 = vld [vmem:[%s193 + $0x44] sm:$0xf]
      %v220 = vld [vmem:[%s193 + $0x48] sm:$0xf]
      %v221 = vld [vmem:[%s193 + $0x4c] sm:$0xf]
      %v222 = vld [vmem:[%s193 + $0x50] sm:$0xf]
      %v223 = vld [vmem:[%s193 + $0x54] sm:$0xf]
      %v224 = vld [vmem:[%s193 + $0x58] sm:$0xf]
      %v225 = vld [vmem:[%s193 + $0x5c] sm:$0xf]
      %v226 = vld [vmem:[%s193 + $0x60] sm:$0xf]
      %v227 = vld [vmem:[%s193 + $0x64] sm:$0xf]
      %v228 = vld [vmem:[%s193 + $0x68] sm:$0xf]
      %v229 = vld [vmem:[%s193 + $0x6c] sm:$0xf]
      %v230 = vld [vmem:[%s193 + $0x70] sm:$0xf]
      %v231 = vld [vmem:[%s193 + $0x74] sm:$0xf]
      %v232 = vld [vmem:[%s193 + $0x78] sm:$0xf]
      %v233 = vld [vmem:[%s193 + $0x7c] sm:$0xf]
      %v234 = vld [vmem:[%s1] sm:$0xf]
      %v235 = vld [vmem:[%s1 + $0x4] sm:$0xf]
      %v236 = vld [vmem:[%s1 + $0x8] sm:$0xf]
      %v237 = vld [vmem:[%s1 + $0xc] sm:$0xf]
      %v238 = vld [vmem:[%s1 + $0x10] sm:$0xf]
      %v239 = vld [vmem:[%s1 + $0x14] sm:$0xf]
      %v240 = vld [vmem:[%s1 + $0x18] sm:$0xf]
      %v241 = vld [vmem:[%s1 + $0x1c] sm:$0xf]
      %v242 = vld [vmem:[%s1 + $0x20] sm:$0xf]
      %v243 = vld [vmem:[%s1 + $0x24] sm:$0xf]
      %v244 = vld [vmem:[%s1 + $0x28] sm:$0xf]
      %v245 = vld [vmem:[%s1 + $0x2c] sm:$0xf]
      %v246 = vld [vmem:[%s1 + $0x30] sm:$0xf]
      %v247 = vld [vmem:[%s1 + $0x34] sm:$0xf]
      %v248 = vld [vmem:[%s1 + $0x38] sm:$0xf]
      %v249 = vld [vmem:[%s1 + $0x3c] sm:$0xf]
      %v282 = vunpack.c.l.b16 %v202
      %v283 = vunpack.c.l.b16 %v203
      %v284 = vunpack.c.l.b16 %v204
      %v285 = vunpack.c.l.b16 %v205
      %v286 = vunpack.c.l.b16 %v206
      %v287 = vunpack.c.l.b16 %v207
      %v288 = vunpack.c.l.b16 %v208
      %v289 = vunpack.c.l.b16 %v209
      %v290 = vunpack.c.l.b16 %v210
      %v291 = vunpack.c.l.b16 %v211
      %v292 = vunpack.c.l.b16 %v212
      %v293 = vunpack.c.l.b16 %v213
      %v294 = vunpack.c.l.b16 %v214
      %v295 = vunpack.c.l.b16 %v215
      %v296 = vunpack.c.l.b16 %v216
      %v297 = vunpack.c.l.b16 %v217
      %v298 = vunpack.c.l.b16 %v218
      %v299 = vunpack.c.l.b16 %v219
      %v300 = vunpack.c.l.b16 %v220
      %v301 = vunpack.c.l.b16 %v221
      %v302 = vunpack.c.l.b16 %v222
      %v303 = vunpack.c.l.b16 %v223
      %v304 = vunpack.c.l.b16 %v224
      %v305 = vunpack.c.l.b16 %v225
      %v306 = vunpack.c.l.b16 %v226
      %v307 = vunpack.c.l.b16 %v227
      %v308 = vunpack.c.l.b16 %v228
      %v309 = vunpack.c.l.b16 %v229
      %v310 = vunpack.c.l.b16 %v230
      %v311 = vunpack.c.l.b16 %v231
      %v312 = vunpack.c.l.b16 %v232
      %v313 = vunpack.c.l.b16 %v233
      %v314 = vpack.c.b16 %v283, %v282
      %v315 = vpack.c.b16 %v285, %v284
      %v316 = vpack.c.b16 %v287, %v286
      %v317 = vpack.c.b16 %v289, %v288
      %v318 = vpack.c.b16 %v291, %v290
      %v319 = vpack.c.b16 %v293, %v292
      %v320 = vpack.c.b16 %v295, %v294
      %v321 = vpack.c.b16 %v297, %v296
      %v322 = vpack.c.b16 %v299, %v298
      %v323 = vpack.c.b16 %v301, %v300
      %v324 = vpack.c.b16 %v303, %v302
      %v325 = vpack.c.b16 %v305, %v304
      %v326 = vpack.c.b16 %v307, %v306
      %v327 = vpack.c.b16 %v309, %v308
      %v328 = vpack.c.b16 %v311, %v310
      %v329 = vpack.c.b16 %v313, %v312
      %v362 = vunpack.c.l.b16 %v234
      %v363 = vunpack.c.l.b16 %v235
      %v364 = vunpack.c.l.b16 %v236
      %v365 = vunpack.c.l.b16 %v237
      %v366 = vunpack.c.l.b16 %v238
      %v367 = vunpack.c.l.b16 %v239
      %v368 = vunpack.c.l.b16 %v240
      %v369 = vunpack.c.l.b16 %v241
      %v370 = vunpack.c.l.b16 %v242
      %v371 = vunpack.c.l.b16 %v243
      %v372 = vunpack.c.l.b16 %v244
      %v373 = vunpack.c.l.b16 %v245
      %v374 = vunpack.c.l.b16 %v246
      %v375 = vunpack.c.l.b16 %v247
      %v376 = vunpack.c.l.b16 %v248
      %v377 = vunpack.c.l.b16 %v249
      %v378 = vpack.c.b16 %v363, %v362
      %v379 = vpack.c.b16 %v365, %v364
      %v380 = vpack.c.b16 %v367, %v366
      %v381 = vpack.c.b16 %v369, %v368
      %v382 = vpack.c.b16 %v371, %v370
      %v383 = vpack.c.b16 %v373, %v372
      %v384 = vpack.c.b16 %v375, %v374
      %v385 = vpack.c.b16 %v377, %v376
      %394 = vmatprep.subr.bf16.mxu0 0
      %395 = vmatpush1.bf16.msra.mxu0 %v385
      %396 = vmatprep.subr.bf16.mxu0 0
      %397 = vmatpush1.bf16.msra.mxu0 %v384
      %398 = vmatprep.subr.bf16.mxu0 0
      %399 = vmatpush1.bf16.msra.mxu0 %v383
      %400 = vmatprep.subr.bf16.mxu0 0
      %401 = vmatpush1.bf16.msra.mxu0 %v382
      %402 = vmatprep.subr.bf16.mxu0 0
      %403 = vmatpush1.bf16.msra.mxu0 %v381
      %404 = vmatprep.subr.bf16.mxu0 0
      %405 = vmatpush1.bf16.msra.mxu0 %v380
      %406 = vmatprep.subr.bf16.mxu0 0
      %407 = vmatpush1.bf16.msra.mxu0 %v379
      %408 = vmatprep.subr.bf16.mxu0 0
      %409 = vmatpush1.bf16.msra.mxu0 %v378
      %410 = vmatprep.subr.bf16.mxu0 0
      %411 = vmatpush2.bf16.msra.mxu0 0
      %412 = vmatprep.subr.bf16.mxu0 0
      %413 = vmatpush2.bf16.msra.mxu0 0
      %414 = vmatprep.subr.bf16.mxu0 0
      %415 = vmatpush2.bf16.msra.mxu0 0
      %416 = vmatprep.subr.bf16.mxu0 0
      %417 = vmatpush2.bf16.msra.mxu0 0
      %418 = vmatprep.subr.bf16.mxu0 0
      %419 = vmatpush2.bf16.msra.mxu0 0
      %420 = vmatprep.subr.bf16.mxu0 0
      %421 = vmatpush2.bf16.msra.mxu0 0
      %422 = vmatprep.subr.bf16.mxu0 0
      %423 = vmatpush2.bf16.msra.mxu0 0
      %424 = vmatprep.subr.bf16.mxu0 0
      %425 = vmatpush2.bf16.msra.mxu0 0
      %426 = vmatprep.mubr.bf16.mxu0 0
      %427 = vmatmul.mubr.bf16.gmra.mxu0 %v314
      %v428 = vpop.f32.mrf.mxu0
      %v429 = vadd.f32 0.0, %v428
      %v430 = vpop.f32.mrf.mxu0
      %v431 = vpop.f32.mrf.mxu0
      %v432 = vadd.f32 0.0, %v431
      %v433 = vpop.f32.mrf.mxu0
      %434 = vmatprep.mubr.bf16.mxu0 0
      %435 = vmatmul.mubr.bf16.gmra.mxu0 %v315
      %v436 = vpop.f32.mrf.mxu0
      %v437 = vadd.f32 0.0, %v436
      %v438 = vpop.f32.mrf.mxu0
      %v439 = vpop.f32.mrf.mxu0
      %v440 = vadd.f32 0.0, %v439
      %v441 = vpop.f32.mrf.mxu0
      %442 = vmatprep.mubr.bf16.mxu0 0
      %443 = vmatmul.mubr.bf16.gmra.mxu0 %v316
      %v444 = vpop.f32.mrf.mxu0
      %v445 = vadd.f32 0.0, %v444
      %v446 = vpop.f32.mrf.mxu0
      %v447 = vpop.f32.mrf.mxu0
      %v448 = vadd.f32 0.0, %v447
      %v449 = vpop.f32.mrf.mxu0
      %450 = vmatprep.mubr.bf16.mxu0 0
      %451 = vmatmul.mubr.bf16.gmra.mxu0 %v317
      %v452 = vpop.f32.mrf.mxu0
      %v453 = vadd.f32 0.0, %v452
      %v454 = vpop.f32.mrf.mxu0
      %v455 = vpop.f32.mrf.mxu0
      %v456 = vadd.f32 0.0, %v455
      %v457 = vpop.f32.mrf.mxu0
      %458 = vmatprep.mubr.bf16.mxu0 0
      %459 = vmatmul.mubr.bf16.gmra.mxu0 %v318
      %v460 = vpop.f32.mrf.mxu0
      %v461 = vadd.f32 0.0, %v460
      %v462 = vpop.f32.mrf.mxu0
      %v463 = vpop.f32.mrf.mxu0
      %v464 = vadd.f32 0.0, %v463
      %v465 = vpop.f32.mrf.mxu0
      %466 = vmatprep.mubr.bf16.mxu0 0
      %467 = vmatmul.mubr.bf16.gmra.mxu0 %v319
      %v468 = vpop.f32.mrf.mxu0
      %v469 = vadd.f32 0.0, %v468
      %v470 = vpop.f32.mrf.mxu0
      %v471 = vpop.f32.mrf.mxu0
      %v472 = vadd.f32 0.0, %v471
      %v473 = vpop.f32.mrf.mxu0
      %474 = vmatprep.mubr.bf16.mxu0 0
      %475 = vmatmul.mubr.bf16.gmra.mxu0 %v320
      %v476 = vpop.f32.mrf.mxu0
      %v477 = vadd.f32 0.0, %v476
      %v478 = vpop.f32.mrf.mxu0
      %v479 = vpop.f32.mrf.mxu0
      %v480 = vadd.f32 0.0, %v479
      %v481 = vpop.f32.mrf.mxu0
      %482 = vmatprep.mubr.bf16.mxu0 0
      %483 = vmatmul.mubr.bf16.gmra.mxu0 %v321
      %v484 = vpop.f32.mrf.mxu0
      %v485 = vadd.f32 0.0, %v484
      %v486 = vpop.f32.mrf.mxu0
      %v487 = vpop.f32.mrf.mxu0
      %v488 = vadd.f32 0.0, %v487
      %v489 = vpop.f32.mrf.mxu0
      %490 = vmatprep.mubr.bf16.mxu0 0
      %491 = vmatmul.mubr.bf16.gmra.mxu0 %v322
      %v492 = vpop.f32.mrf.mxu0
      %v493 = vadd.f32 0.0, %v492
      %v494 = vpop.f32.mrf.mxu0
      %v495 = vpop.f32.mrf.mxu0
      %v496 = vadd.f32 0.0, %v495
      %v497 = vpop.f32.mrf.mxu0
      %498 = vmatprep.mubr.bf16.mxu0 0
      %499 = vmatmul.mubr.bf16.gmra.mxu0 %v323
      %v500 = vpop.f32.mrf.mxu0
      %v501 = vadd.f32 0.0, %v500
      %v502 = vpop.f32.mrf.mxu0
      %v503 = vpop.f32.mrf.mxu0
      %v504 = vadd.f32 0.0, %v503
      %v505 = vpop.f32.mrf.mxu0
      %506 = vmatprep.mubr.bf16.mxu0 0
      %507 = vmatmul.mubr.bf16.gmra.mxu0 %v324
      %v508 = vpop.f32.mrf.mxu0
      %v509 = vadd.f32 0.0, %v508
      %v510 = vpop.f32.mrf.mxu0
      %v511 = vpop.f32.mrf.mxu0
      %v512 = vadd.f32 0.0, %v511
      %v513 = vpop.f32.mrf.mxu0
      %514 = vmatprep.mubr.bf16.mxu0 0
      %515 = vmatmul.mubr.bf16.gmra.mxu0 %v325
      %v516 = vpop.f32.mrf.mxu0
      %v517 = vadd.f32 0.0, %v516
      %v518 = vpop.f32.mrf.mxu0
      %v519 = vpop.f32.mrf.mxu0
      %v520 = vadd.f32 0.0, %v519
      %v521 = vpop.f32.mrf.mxu0
      %522 = vmatprep.mubr.bf16.mxu0 0
      %523 = vmatmul.mubr.bf16.gmra.mxu0 %v326
      %v524 = vpop.f32.mrf.mxu0
      %v525 = vadd.f32 0.0, %v524
      %v526 = vpop.f32.mrf.mxu0
      %v527 = vpop.f32.mrf.mxu0
      %v528 = vadd.f32 0.0, %v527
      %v529 = vpop.f32.mrf.mxu0
      %530 = vmatprep.mubr.bf16.mxu0 0
      %531 = vmatmul.mubr.bf16.gmra.mxu0 %v327
      %v532 = vpop.f32.mrf.mxu0
      %v533 = vadd.f32 0.0, %v532
      %v534 = vpop.f32.mrf.mxu0
      %v535 = vpop.f32.mrf.mxu0
      %v536 = vadd.f32 0.0, %v535
      %v537 = vpop.f32.mrf.mxu0
      %538 = vmatprep.mubr.bf16.mxu0 0
      %539 = vmatmul.mubr.bf16.gmra.mxu0 %v328
      %v540 = vpop.f32.mrf.mxu0
      %v541 = vadd.f32 0.0, %v540
      %v542 = vpop.f32.mrf.mxu0
      %v543 = vpop.f32.mrf.mxu0
      %v544 = vadd.f32 0.0, %v543
      %v545 = vpop.f32.mrf.mxu0
      %546 = vmatprep.mubr.bf16.mxu0 0
      %547 = vmatmul.mubr.bf16.gmra.mxu0 %v329
      %v548 = vpop.f32.mrf.mxu0
      %v549 = vadd.f32 0.0, %v548
      %v550 = vpop.f32.mrf.mxu0
      %v551 = vpop.f32.mrf.mxu0
      %v552 = vadd.f32 0.0, %v551
      %v553 = vpop.f32.mrf.mxu0
      %554 = vdwg.mxu0
      %v555 = vld [vmem:[%s2] sm:$0x1]
      %v557 = vlaneseq
      %v558 = vshrl.u32 %v557, 7
      %v559 = vsub.s32 0, %v558
      %v560 = vrot.slane %v555, %v559
      %v562 = vmul.f32 %v429, %v560
      %v563 = vmul.f32 %v432, %v560
      %v564 = vmul.f32 %v437, %v560
      %v565 = vmul.f32 %v440, %v560
      %v566 = vmul.f32 %v445, %v560
      %v567 = vmul.f32 %v448, %v560
      %v568 = vmul.f32 %v453, %v560
      %v569 = vmul.f32 %v456, %v560
      %v570 = vmul.f32 %v461, %v560
      %v571 = vmul.f32 %v464, %v560
      %v572 = vmul.f32 %v469, %v560
      %v573 = vmul.f32 %v472, %v560
      %v574 = vmul.f32 %v477, %v560
      %v575 = vmul.f32 %v480, %v560
      %v576 = vmul.f32 %v485, %v560
      %v577 = vmul.f32 %v488, %v560
      %v578 = vmul.f32 %v493, %v560
      %v579 = vmul.f32 %v496, %v560
      %v580 = vmul.f32 %v501, %v560
      %v581 = vmul.f32 %v504, %v560
      %v582 = vmul.f32 %v509, %v560
      %v583 = vmul.f32 %v512, %v560
      %v584 = vmul.f32 %v517, %v560
      %v585 = vmul.f32 %v520, %v560
      %v586 = vmul.f32 %v525, %v560
      %v587 = vmul.f32 %v528, %v560
      %v588 = vmul.f32 %v533, %v560
      %v589 = vmul.f32 %v536, %v560
      %v590 = vmul.f32 %v541, %v560
      %v591 = vmul.f32 %v544, %v560
      %v592 = vmul.f32 %v549, %v560
      %v593 = vmul.f32 %v552, %v560
      %v594 = vld [vmem:[%s3] sm:$0x1]
      %v596 = vlaneseq
      %v597 = vshrl.u32 %v596, 7
      %v598 = vsub.s32 0, %v597
      %v599 = vrot.slane %v594, %v598
      %v601 = vadd.f32 %v562, %v599
      %v602 = vadd.f32 %v563, %v599
      %v603 = vadd.f32 %v564, %v599
      %v604 = vadd.f32 %v565, %v599
      %v605 = vadd.f32 %v566, %v599
      %v606 = vadd.f32 %v567, %v599
      %v607 = vadd.f32 %v568, %v599
      %v608 = vadd.f32 %v569, %v599
      %v609 = vadd.f32 %v570, %v599
      %v610 = vadd.f32 %v571, %v599
      %v611 = vadd.f32 %v572, %v599
      %v612 = vadd.f32 %v573, %v599
      %v613 = vadd.f32 %v574, %v599
      %v614 = vadd.f32 %v575, %v599
      %v615 = vadd.f32 %v576, %v599
      %v616 = vadd.f32 %v577, %v599
      %v617 = vadd.f32 %v578, %v599
      %v618 = vadd.f32 %v579, %v599
      %v619 = vadd.f32 %v580, %v599
      %v620 = vadd.f32 %v581, %v599
      %v621 = vadd.f32 %v582, %v599
      %v622 = vadd.f32 %v583, %v599
      %v623 = vadd.f32 %v584, %v599
      %v624 = vadd.f32 %v585, %v599
      %v625 = vadd.f32 %v586, %v599
      %v626 = vadd.f32 %v587, %v599
      %v627 = vadd.f32 %v588, %v599
      %v628 = vadd.f32 %v589, %v599
      %v629 = vadd.f32 %v590, %v599
      %v630 = vadd.f32 %v591, %v599
      %v631 = vadd.f32 %v592, %v599
      %v632 = vadd.f32 %v593, %v599
      %v633 = vmax.f32 %v601, 0.0
      %v634 = vmax.f32 %v602, 0.0
      %v635 = vmax.f32 %v603, 0.0
      %v636 = vmax.f32 %v604, 0.0
      %v637 = vmax.f32 %v605, 0.0
      %v638 = vmax.f32 %v606, 0.0
      %v639 = vmax.f32 %v607, 0.0
      %v640 = vmax.f32 %v608, 0.0
      %v641 = vmax.f32 %v609, 0.0
      %v642 = vmax.f32 %v610, 0.0
      %v643 = vmax.f32 %v611, 0.0
      %v644 = vmax.f32 %v612, 0.0
      %v645 = vmax.f32 %v613, 0.0
      %v646 = vmax.f32 %v614, 0.0
      %v647 = vmax.f32 %v615, 0.0
      %v648 = vmax.f32 %v616, 0.0
      %v649 = vmax.f32 %v617, 0.0
      %v650 = vmax.f32 %v618, 0.0
      %v651 = vmax.f32 %v619, 0.0
      %v652 = vmax.f32 %v620, 0.0
      %v653 = vmax.f32 %v621, 0.0
      %v654 = vmax.f32 %v622, 0.0
      %v655 = vmax.f32 %v623, 0.0
      %v656 = vmax.f32 %v624, 0.0
      %v657 = vmax.f32 %v625, 0.0
      %v658 = vmax.f32 %v626, 0.0
      %v659 = vmax.f32 %v627, 0.0
      %v660 = vmax.f32 %v628, 0.0
      %v661 = vmax.f32 %v629, 0.0
      %v662 = vmax.f32 %v630, 0.0
      %v663 = vmax.f32 %v631, 0.0
      %v664 = vmax.f32 %v632, 0.0
      %665 = vst [vmem:[%s199] sm:$0xff] %v633
      %666 = vst [vmem:[%s199 + $0x8] sm:$0xff] %v634
      %667 = vst [vmem:[%s199 + $0x10] sm:$0xff] %v635
      %668 = vst [vmem:[%s199 + $0x18] sm:$0xff] %v636
      %669 = vst [vmem:[%s199 + $0x20] sm:$0xff] %v637
      %670 = vst [vmem:[%s199 + $0x28] sm:$0xff] %v638
      %671 = vst [vmem:[%s199 + $0x30] sm:$0xff] %v639
      %672 = vst [vmem:[%s199 + $0x38] sm:$0xff] %v640
      %673 = vst [vmem:[%s199 + $0x40] sm:$0xff] %v641
      %674 = vst [vmem:[%s199 + $0x48] sm:$0xff] %v642
      %675 = vst [vmem:[%s199 + $0x50] sm:$0xff] %v643
      %676 = vst [vmem:[%s199 + $0x58] sm:$0xff] %v644
      %677 = vst [vmem:[%s199 + $0x60] sm:$0xff] %v645
      %678 = vst [vmem:[%s199 + $0x68] sm:$0xff] %v646
      %679 = vst [vmem:[%s199 + $0x70] sm:$0xff] %v647
      %680 = vst [vmem:[%s199 + $0x78] sm:$0xff] %v648
      %681 = vst [vmem:[%s199 + $0x80] sm:$0xff] %v649
      %682 = vst [vmem:[%s199 + $0x88] sm:$0xff] %v650
      %683 = vst [vmem:[%s199 + $0x90] sm:$0xff] %v651
      %684 = vst [vmem:[%s199 + $0x98] sm:$0xff] %v652
      %685 = vst [vmem:[%s199 + $0xa0] sm:$0xff] %v653
      %686 = vst [vmem:[%s199 + $0xa8] sm:$0xff] %v654
      %687 = vst [vmem:[%s199 + $0xb0] sm:$0xff] %v655
      %688 = vst [vmem:[%s199 + $0xb8] sm:$0xff] %v656
      %689 = vst [vmem:[%s199 + $0xc0] sm:$0xff] %v657
      %690 = vst [vmem:[%s199 + $0xc8] sm:$0xff] %v658
      %691 = vst [vmem:[%s199 + $0xd0] sm:$0xff] %v659
      %692 = vst [vmem:[%s199 + $0xd8] sm:$0xff] %v660
      %693 = vst [vmem:[%s199 + $0xe0] sm:$0xff] %v661
      %694 = vst [vmem:[%s199 + $0xe8] sm:$0xff] %v662
      %695 = vst [vmem:[%s199 + $0xf0] sm:$0xff] %v663
      %696 = vst [vmem:[%s199 + $0xf8] sm:$0xff] %v664
      %s697 = smul.u32 32, %s15
      %p698 = scmp.lt.s32.totalorder %s697, 63
      %s699 = scalar_select %p698, %s697, 63
      %s700 = smul.addr %s699, 8
      %s701 = scalar_lea.vmem %s4, %s700
      // Predicated region
      $region37: #{_lambda_.12} parent=35 // pred_check
        %p702 = pneg %p122
      $region38: #{_lambda_.12} parent=35 // pred_check_branch
        %704 = sbr.rel (%p702) target = $region40
      $region39: #{_lambda_.12} parent=35 // pred_region
        %s705 = smul.u32 32, %s15
      $region40: #{_lambda_.12} parent=35 // pred_fallthru
        _
    $region36: #{_lambda_.12} parent=5 // pred_fallthru
      _
    %p706 = scmp.le.s32.totalorder 2, %s10
    // Predicated region
    $region41: #{_lambda_.12} parent=5 // pred_check
      %p707 = pneg %p706
    $region42: #{_lambda_.12} parent=5 // pred_check_branch
      %709 = sbr.rel (%p707) target = $region44
    $region43: #{_lambda_.12} parent=5 // pred_region
      %s710 = ssub.s32 %s10, 2
      // Predicated region
      $region45: #{_lambda_.12} parent=43 // pred_check
        %p711 = pneg %p128
      $region46: #{_lambda_.12} parent=43 // pred_check_branch
        %713 = sbr.rel (%p711) target = $region48
      $region47: #{_lambda_.12} parent=43 // pred_region
        %s714 = smul.u32 32, %s16
        %p715 = scmp.lt.s32.totalorder %s714, 63
        %s716 = scalar_select %p715, %s714, 63
        %s717 = smul.addr %s716, 8
        %s718 = scalar_lea.vmem %s4, %s717
      $region48: #{_lambda_.12} parent=43 // pred_fallthru
        _
    $region44: #{_lambda_.12} parent=5 // pred_fallthru
      _
  $region6: #{_lambda_.12} parent=0 // loop_footer
    %s14 = sadd.s32 1, %s10
  $region7: #{_lambda_.12} parent=0 // loop_footer_branch
    %9 = sbr.rel target = $region3
  $region8: #{_lambda_.12} parent=0 // loop_exit
    _

// kernel: _lambda_.14
$region0: #{_lambda_.14}
  #allocation0 [shape = 'u32[]', space=smem, size = 0x4, offset = 0x4, fixed_abs, tag = 'smem constant byte address 0x4 - core index']
  #allocation1 [shape = 'u32[144,128]{1,0:T(1,128)}', space=vmem, size = 0x12000, scoped, tag = 'internal scratch']
  %s0 = inlined_call_operand.vmem [shape: bf16[128,128], index: 0, kind: input, shape index: {}]
  %s1 = inlined_call_operand.vmem [shape: bf16[128,128], index: 1, kind: input, shape index: {}]
  %s2 = inlined_call_operand.vmem [shape: f32[1,128], index: 2, kind: input, shape index: {}]
  %s3 = inlined_call_operand.vmem [shape: f32[1,128], index: 3, kind: input, shape index: {}]
  %s4 = inlined_call_operand.vmem [shape: f32[128,128], index: 4, kind: output, shape index: {}]
  %s5 = sld [smem:[#allocation0]]
  $region26: #{_lambda_.14} parent=0
    _
  %s7 = ssub.s32 1, %s5
  %s8 = scalar_select 0, %s7, %s5
  // Predicated region
  $region2: #{_lambda_.14} parent=0 // pred_check
    _
  $region3: #{_lambda_.14} parent=0 // pred_check_branch
    %10 = sbr.rel (0) target = $region5
  $region4: #{_lambda_.14} parent=0 // pred_region
    _
  $region5: #{_lambda_.14} parent=0 // pred_fallthru
    _
  // Predicated region
  $region6: #{_lambda_.14} parent=0 // pred_check
    _
  $region7: #{_lambda_.14} parent=0 // pred_check_branch
    %12 = sbr.rel (0) target = $region9
  $region8: #{_lambda_.14} parent=0 // pred_region
    _
  $region9: #{_lambda_.14} parent=0 // pred_fallthru
    _
  // Predicated region
  $region10: #{_lambda_.14} parent=0 // pred_check
    _
  $region11: #{_lambda_.14} parent=0 // pred_check_branch
    %14 = sbr.rel (0) target = $region13
  $region12: #{_lambda_.14} parent=0 // pred_region
    _
  $region13: #{_lambda_.14} parent=0 // pred_fallthru
    _
  // Predicated region
  $region14: #{_lambda_.14} parent=0 // pred_check
    _
  $region15: #{_lambda_.14} parent=0 // pred_check_branch
    %16 = sbr.rel (0) target = $region17
  $region16: #{_lambda_.14} parent=0 // pred_region
    _
  $region17: #{_lambda_.14} parent=0 // pred_fallthru
    _
  %v18 = vld [vmem:[%s0] sm:$0xf]
  %v19 = vld [vmem:[%s0 + $0x4] sm:$0xf]
  %v20 = vld [vmem:[%s0 + $0x8] sm:$0xf]
  %v21 = vld [vmem:[%s0 + $0xc] sm:$0xf]
  %v22 = vld [vmem:[%s0 + $0x10] sm:$0xf]
  %v23 = vld [vmem:[%s0 + $0x14] sm:$0xf]
  %v24 = vld [vmem:[%s0 + $0x18] sm:$0xf]
  %v25 = vld [vmem:[%s0 + $0x1c] sm:$0xf]
  %v26 = vld [vmem:[%s0 + $0x20] sm:$0xf]
  %v27 = vld [vmem:[%s0 + $0x24] sm:$0xf]
  %v28 = vld [vmem:[%s0 + $0x28] sm:$0xf]
  %v29 = vld [vmem:[%s0 + $0x2c] sm:$0xf]
  %v30 = vld [vmem:[%s0 + $0x30] sm:$0xf]
  %v31 = vld [vmem:[%s0 + $0x34] sm:$0xf]
  %v32 = vld [vmem:[%s0 + $0x38] sm:$0xf]
  %v33 = vld [vmem:[%s0 + $0x3c] sm:$0xf]
  %v34 = vld [vmem:[%s1] sm:$0xf]
  %v35 = vld [vmem:[%s1 + $0x4] sm:$0xf]
  %v36 = vld [vmem:[%s1 + $0x8] sm:$0xf]
  %v37 = vld [vmem:[%s1 + $0xc] sm:$0xf]
  %v38 = vld [vmem:[%s1 + $0x10] sm:$0xf]
  %v39 = vld [vmem:[%s1 + $0x14] sm:$0xf]
  %v40 = vld [vmem:[%s1 + $0x18] sm:$0xf]
  %v41 = vld [vmem:[%s1 + $0x1c] sm:$0xf]
  %v42 = vld [vmem:[%s1 + $0x20] sm:$0xf]
  %v43 = vld [vmem:[%s1 + $0x24] sm:$0xf]
  %v44 = vld [vmem:[%s1 + $0x28] sm:$0xf]
  %v45 = vld [vmem:[%s1 + $0x2c] sm:$0xf]
  %v46 = vld [vmem:[%s1 + $0x30] sm:$0xf]
  %v47 = vld [vmem:[%s1 + $0x34] sm:$0xf]
  %v48 = vld [vmem:[%s1 + $0x38] sm:$0xf]
  %v49 = vld [vmem:[%s1 + $0x3c] sm:$0xf]
  %v66 = vunpack.c.l.b16 %v18
  %v67 = vunpack.c.l.b16 %v19
  %v68 = vunpack.c.l.b16 %v20
  %v69 = vunpack.c.l.b16 %v21
  %v70 = vunpack.c.l.b16 %v22
  %v71 = vunpack.c.l.b16 %v23
  %v72 = vunpack.c.l.b16 %v24
  %v73 = vunpack.c.l.b16 %v25
  %v74 = vunpack.c.l.b16 %v26
  %v75 = vunpack.c.l.b16 %v27
  %v76 = vunpack.c.l.b16 %v28
  %v77 = vunpack.c.l.b16 %v29
  %v78 = vunpack.c.l.b16 %v30
  %v79 = vunpack.c.l.b16 %v31
  %v80 = vunpack.c.l.b16 %v32
  %v81 = vunpack.c.l.b16 %v33
  %v82 = vpack.c.b16 %v67, %v66
  %v83 = vpack.c.b16 %v69, %v68
  %v84 = vpack.c.b16 %v71, %v70
  %v85 = vpack.c.b16 %v73, %v72
  %v86 = vpack.c.b16 %v75, %v74
  %v87 = vpack.c.b16 %v77, %v76
  %v88 = vpack.c.b16 %v79, %v78
  %v89 = vpack.c.b16 %v81, %v80
  %v114 = vunpack.c.l.b16 %v34
  %v115 = vunpack.c.l.b16 %v35
  %v116 = vunpack.c.l.b16 %v36
  %v117 = vunpack.c.l.b16 %v37
  %v118 = vunpack.c.l.b16 %v38
  %v119 = vunpack.c.l.b16 %v39
  %v120 = vunpack.c.l.b16 %v40
  %v121 = vunpack.c.l.b16 %v41
  %v122 = vunpack.c.l.b16 %v42
  %v123 = vunpack.c.l.b16 %v43
  %v124 = vunpack.c.l.b16 %v44
  %v125 = vunpack.c.l.b16 %v45
  %v126 = vunpack.c.l.b16 %v46
  %v127 = vunpack.c.l.b16 %v47
  %v128 = vunpack.c.l.b16 %v48
  %v129 = vunpack.c.l.b16 %v49
  %v130 = vpack.c.b16 %v115, %v114
  %v131 = vpack.c.b16 %v117, %v116
  %v132 = vpack.c.b16 %v119, %v118
  %v133 = vpack.c.b16 %v121, %v120
  %v134 = vpack.c.b16 %v123, %v122
  %v135 = vpack.c.b16 %v125, %v124
  %v136 = vpack.c.b16 %v127, %v126
  %v137 = vpack.c.b16 %v129, %v128
  %146 = vmatprep.subr.bf16.mxu0 0
  %147 = vmatpush1.bf16.msra.mxu0 %v137
  %148 = vmatprep.subr.bf16.mxu0 0
  %149 = vmatpush1.bf16.msra.mxu0 %v136
  %150 = vmatprep.subr.bf16.mxu0 0
  %151 = vmatpush1.bf16.msra.mxu0 %v135
  %152 = vmatprep.subr.bf16.mxu0 0
  %153 = vmatpush1.bf16.msra.mxu0 %v134
  %154 = vmatprep.subr.bf16.mxu0 0
  %155 = vmatpush1.bf16.msra.mxu0 %v133
  %156 = vmatprep.subr.bf16.mxu0 0
  %157 = vmatpush1.bf16.msra.mxu0 %v132
  %158 = vmatprep.subr.bf16.mxu0 0
  %159 = vmatpush1.bf16.msra.mxu0 %v131
  %160 = vmatprep.subr.bf16.mxu0 0
  %161 = vmatpush1.bf16.msra.mxu0 %v130
  %162 = vmatprep.subr.bf16.mxu0 0
  %163 = vmatpush2.bf16.msra.mxu0 0
  %164 = vmatprep.subr.bf16.mxu0 0
  %165 = vmatpush2.bf16.msra.mxu0 0
  %166 = vmatprep.subr.bf16.mxu0 0
  %167 = vmatpush2.bf16.msra.mxu0 0
  %168 = vmatprep.subr.bf16.mxu0 0
  %169 = vmatpush2.bf16.msra.mxu0 0
  %170 = vmatprep.subr.bf16.mxu0 0
  %171 = vmatpush2.bf16.msra.mxu0 0
  %172 = vmatprep.subr.bf16.mxu0 0
  %173 = vmatpush2.bf16.msra.mxu0 0
  %174 = vmatprep.subr.bf16.mxu0 0
  %175 = vmatpush2.bf16.msra.mxu0 0
  %176 = vmatprep.subr.bf16.mxu0 0
  %177 = vmatpush2.bf16.msra.mxu0 0
  %178 = vmatprep.mubr.bf16.mxu0 0
  %179 = vmatmul.mubr.bf16.gmra.mxu0 %v82
  %v180 = vpop.f32.mrf.mxu0
  %v181 = vadd.f32 0.0, %v180
  %v182 = vpop.f32.mrf.mxu0
  %v183 = vpop.f32.mrf.mxu0
  %v184 = vadd.f32 0.0, %v183
  %v185 = vpop.f32.mrf.mxu0
  %186 = vmatprep.mubr.bf16.mxu0 0
  %187 = vmatmul.mubr.bf16.gmra.mxu0 %v83
  %v188 = vpop.f32.mrf.mxu0
  %v189 = vadd.f32 0.0, %v188
  %v190 = vpop.f32.mrf.mxu0
  %v191 = vpop.f32.mrf.mxu0
  %v192 = vadd.f32 0.0, %v191
  %v193 = vpop.f32.mrf.mxu0
  %194 = vmatprep.mubr.bf16.mxu0 0
  %195 = vmatmul.mubr.bf16.gmra.mxu0 %v84
  %v196 = vpop.f32.mrf.mxu0
  %v197 = vadd.f32 0.0, %v196
  %v198 = vpop.f32.mrf.mxu0
  %v199 = vpop.f32.mrf.mxu0
  %v200 = vadd.f32 0.0, %v199
  %v201 = vpop.f32.mrf.mxu0
  %202 = vmatprep.mubr.bf16.mxu0 0
  %203 = vmatmul.mubr.bf16.gmra.mxu0 %v85
  %v204 = vpop.f32.mrf.mxu0
  %v205 = vadd.f32 0.0, %v204
  %v206 = vpop.f32.mrf.mxu0
  %v207 = vpop.f32.mrf.mxu0
  %v208 = vadd.f32 0.0, %v207
  %v209 = vpop.f32.mrf.mxu0
  %210 = vmatprep.mubr.bf16.mxu0 0
  %211 = vmatmul.mubr.bf16.gmra.mxu0 %v86
  %v212 = vpop.f32.mrf.mxu0
  %v213 = vadd.f32 0.0, %v212
  %v214 = vpop.f32.mrf.mxu0
  %v215 = vpop.f32.mrf.mxu0
  %v216 = vadd.f32 0.0, %v215
  %v217 = vpop.f32.mrf.mxu0
  %218 = vmatprep.mubr.bf16.mxu0 0
  %219 = vmatmul.mubr.bf16.gmra.mxu0 %v87
  %v220 = vpop.f32.mrf.mxu0
  %v221 = vadd.f32 0.0, %v220
  %v222 = vpop.f32.mrf.mxu0
  %v223 = vpop.f32.mrf.mxu0
  %v224 = vadd.f32 0.0, %v223
  %v225 = vpop.f32.mrf.mxu0
  %226 = vmatprep.mubr.bf16.mxu0 0
  %227 = vmatmul.mubr.bf16.gmra.mxu0 %v88
  %v228 = vpop.f32.mrf.mxu0
  %v229 = vadd.f32 0.0, %v228
  %v230 = vpop.f32.mrf.mxu0
  %v231 = vpop.f32.mrf.mxu0
  %v232 = vadd.f32 0.0, %v231
  %v233 = vpop.f32.mrf.mxu0
  %234 = vmatprep.mubr.bf16.mxu0 0
  %235 = vmatmul.mubr.bf16.gmra.mxu0 %v89
  %v236 = vpop.f32.mrf.mxu0
  %v237 = vadd.f32 0.0, %v236
  %v238 = vpop.f32.mrf.mxu0
  %v239 = vpop.f32.mrf.mxu0
  %v240 = vadd.f32 0.0, %v239
  %v241 = vpop.f32.mrf.mxu0
  %242 = vdwg.mxu0
  %v243 = vld [vmem:[%s2] sm:$0x1]
  %v245 = vlaneseq
  %v246 = vshrl.u32 %v245, 7
  %v247 = vsub.s32 0, %v246
  %v248 = vrot.slane %v243, %v247
  %v250 = vmul.f32 %v181, %v248
  %v251 = vmul.f32 %v184, %v248
  %v252 = vmul.f32 %v189, %v248
  %v253 = vmul.f32 %v192, %v248
  %v254 = vmul.f32 %v197, %v248
  %v255 = vmul.f32 %v200, %v248
  %v256 = vmul.f32 %v205, %v248
  %v257 = vmul.f32 %v208, %v248
  %v258 = vmul.f32 %v213, %v248
  %v259 = vmul.f32 %v216, %v248
  %v260 = vmul.f32 %v221, %v248
  %v261 = vmul.f32 %v224, %v248
  %v262 = vmul.f32 %v229, %v248
  %v263 = vmul.f32 %v232, %v248
  %v264 = vmul.f32 %v237, %v248
  %v265 = vmul.f32 %v240, %v248
  %v266 = vld [vmem:[%s3] sm:$0x1]
  %v268 = vlaneseq
  %v269 = vshrl.u32 %v268, 7
  %v270 = vsub.s32 0, %v269
  %v271 = vrot.slane %v266, %v270
  %v273 = vadd.f32 %v250, %v271
  %v274 = vadd.f32 %v251, %v271
  %v275 = vadd.f32 %v252, %v271
  %v276 = vadd.f32 %v253, %v271
  %v277 = vadd.f32 %v254, %v271
  %v278 = vadd.f32 %v255, %v271
  %v279 = vadd.f32 %v256, %v271
  %v280 = vadd.f32 %v257, %v271
  %v281 = vadd.f32 %v258, %v271
  %v282 = vadd.f32 %v259, %v271
  %v283 = vadd.f32 %v260, %v271
  %v284 = vadd.f32 %v261, %v271
  %v285 = vadd.f32 %v262, %v271
  %v286 = vadd.f32 %v263, %v271
  %v287 = vadd.f32 %v264, %v271
  %v288 = vadd.f32 %v265, %v271
  %v289 = vmax.f32 %v273, 0.0
  %v290 = vmax.f32 %v274, 0.0
  %v291 = vmax.f32 %v275, 0.0
  %v292 = vmax.f32 %v276, 0.0
  %v293 = vmax.f32 %v277, 0.0
  %v294 = vmax.f32 %v278, 0.0
  %v295 = vmax.f32 %v279, 0.0
  %v296 = vmax.f32 %v280, 0.0
  %v297 = vmax.f32 %v281, 0.0
  %v298 = vmax.f32 %v282, 0.0
  %v299 = vmax.f32 %v283, 0.0
  %v300 = vmax.f32 %v284, 0.0
  %v301 = vmax.f32 %v285, 0.0
  %v302 = vmax.f32 %v286, 0.0
  %v303 = vmax.f32 %v287, 0.0
  %v304 = vmax.f32 %v288, 0.0
  %305 = vst [vmem:[%s4] sm:$0xff] %v289
  %306 = vst [vmem:[%s4 + $0x8] sm:$0xff] %v290
  %307 = vst [vmem:[%s4 + $0x10] sm:$0xff] %v291
  %308 = vst [vmem:[%s4 + $0x18] sm:$0xff] %v292
  %309 = vst [vmem:[%s4 + $0x20] sm:$0xff] %v293
  %310 = vst [vmem:[%s4 + $0x28] sm:$0xff] %v294
  %311 = vst [vmem:[%s4 + $0x30] sm:$0xff] %v295
  %312 = vst [vmem:[%s4 + $0x38] sm:$0xff] %v296
  %313 = vst [vmem:[%s4 + $0x40] sm:$0xff] %v297
  %314 = vst [vmem:[%s4 + $0x48] sm:$0xff] %v298
  %315 = vst [vmem:[%s4 + $0x50] sm:$0xff] %v299
  %316 = vst [vmem:[%s4 + $0x58] sm:$0xff] %v300
  %317 = vst [vmem:[%s4 + $0x60] sm:$0xff] %v301
  %318 = vst [vmem:[%s4 + $0x68] sm:$0xff] %v302
  %319 = vst [vmem:[%s4 + $0x70] sm:$0xff] %v303
  %320 = vst [vmem:[%s4 + $0x78] sm:$0xff] %v304
  // Predicated region
  $region18: #{_lambda_.14} parent=0 // pred_check
    _
  $region19: #{_lambda_.14} parent=0 // pred_check_branch
    %322 = sbr.rel (0) target = $region21
  $region20: #{_lambda_.14} parent=0 // pred_region
    _
  $region21: #{_lambda_.14} parent=0 // pred_fallthru
    _
  // Predicated region
  $region22: #{_lambda_.14} parent=0 // pred_check
    _
  $region23: #{_lambda_.14} parent=0 // pred_check_branch
    %324 = sbr.rel (0) target = $region25
  $region24: #{_lambda_.14} parent=0 // pred_region
    _
  $region25: #{_lambda_.14} parent=0 // pred_fallthru
    _

// kernel: _lambda_.15
$region0: #{_lambda_.15}
  #allocation0 [shape = 'u32[]', space=smem, size = 0x4, offset = 0x4, fixed_abs, tag = 'smem constant byte address 0x4 - core index']
  #allocation1 [shape = 'u32[144,128]{1,0:T(1,128)}', space=vmem, size = 0x12000, scoped, tag = 'internal scratch']
  %s0 = inlined_call_operand.vmem [shape: bf16[32,128], index: 0, kind: input, shape index: {}]
  %s1 = inlined_call_operand.vmem [shape: bf16[128,128], index: 1, kind: input, shape index: {}]
  %s2 = inlined_call_operand.vmem [shape: f32[1,128], index: 2, kind: input, shape index: {}]
  %s3 = inlined_call_operand.vmem [shape: f32[1,128], index: 3, kind: input, shape index: {}]
  %s4 = inlined_call_operand.vmem [shape: f32[32,128], index: 4, kind: output, shape index: {}]
  %s5 = sld [smem:[#allocation0]]
  $region26: #{_lambda_.15} parent=0
    _
  %s7 = ssub.s32 1, %s5
  %s8 = scalar_select 0, %s7, %s5
  // Predicated region
  $region2: #{_lambda_.15} parent=0 // pred_check
    _
  $region3: #{_lambda_.15} parent=0 // pred_check_branch
    %10 = sbr.rel (0) target = $region5
  $region4: #{_lambda_.15} parent=0 // pred_region
    _
  $region5: #{_lambda_.15} parent=0 // pred_fallthru
    _
  // Predicated region
  $region6: #{_lambda_.15} parent=0 // pred_check
    _
  $region7: #{_lambda_.15} parent=0 // pred_check_branch
    %12 = sbr.rel (0) target = $region9
  $region8: #{_lambda_.15} parent=0 // pred_region
    _
  $region9: #{_lambda_.15} parent=0 // pred_fallthru
    _
  // Predicated region
  $region10: #{_lambda_.15} parent=0 // pred_check
    _
  $region11: #{_lambda_.15} parent=0 // pred_check_branch
    %14 = sbr.rel (0) target = $region13
  $region12: #{_lambda_.15} parent=0 // pred_region
    _
  $region13: #{_lambda_.15} parent=0 // pred_fallthru
    _
  // Predicated region
  $region14: #{_lambda_.15} parent=0 // pred_check
    _
  $region15: #{_lambda_.15} parent=0 // pred_check_branch
    %16 = sbr.rel (0) target = $region17
  $region16: #{_lambda_.15} parent=0 // pred_region
    _
  $region17: #{_lambda_.15} parent=0 // pred_fallthru
    _
  %v18 = vld [vmem:[%s0] sm:$0xf]
  %v19 = vld [vmem:[%s0 + $0x4] sm:$0xf]
  %v20 = vld [vmem:[%s0 + $0x8] sm:$0xf]
  %v21 = vld [vmem:[%s0 + $0xc] sm:$0xf]
  %v22 = vld [vmem:[%s1] sm:$0xf]
  %v23 = vld [vmem:[%s1 + $0x4] sm:$0xf]
  %v24 = vld [vmem:[%s1 + $0x8] sm:$0xf]
  %v25 = vld [vmem:[%s1 + $0xc] sm:$0xf]
  %v26 = vld [vmem:[%s1 + $0x10] sm:$0xf]
  %v27 = vld [vmem:[%s1 + $0x14] sm:$0xf]
  %v28 = vld [vmem:[%s1 + $0x18] sm:$0xf]
  %v29 = vld [vmem:[%s1 + $0x1c] sm:$0xf]
  %v30 = vld [vmem:[%s1 + $0x20] sm:$0xf]
  %v31 = vld [vmem:[%s1 + $0x24] sm:$0xf]
  %v32 = vld [vmem:[%s1 + $0x28] sm:$0xf]
  %v33 = vld [vmem:[%s1 + $0x2c] sm:$0xf]
  %v34 = vld [vmem:[%s1 + $0x30] sm:$0xf]
  %v35 = vld [vmem:[%s1 + $0x34] sm:$0xf]
  %v36 = vld [vmem:[%s1 + $0x38] sm:$0xf]
  %v37 = vld [vmem:[%s1 + $0x3c] sm:$0xf]
  %v42 = vunpack.c.l.b16 %v18
  %v43 = vunpack.c.l.b16 %v19
  %v44 = vunpack.c.l.b16 %v20
  %v45 = vunpack.c.l.b16 %v21
  %v46 = vpack.c.b16 %v43, %v42
  %v47 = vpack.c.b16 %v45, %v44
  %v66 = vunpack.c.l.b16 %v22
  %v67 = vunpack.c.l.b16 %v23
  %v68 = vunpack.c.l.b16 %v24
  %v69 = vunpack.c.l.b16 %v25
  %v70 = vunpack.c.l.b16 %v26
  %v71 = vunpack.c.l.b16 %v27
  %v72 = vunpack.c.l.b16 %v28
  %v73 = vunpack.c.l.b16 %v29
  %v74 = vunpack.c.l.b16 %v30
  %v75 = vunpack.c.l.b16 %v31
  %v76 = vunpack.c.l.b16 %v32
  %v77 = vunpack.c.l.b16 %v33
  %v78 = vunpack.c.l.b16 %v34
  %v79 = vunpack.c.l.b16 %v35
  %v80 = vunpack.c.l.b16 %v36
  %v81 = vunpack.c.l.b16 %v37
  %v82 = vpack.c.b16 %v67, %v66
  %v83 = vpack.c.b16 %v69, %v68
  %v84 = vpack.c.b16 %v71, %v70
  %v85 = vpack.c.b16 %v73, %v72
  %v86 = vpack.c.b16 %v75, %v74
  %v87 = vpack.c.b16 %v77, %v76
  %v88 = vpack.c.b16 %v79, %v78
  %v89 = vpack.c.b16 %v81, %v80
  %98 = vmatprep.subr.bf16.mxu0 0
  %99 = vmatpush1.bf16.msra.mxu0 %v89
  %100 = vmatprep.subr.bf16.mxu0 0
  %101 = vmatpush1.bf16.msra.mxu0 %v88
  %102 = vmatprep.subr.bf16.mxu0 0
  %103 = vmatpush1.bf16.msra.mxu0 %v87
  %104 = vmatprep.subr.bf16.mxu0 0
  %105 = vmatpush1.bf16.msra.mxu0 %v86
  %106 = vmatprep.subr.bf16.mxu0 0
  %107 = vmatpush1.bf16.msra.mxu0 %v85
  %108 = vmatprep.subr.bf16.mxu0 0
  %109 = vmatpush1.bf16.msra.mxu0 %v84
  %110 = vmatprep.subr.bf16.mxu0 0
  %111 = vmatpush1.bf16.msra.mxu0 %v83
  %112 = vmatprep.subr.bf16.mxu0 0
  %113 = vmatpush1.bf16.msra.mxu0 %v82
  %114 = vmatprep.subr.bf16.mxu0 0
  %115 = vmatpush2.bf16.msra.mxu0 0
  %116 = vmatprep.subr.bf16.mxu0 0
  %117 = vmatpush2.bf16.msra.mxu0 0
  %118 = vmatprep.subr.bf16.mxu0 0
  %119 = vmatpush2.bf16.msra.mxu0 0
  %120 = vmatprep.subr.bf16.mxu0 0
  %121 = vmatpush2.bf16.msra.mxu0 0
  %122 = vmatprep.subr.bf16.mxu0 0
  %123 = vmatpush2.bf16.msra.mxu0 0
  %124 = vmatprep.subr.bf16.mxu0 0
  %125 = vmatpush2.bf16.msra.mxu0 0
  %126 = vmatprep.subr.bf16.mxu0 0
  %127 = vmatpush2.bf16.msra.mxu0 0
  %128 = vmatprep.subr.bf16.mxu0 0
  %129 = vmatpush2.bf16.msra.mxu0 0
  %130 = vmatprep.mubr.bf16.mxu0 0
  %131 = vmatmul.mubr.bf16.gmra.mxu0 %v46
  %v132 = vpop.f32.mrf.mxu0
  %v133 = vadd.f32 0.0, %v132
  %v134 = vpop.f32.mrf.mxu0
  %v135 = vpop.f32.mrf.mxu0
  %v136 = vadd.f32 0.0, %v135
  %v137 = vpop.f32.mrf.mxu0
  %138 = vmatprep.mubr.bf16.mxu0 0
  %139 = vmatmul.mubr.bf16.gmra.mxu0 %v47
  %v140 = vpop.f32.mrf.mxu0
  %v141 = vadd.f32 0.0, %v140
  %v142 = vpop.f32.mrf.mxu0
  %v143 = vpop.f32.mrf.mxu0
  %v144 = vadd.f32 0.0, %v143
  %v145 = vpop.f32.mrf.mxu0
  %146 = vdwg.mxu0
  %v147 = vld [vmem:[%s2] sm:$0x1]
  %v149 = vlaneseq
  %v150 = vshrl.u32 %v149, 7
  %v151 = vsub.s32 0, %v150
  %v152 = vrot.slane %v147, %v151
  %v154 = vmul.f32 %v133, %v152
  %v155 = vmul.f32 %v136, %v152
  %v156 = vmul.f32 %v141, %v152
  %v157 = vmul.f32 %v144, %v152
  %v158 = vld [vmem:[%s3] sm:$0x1]
  %v160 = vlaneseq
  %v161 = vshrl.u32 %v160, 7
  %v162 = vsub.s32 0, %v161
  %v163 = vrot.slane %v158, %v162
  %v165 = vadd.f32 %v154, %v163
  %v166 = vadd.f32 %v155, %v163
  %v167 = vadd.f32 %v156, %v163
  %v168 = vadd.f32 %v157, %v163
  %v169 = vmax.f32 %v165, 0.0
  %v170 = vmax.f32 %v166, 0.0
  %v171 = vmax.f32 %v167, 0.0
  %v172 = vmax.f32 %v168, 0.0
  %173 = vst [vmem:[%s4] sm:$0xff] %v169
  %174 = vst [vmem:[%s4 + $0x8] sm:$0xff] %v170
  %175 = vst [vmem:[%s4 + $0x10] sm:$0xff] %v171
  %176 = vst [vmem:[%s4 + $0x18] sm:$0xff] %v172
  // Predicated region
  $region18: #{_lambda_.15} parent=0 // pred_check
    _
  $region19: #{_lambda_.15} parent=0 // pred_check_branch
    %178 = sbr.rel (0) target = $region21
  $region20: #{_lambda_.15} parent=0 // pred_region
    _
  $region21: #{_lambda_.15} parent=0 // pred_fallthru
    _
  // Predicated region
  $region22: #{_lambda_.15} parent=0 // pred_check
    _
  $region23: #{_lambda_.15} parent=0 // pred_check_branch
    %180 = sbr.rel (0) target = $region25
  $region24: #{_lambda_.15} parent=0 // pred_region
    _
  $region25: #{_lambda_.15} parent=0 // pred_fallthru
    _

// kernel: _lambda_.16
$region0: #{_lambda_.16}
  #allocation0 [shape = 'u32[]', space=smem, size = 0x4, offset = 0x4, fixed_abs, tag = 'smem constant byte address 0x4 - core index']
  #allocation1 [shape = 'u32[144,128]{1,0:T(1,128)}', space=vmem, size = 0x12000, scoped, tag = 'internal scratch']
  %s0 = inlined_call_operand.vmem [shape: bf16[8,128], index: 0, kind: input, shape index: {}]
  %s1 = inlined_call_operand.vmem [shape: bf16[128,128], index: 1, kind: input, shape index: {}]
  %s2 = inlined_call_operand.vmem [shape: f32[1,128], index: 2, kind: input, shape index: {}]
  %s3 = inlined_call_operand.vmem [shape: f32[1,128], index: 3, kind: input, shape index: {}]
  %s4 = inlined_call_operand.vmem [shape: f32[8,128], index: 4, kind: output, shape index: {}]
  %s5 = sld [smem:[#allocation0]]
  $region26: #{_lambda_.16} parent=0
    _
  %s7 = ssub.s32 1, %s5
  %s8 = scalar_select 0, %s7, %s5
  // Predicated region
  $region2: #{_lambda_.16} parent=0 // pred_check
    _
  $region3: #{_lambda_.16} parent=0 // pred_check_branch
    %10 = sbr.rel (0) target = $region5
  $region4: #{_lambda_.16} parent=0 // pred_region
    _
  $region5: #{_lambda_.16} parent=0 // pred_fallthru
    _
  // Predicated region
  $region6: #{_lambda_.16} parent=0 // pred_check
    _
  $region7: #{_lambda_.16} parent=0 // pred_check_branch
    %12 = sbr.rel (0) target = $region9
  $region8: #{_lambda_.16} parent=0 // pred_region
    _
  $region9: #{_lambda_.16} parent=0 // pred_fallthru
    _
  // Predicated region
  $region10: #{_lambda_.16} parent=0 // pred_check
    _
  $region11: #{_lambda_.16} parent=0 // pred_check_branch
    %14 = sbr.rel (0) target = $region13
  $region12: #{_lambda_.16} parent=0 // pred_region
    _
  $region13: #{_lambda_.16} parent=0 // pred_fallthru
    _
  // Predicated region
  $region14: #{_lambda_.16} parent=0 // pred_check
    _
  $region15: #{_lambda_.16} parent=0 // pred_check_branch
    %16 = sbr.rel (0) target = $region17
  $region16: #{_lambda_.16} parent=0 // pred_region
    _
  $region17: #{_lambda_.16} parent=0 // pred_fallthru
    _
  %v18 = vld [vmem:[%s0] sm:$0xf]
  %v19 = vld [vmem:[%s1] sm:$0xf]
  %v20 = vld [vmem:[%s1 + $0x4] sm:$0xf]
  %v21 = vld [vmem:[%s1 + $0x8] sm:$0xf]
  %v22 = vld [vmem:[%s1 + $0xc] sm:$0xf]
  %v23 = vld [vmem:[%s1 + $0x10] sm:$0xf]
  %v24 = vld [vmem:[%s1 + $0x14] sm:$0xf]
  %v25 = vld [vmem:[%s1 + $0x18] sm:$0xf]
  %v26 = vld [vmem:[%s1 + $0x1c] sm:$0xf]
  %v27 = vld [vmem:[%s1 + $0x20] sm:$0xf]
  %v28 = vld [vmem:[%s1 + $0x24] sm:$0xf]
  %v29 = vld [vmem:[%s1 + $0x28] sm:$0xf]
  %v30 = vld [vmem:[%s1 + $0x2c] sm:$0xf]
  %v31 = vld [vmem:[%s1 + $0x30] sm:$0xf]
  %v32 = vld [vmem:[%s1 + $0x34] sm:$0xf]
  %v33 = vld [vmem:[%s1 + $0x38] sm:$0xf]
  %v34 = vld [vmem:[%s1 + $0x3c] sm:$0xf]
  %v51 = vunpack.c.l.b16 %v19
  %v52 = vunpack.c.l.b16 %v20
  %v53 = vunpack.c.l.b16 %v21
  %v54 = vunpack.c.l.b16 %v22
  %v55 = vunpack.c.l.b16 %v23
  %v56 = vunpack.c.l.b16 %v24
  %v57 = vunpack.c.l.b16 %v25
  %v58 = vunpack.c.l.b16 %v26
  %v59 = vunpack.c.l.b16 %v27
  %v60 = vunpack.c.l.b16 %v28
  %v61 = vunpack.c.l.b16 %v29
  %v62 = vunpack.c.l.b16 %v30
  %v63 = vunpack.c.l.b16 %v31
  %v64 = vunpack.c.l.b16 %v32
  %v65 = vunpack.c.l.b16 %v33
  %v66 = vunpack.c.l.b16 %v34
  %v67 = vpack.c.b16 %v52, %v51
  %v68 = vpack.c.b16 %v54, %v53
  %v69 = vpack.c.b16 %v56, %v55
  %v70 = vpack.c.b16 %v58, %v57
  %v71 = vpack.c.b16 %v60, %v59
  %v72 = vpack.c.b16 %v62, %v61
  %v73 = vpack.c.b16 %v64, %v63
  %v74 = vpack.c.b16 %v66, %v65
  %83 = vmatprep.subr.bf16.mxu0 0
  %84 = vmatpush1.bf16.msra.mxu0 %v74
  %85 = vmatprep.subr.bf16.mxu0 0
  %86 = vmatpush1.bf16.msra.mxu0 %v73
  %87 = vmatprep.subr.bf16.mxu0 0
  %88 = vmatpush1.bf16.msra.mxu0 %v72
  %89 = vmatprep.subr.bf16.mxu0 0
  %90 = vmatpush1.bf16.msra.mxu0 %v71
  %91 = vmatprep.subr.bf16.mxu0 0
  %92 = vmatpush1.bf16.msra.mxu0 %v70
  %93 = vmatprep.subr.bf16.mxu0 0
  %94 = vmatpush1.bf16.msra.mxu0 %v69
  %95 = vmatprep.subr.bf16.mxu0 0
  %96 = vmatpush1.bf16.msra.mxu0 %v68
  %97 = vmatprep.subr.bf16.mxu0 0
  %98 = vmatpush1.bf16.msra.mxu0 %v67
  %99 = vmatprep.subr.bf16.mxu0 0
  %100 = vmatpush2.bf16.msra.mxu0 0
  %101 = vmatprep.subr.bf16.mxu0 0
  %102 = vmatpush2.bf16.msra.mxu0 0
  %103 = vmatprep.subr.bf16.mxu0 0
  %104 = vmatpush2.bf16.msra.mxu0 0
  %105 = vmatprep.subr.bf16.mxu0 0
  %106 = vmatpush2.bf16.msra.mxu0 0
  %107 = vmatprep.subr.bf16.mxu0 0
  %108 = vmatpush2.bf16.msra.mxu0 0
  %109 = vmatprep.subr.bf16.mxu0 0
  %110 = vmatpush2.bf16.msra.mxu0 0
  %111 = vmatprep.subr.bf16.mxu0 0
  %112 = vmatpush2.bf16.msra.mxu0 0
  %113 = vmatprep.subr.bf16.mxu0 0
  %114 = vmatpush2.bf16.msra.mxu0 0
  %115 = vmatprep.mubr.bf16.mxu0 0
  %116 = vmatmul.mubr.bf16.gmra.mxu0 %v18
  %v117 = vpop.f32.mrf.mxu0
  %v118 = vadd.f32 0.0, %v117
  %v119 = vpop.f32.mrf.mxu0
  %v120 = vpop.f32.mrf.mxu0
  %v121 = vpop.f32.mrf.mxu0
  %122 = vdwg.mxu0
  %v123 = vld [vmem:[%s2] sm:$0x1]
  %v125 = vlaneseq
  %v126 = vshrl.u32 %v125, 7
  %v127 = vsub.s32 0, %v126
  %v128 = vrot.slane %v123, %v127
  %v130 = vmul.f32 %v118, %v128
  %v131 = vld [vmem:[%s3] sm:$0x1]
  %v133 = vlaneseq
  %v134 = vshrl.u32 %v133, 7
  %v135 = vsub.s32 0, %v134
  %v136 = vrot.slane %v131, %v135
  %v138 = vadd.f32 %v130, %v136
  %v139 = vmax.f32 %v138, 0.0
  %140 = vst [vmem:[%s4] sm:$0xff] %v139
  // Predicated region
  $region18: #{_lambda_.16} parent=0 // pred_check
    _
  $region19: #{_lambda_.16} parent=0 // pred_check_branch
    %142 = sbr.rel (0) target = $region21
  $region20: #{_lambda_.16} parent=0 // pred_region
    _
  $region21: #{_lambda_.16} parent=0 // pred_fallthru
    _
  // Predicated region
  $region22: #{_lambda_.16} parent=0 // pred_check
    _
  $region23: #{_lambda_.16} parent=0 // pred_check_branch
    %144 = sbr.rel (0) target = $region25
  $region24: #{_lambda_.16} parent=0 // pred_region
    _
  $region25: #{_lambda_.16} parent=0 // pred_fallthru
    _

// kernel: _lambda_.19
$region0: #{_lambda_.19}
  #allocation0 [shape = 'u32[]', space=smem, size = 0x4, offset = 0x4, fixed_abs, tag = 'smem constant byte address 0x4 - core index']
  #allocation1 [shape = 'u32[144,128]{1,0:T(1,128)}', space=vmem, size = 0x12000, scoped, tag = 'internal scratch']
  %s0 = inlined_call_operand.vmem [shape: bf16[8,256], index: 0, kind: input, shape index: {}]
  %s1 = inlined_call_operand.vmem [shape: bf16[256,128], index: 1, kind: input, shape index: {}]
  %s2 = inlined_call_operand.vmem [shape: f32[1,128], index: 2, kind: input, shape index: {}]
  %s3 = inlined_call_operand.vmem [shape: f32[1,128], index: 3, kind: input, shape index: {}]
  %s4 = inlined_call_operand.vmem [shape: f32[8,128], index: 4, kind: output, shape index: {}]
  %s5 = sld [smem:[#allocation0]]
  $region26: #{_lambda_.19} parent=0
    _
  %s7 = ssub.s32 1, %s5
  %s8 = scalar_select 0, %s7, %s5
  // Predicated region
  $region2: #{_lambda_.19} parent=0 // pred_check
    _
  $region3: #{_lambda_.19} parent=0 // pred_check_branch
    %10 = sbr.rel (0) target = $region5
  $region4: #{_lambda_.19} parent=0 // pred_region
    _
  $region5: #{_lambda_.19} parent=0 // pred_fallthru
    _
  // Predicated region
  $region6: #{_lambda_.19} parent=0 // pred_check
    _
  $region7: #{_lambda_.19} parent=0 // pred_check_branch
    %12 = sbr.rel (0) target = $region9
  $region8: #{_lambda_.19} parent=0 // pred_region
    _
  $region9: #{_lambda_.19} parent=0 // pred_fallthru
    _
  // Predicated region
  $region10: #{_lambda_.19} parent=0 // pred_check
    _
  $region11: #{_lambda_.19} parent=0 // pred_check_branch
    %14 = sbr.rel (0) target = $region13
  $region12: #{_lambda_.19} parent=0 // pred_region
    _
  $region13: #{_lambda_.19} parent=0 // pred_fallthru
    _
  // Predicated region
  $region14: #{_lambda_.19} parent=0 // pred_check
    _
  $region15: #{_lambda_.19} parent=0 // pred_check_branch
    %16 = sbr.rel (0) target = $region17
  $region16: #{_lambda_.19} parent=0 // pred_region
    _
  $region17: #{_lambda_.19} parent=0 // pred_fallthru
    _
  %v18 = vld [vmem:[%s0] sm:$0xff]
  %v19 = vld [vmem:[%s1] sm:$0xf]
  %v20 = vld [vmem:[%s1 + $0x4] sm:$0xf]
  %v21 = vld [vmem:[%s1 + $0x8] sm:$0xf]
  %v22 = vld [vmem:[%s1 + $0xc] sm:$0xf]
  %v23 = vld [vmem:[%s1 + $0x10] sm:$0xf]
  %v24 = vld [vmem:[%s1 + $0x14] sm:$0xf]
  %v25 = vld [vmem:[%s1 + $0x18] sm:$0xf]
  %v26 = vld [vmem:[%s1 + $0x1c] sm:$0xf]
  %v27 = vld [vmem:[%s1 + $0x20] sm:$0xf]
  %v28 = vld [vmem:[%s1 + $0x24] sm:$0xf]
  %v29 = vld [vmem:[%s1 + $0x28] sm:$0xf]
  %v30 = vld [vmem:[%s1 + $0x2c] sm:$0xf]
  %v31 = vld [vmem:[%s1 + $0x30] sm:$0xf]
  %v32 = vld [vmem:[%s1 + $0x34] sm:$0xf]
  %v33 = vld [vmem:[%s1 + $0x38] sm:$0xf]
  %v34 = vld [vmem:[%s1 + $0x3c] sm:$0xf]
  %v35 = vld [vmem:[%s1 + $0x40] sm:$0xf]
  %v36 = vld [vmem:[%s1 + $0x44] sm:$0xf]
  %v37 = vld [vmem:[%s1 + $0x48] sm:$0xf]
  %v38 = vld [vmem:[%s1 + $0x4c] sm:$0xf]
  %v39 = vld [vmem:[%s1 + $0x50] sm:$0xf]
  %v40 = vld [vmem:[%s1 + $0x54] sm:$0xf]
  %v41 = vld [vmem:[%s1 + $0x58] sm:$0xf]
  %v42 = vld [vmem:[%s1 + $0x5c] sm:$0xf]
  %v43 = vld [vmem:[%s1 + $0x60] sm:$0xf]
  %v44 = vld [vmem:[%s1 + $0x64] sm:$0xf]
  %v45 = vld [vmem:[%s1 + $0x68] sm:$0xf]
  %v46 = vld [vmem:[%s1 + $0x6c] sm:$0xf]
  %v47 = vld [vmem:[%s1 + $0x70] sm:$0xf]
  %v48 = vld [vmem:[%s1 + $0x74] sm:$0xf]
  %v49 = vld [vmem:[%s1 + $0x78] sm:$0xf]
  %v50 = vld [vmem:[%s1 + $0x7c] sm:$0xf]
  %v52 = vunpack.c.l.b16 %v18
  %v53 = vunpack.c.h.b16 %v18
  %v54 = vpack.c.b16 %v52, %v52
  %v55 = vpack.c.b16 %v53, %v53
  %v90 = vunpack.c.l.b16 %v19
  %v91 = vunpack.c.l.b16 %v20
  %v92 = vunpack.c.l.b16 %v21
  %v93 = vunpack.c.l.b16 %v22
  %v94 = vunpack.c.l.b16 %v23
  %v95 = vunpack.c.l.b16 %v24
  %v96 = vunpack.c.l.b16 %v25
  %v97 = vunpack.c.l.b16 %v26
  %v98 = vunpack.c.l.b16 %v27
  %v99 = vunpack.c.l.b16 %v28
  %v100 = vunpack.c.l.b16 %v29
  %v101 = vunpack.c.l.b16 %v30
  %v102 = vunpack.c.l.b16 %v31
  %v103 = vunpack.c.l.b16 %v32
  %v104 = vunpack.c.l.b16 %v33
  %v105 = vunpack.c.l.b16 %v34
  %v106 = vunpack.c.l.b16 %v35
  %v107 = vunpack.c.l.b16 %v36
  %v108 = vunpack.c.l.b16 %v37
  %v109 = vunpack.c.l.b16 %v38
  %v110 = vunpack.c.l.b16 %v39
  %v111 = vunpack.c.l.b16 %v40
  %v112 = vunpack.c.l.b16 %v41
  %v113 = vunpack.c.l.b16 %v42
  %v114 = vunpack.c.l.b16 %v43
  %v115 = vunpack.c.l.b16 %v44
  %v116 = vunpack.c.l.b16 %v45
  %v117 = vunpack.c.l.b16 %v46
  %v118 = vunpack.c.l.b16 %v47
  %v119 = vunpack.c.l.b16 %v48
  %v120 = vunpack.c.l.b16 %v49
  %v121 = vunpack.c.l.b16 %v50
  %v122 = vpack.c.b16 %v91, %v90
  %v123 = vpack.c.b16 %v93, %v92
  %v124 = vpack.c.b16 %v95, %v94
  %v125 = vpack.c.b16 %v97, %v96
  %v126 = vpack.c.b16 %v99, %v98
  %v127 = vpack.c.b16 %v101, %v100
  %v128 = vpack.c.b16 %v103, %v102
  %v129 = vpack.c.b16 %v105, %v104
  %v130 = vpack.c.b16 %v107, %v106
  %v131 = vpack.c.b16 %v109, %v108
  %v132 = vpack.c.b16 %v111, %v110
  %v133 = vpack.c.b16 %v113, %v112
  %v134 = vpack.c.b16 %v115, %v114
  %v135 = vpack.c.b16 %v117, %v116
  %v136 = vpack.c.b16 %v119, %v118
  %v137 = vpack.c.b16 %v121, %v120
  %154 = vmatprep.subr.bf16.mxu0 0
  %155 = vmatpush1.bf16.msra.mxu0 %v129
  %156 = vmatprep.subr.bf16.mxu0 0
  %157 = vmatpush1.bf16.msra.mxu0 %v128
  %158 = vmatprep.subr.bf16.mxu0 0
  %159 = vmatpush1.bf16.msra.mxu0 %v127
  %160 = vmatprep.subr.bf16.mxu0 0
  %161 = vmatpush1.bf16.msra.mxu0 %v126
  %162 = vmatprep.subr.bf16.mxu0 0
  %163 = vmatpush1.bf16.msra.mxu0 %v125
  %164 = vmatprep.subr.bf16.mxu0 0
  %165 = vmatpush1.bf16.msra.mxu0 %v124
  %166 = vmatprep.subr.bf16.mxu0 0
  %167 = vmatpush1.bf16.msra.mxu0 %v123
  %168 = vmatprep.subr.bf16.mxu0 0
  %169 = vmatpush1.bf16.msra.mxu0 %v122
  %170 = vmatprep.subr.bf16.mxu0 0
  %171 = vmatpush2.bf16.msra.mxu0 %v137
  %172 = vmatprep.subr.bf16.mxu0 0
  %173 = vmatpush2.bf16.msra.mxu0 %v136
  %174 = vmatprep.subr.bf16.mxu0 0
  %175 = vmatpush2.bf16.msra.mxu0 %v135
  %176 = vmatprep.subr.bf16.mxu0 0
  %177 = vmatpush2.bf16.msra.mxu0 %v134
  %178 = vmatprep.subr.bf16.mxu0 0
  %179 = vmatpush2.bf16.msra.mxu0 %v133
  %180 = vmatprep.subr.bf16.mxu0 0
  %181 = vmatpush2.bf16.msra.mxu0 %v132
  %182 = vmatprep.subr.bf16.mxu0 0
  %183 = vmatpush2.bf16.msra.mxu0 %v131
  %184 = vmatprep.subr.bf16.mxu0 0
  %185 = vmatpush2.bf16.msra.mxu0 %v130
  %186 = vmatprep.mubr.bf16.mxu0 %v55
  %187 = vmatmul.mubr.bf16.gmra.mxu0 %v54
  %v188 = vpop.f32.mrf.mxu0
  %v189 = vadd.f32 0.0, %v188
  %v190 = vpop.f32.mrf.mxu0
  %v191 = vpop.f32.mrf.mxu0
  %v192 = vpop.f32.mrf.mxu0
  %193 = vdwg.mxu0
  %v194 = vld [vmem:[%s2] sm:$0x1]
  %v196 = vlaneseq
  %v197 = vshrl.u32 %v196, 7
  %v198 = vsub.s32 0, %v197
  %v199 = vrot.slane %v194, %v198
  %v201 = vmul.f32 %v189, %v199
  %v202 = vld [vmem:[%s3] sm:$0x1]
  %v204 = vlaneseq
  %v205 = vshrl.u32 %v204, 7
  %v206 = vsub.s32 0, %v205
  %v207 = vrot.slane %v202, %v206
  %v209 = vadd.f32 %v201, %v207
  %v210 = vmax.f32 %v209, 0.0
  %211 = vst [vmem:[%s4] sm:$0xff] %v210
  // Predicated region
  $region18: #{_lambda_.19} parent=0 // pred_check
    _
  $region19: #{_lambda_.19} parent=0 // pred_check_branch
    %213 = sbr.rel (0) target = $region21
  $region20: #{_lambda_.19} parent=0 // pred_region
    _
  $region21: #{_lambda_.19} parent=0 // pred_fallthru
    _
  // Predicated region
  $region22: #{_lambda_.19} parent=0 // pred_check
    _
  $region23: #{_lambda_.19} parent=0 // pred_check_branch
    %215 = sbr.rel (0) target = $region25
  $region24: #{_lambda_.19} parent=0 // pred_region
    _
  $region25: #{_lambda_.19} parent=0 // pred_fallthru
    _

// kernel: _lambda_.21
$region0: #{_lambda_.21}
  #allocation0 [shape = 'u32[]', space=smem, size = 0x4, offset = 0x4, fixed_abs, tag = 'smem constant byte address 0x4 - core index']
  #allocation1 [shape = 'u32[144,128]{1,0:T(1,128)}', space=vmem, size = 0x12000, scoped, tag = 'internal scratch']
  %s0 = inlined_call_operand.vmem [shape: bf16[32,256], index: 0, kind: input, shape index: {}]
  %s1 = inlined_call_operand.vmem [shape: bf16[256,128], index: 1, kind: input, shape index: {}]
  %s2 = inlined_call_operand.vmem [shape: f32[1,128], index: 2, kind: input, shape index: {}]
  %s3 = inlined_call_operand.vmem [shape: f32[1,128], index: 3, kind: input, shape index: {}]
  %s4 = inlined_call_operand.vmem [shape: f32[32,128], index: 4, kind: output, shape index: {}]
  %s5 = sld [smem:[#allocation0]]
  $region26: #{_lambda_.21} parent=0
    _
  %s7 = ssub.s32 1, %s5
  %s8 = scalar_select 0, %s7, %s5
  // Predicated region
  $region2: #{_lambda_.21} parent=0 // pred_check
    _
  $region3: #{_lambda_.21} parent=0 // pred_check_branch
    %10 = sbr.rel (0) target = $region5
  $region4: #{_lambda_.21} parent=0 // pred_region
    _
  $region5: #{_lambda_.21} parent=0 // pred_fallthru
    _
  // Predicated region
  $region6: #{_lambda_.21} parent=0 // pred_check
    _
  $region7: #{_lambda_.21} parent=0 // pred_check_branch
    %12 = sbr.rel (0) target = $region9
  $region8: #{_lambda_.21} parent=0 // pred_region
    _
  $region9: #{_lambda_.21} parent=0 // pred_fallthru
    _
  // Predicated region
  $region10: #{_lambda_.21} parent=0 // pred_check
    _
  $region11: #{_lambda_.21} parent=0 // pred_check_branch
    %14 = sbr.rel (0) target = $region13
  $region12: #{_lambda_.21} parent=0 // pred_region
    _
  $region13: #{_lambda_.21} parent=0 // pred_fallthru
    _
  // Predicated region
  $region14: #{_lambda_.21} parent=0 // pred_check
    _
  $region15: #{_lambda_.21} parent=0 // pred_check_branch
    %16 = sbr.rel (0) target = $region17
  $region16: #{_lambda_.21} parent=0 // pred_region
    _
  $region17: #{_lambda_.21} parent=0 // pred_fallthru
    _
  %v18 = vld [vmem:[%s0] sm:$0xff]
  %v19 = vld [vmem:[%s0 + $0x8] sm:$0xff]
  %v20 = vld [vmem:[%s0 + $0x10] sm:$0xff]
  %v21 = vld [vmem:[%s0 + $0x18] sm:$0xff]
  %v22 = vld [vmem:[%s1] sm:$0xf]
  %v23 = vld [vmem:[%s1 + $0x4] sm:$0xf]
  %v24 = vld [vmem:[%s1 + $0x8] sm:$0xf]
  %v25 = vld [vmem:[%s1 + $0xc] sm:$0xf]
  %v26 = vld [vmem:[%s1 + $0x10] sm:$0xf]
  %v27 = vld [vmem:[%s1 + $0x14] sm:$0xf]
  %v28 = vld [vmem:[%s1 + $0x18] sm:$0xf]
  %v29 = vld [vmem:[%s1 + $0x1c] sm:$0xf]
  %v30 = vld [vmem:[%s1 + $0x20] sm:$0xf]
  %v31 = vld [vmem:[%s1 + $0x24] sm:$0xf]
  %v32 = vld [vmem:[%s1 + $0x28] sm:$0xf]
  %v33 = vld [vmem:[%s1 + $0x2c] sm:$0xf]
  %v34 = vld [vmem:[%s1 + $0x30] sm:$0xf]
  %v35 = vld [vmem:[%s1 + $0x34] sm:$0xf]
  %v36 = vld [vmem:[%s1 + $0x38] sm:$0xf]
  %v37 = vld [vmem:[%s1 + $0x3c] sm:$0xf]
  %v38 = vld [vmem:[%s1 + $0x40] sm:$0xf]
  %v39 = vld [vmem:[%s1 + $0x44] sm:$0xf]
  %v40 = vld [vmem:[%s1 + $0x48] sm:$0xf]
  %v41 = vld [vmem:[%s1 + $0x4c] sm:$0xf]
  %v42 = vld [vmem:[%s1 + $0x50] sm:$0xf]
  %v43 = vld [vmem:[%s1 + $0x54] sm:$0xf]
  %v44 = vld [vmem:[%s1 + $0x58] sm:$0xf]
  %v45 = vld [vmem:[%s1 + $0x5c] sm:$0xf]
  %v46 = vld [vmem:[%s1 + $0x60] sm:$0xf]
  %v47 = vld [vmem:[%s1 + $0x64] sm:$0xf]
  %v48 = vld [vmem:[%s1 + $0x68] sm:$0xf]
  %v49 = vld [vmem:[%s1 + $0x6c] sm:$0xf]
  %v50 = vld [vmem:[%s1 + $0x70] sm:$0xf]
  %v51 = vld [vmem:[%s1 + $0x74] sm:$0xf]
  %v52 = vld [vmem:[%s1 + $0x78] sm:$0xf]
  %v53 = vld [vmem:[%s1 + $0x7c] sm:$0xf]
  %v58 = vunpack.c.l.b16 %v18
  %v59 = vunpack.c.h.b16 %v18
  %v60 = vunpack.c.l.b16 %v19
  %v61 = vunpack.c.h.b16 %v19
  %v62 = vunpack.c.l.b16 %v20
  %v63 = vunpack.c.h.b16 %v20
  %v64 = vunpack.c.l.b16 %v21
  %v65 = vunpack.c.h.b16 %v21
  %v66 = vpack.c.b16 %v60, %v58
  %v67 = vpack.c.b16 %v61, %v59
  %v68 = vpack.c.b16 %v64, %v62
  %v69 = vpack.c.b16 %v65, %v63
  %v106 = vunpack.c.l.b16 %v22
  %v107 = vunpack.c.l.b16 %v23
  %v108 = vunpack.c.l.b16 %v24
  %v109 = vunpack.c.l.b16 %v25
  %v110 = vunpack.c.l.b16 %v26
  %v111 = vunpack.c.l.b16 %v27
  %v112 = vunpack.c.l.b16 %v28
  %v113 = vunpack.c.l.b16 %v29
  %v114 = vunpack.c.l.b16 %v30
  %v115 = vunpack.c.l.b16 %v31
  %v116 = vunpack.c.l.b16 %v32
  %v117 = vunpack.c.l.b16 %v33
  %v118 = vunpack.c.l.b16 %v34
  %v119 = vunpack.c.l.b16 %v35
  %v120 = vunpack.c.l.b16 %v36
  %v121 = vunpack.c.l.b16 %v37
  %v122 = vunpack.c.l.b16 %v38
  %v123 = vunpack.c.l.b16 %v39
  %v124 = vunpack.c.l.b16 %v40
  %v125 = vunpack.c.l.b16 %v41
  %v126 = vunpack.c.l.b16 %v42
  %v127 = vunpack.c.l.b16 %v43
  %v128 = vunpack.c.l.b16 %v44
  %v129 = vunpack.c.l.b16 %v45
  %v130 = vunpack.c.l.b16 %v46
  %v131 = vunpack.c.l.b16 %v47
  %v132 = vunpack.c.l.b16 %v48
  %v133 = vunpack.c.l.b16 %v49
  %v134 = vunpack.c.l.b16 %v50
  %v135 = vunpack.c.l.b16 %v51
  %v136 = vunpack.c.l.b16 %v52
  %v137 = vunpack.c.l.b16 %v53
  %v138 = vpack.c.b16 %v107, %v106
  %v139 = vpack.c.b16 %v109, %v108
  %v140 = vpack.c.b16 %v111, %v110
  %v141 = vpack.c.b16 %v113, %v112
  %v142 = vpack.c.b16 %v115, %v114
  %v143 = vpack.c.b16 %v117, %v116
  %v144 = vpack.c.b16 %v119, %v118
  %v145 = vpack.c.b16 %v121, %v120
  %v146 = vpack.c.b16 %v123, %v122
  %v147 = vpack.c.b16 %v125, %v124
  %v148 = vpack.c.b16 %v127, %v126
  %v149 = vpack.c.b16 %v129, %v128
  %v150 = vpack.c.b16 %v131, %v130
  %v151 = vpack.c.b16 %v133, %v132
  %v152 = vpack.c.b16 %v135, %v134
  %v153 = vpack.c.b16 %v137, %v136
  %170 = vmatprep.subr.bf16.mxu0 0
  %171 = vmatpush1.bf16.msra.mxu0 %v145
  %172 = vmatprep.subr.bf16.mxu0 0
  %173 = vmatpush1.bf16.msra.mxu0 %v144
  %174 = vmatprep.subr.bf16.mxu0 0
  %175 = vmatpush1.bf16.msra.mxu0 %v143
  %176 = vmatprep.subr.bf16.mxu0 0
  %177 = vmatpush1.bf16.msra.mxu0 %v142
  %178 = vmatprep.subr.bf16.mxu0 0
  %179 = vmatpush1.bf16.msra.mxu0 %v141
  %180 = vmatprep.subr.bf16.mxu0 0
  %181 = vmatpush1.bf16.msra.mxu0 %v140
  %182 = vmatprep.subr.bf16.mxu0 0
  %183 = vmatpush1.bf16.msra.mxu0 %v139
  %184 = vmatprep.subr.bf16.mxu0 0
  %185 = vmatpush1.bf16.msra.mxu0 %v138
  %186 = vmatprep.subr.bf16.mxu0 0
  %187 = vmatpush2.bf16.msra.mxu0 %v153
  %188 = vmatprep.subr.bf16.mxu0 0
  %189 = vmatpush2.bf16.msra.mxu0 %v152
  %190 = vmatprep.subr.bf16.mxu0 0
  %191 = vmatpush2.bf16.msra.mxu0 %v151
  %192 = vmatprep.subr.bf16.mxu0 0
  %193 = vmatpush2.bf16.msra.mxu0 %v150
  %194 = vmatprep.subr.bf16.mxu0 0
  %195 = vmatpush2.bf16.msra.mxu0 %v149
  %196 = vmatprep.subr.bf16.mxu0 0
  %197 = vmatpush2.bf16.msra.mxu0 %v148
  %198 = vmatprep.subr.bf16.mxu0 0
  %199 = vmatpush2.bf16.msra.mxu0 %v147
  %200 = vmatprep.subr.bf16.mxu0 0
  %201 = vmatpush2.bf16.msra.mxu0 %v146
  %202 = vmatprep.mubr.bf16.mxu0 %v67
  %203 = vmatmul.mubr.bf16.gmra.mxu0 %v66
  %v204 = vpop.f32.mrf.mxu0
  %v205 = vadd.f32 0.0, %v204
  %v206 = vpop.f32.mrf.mxu0
  %v207 = vpop.f32.mrf.mxu0
  %v208 = vadd.f32 0.0, %v207
  %v209 = vpop.f32.mrf.mxu0
  %210 = vmatprep.mubr.bf16.mxu0 %v69
  %211 = vmatmul.mubr.bf16.gmra.mxu0 %v68
  %v212 = vpop.f32.mrf.mxu0
  %v213 = vadd.f32 0.0, %v212
  %v214 = vpop.f32.mrf.mxu0
  %v215 = vpop.f32.mrf.mxu0
  %v216 = vadd.f32 0.0, %v215
  %v217 = vpop.f32.mrf.mxu0
  %218 = vdwg.mxu0
  %v219 = vld [vmem:[%s2] sm:$0x1]
  %v221 = vlaneseq
  %v222 = vshrl.u32 %v221, 7
  %v223 = vsub.s32 0, %v222
  %v224 = vrot.slane %v219, %v223
  %v226 = vmul.f32 %v205, %v224
  %v227 = vmul.f32 %v208, %v224
  %v228 = vmul.f32 %v213, %v224
  %v229 = vmul.f32 %v216, %v224
  %v230 = vld [vmem:[%s3] sm:$0x1]
  %v232 = vlaneseq
  %v233 = vshrl.u32 %v232, 7
  %v234 = vsub.s32 0, %v233
  %v235 = vrot.slane %v230, %v234
  %v237 = vadd.f32 %v226, %v235
  %v238 = vadd.f32 %v227, %v235
  %v239 = vadd.f32 %v228, %v235
  %v240 = vadd.f32 %v229, %v235
  %v241 = vmax.f32 %v237, 0.0
  %v242 = vmax.f32 %v238, 0.0
  %v243 = vmax.f32 %v239, 0.0
  %v244 = vmax.f32 %v240, 0.0
  %245 = vst [vmem:[%s4] sm:$0xff] %v241
  %246 = vst [vmem:[%s4 + $0x8] sm:$0xff] %v242
  %247 = vst [vmem:[%s4 + $0x10] sm:$0xff] %v243
  %248 = vst [vmem:[%s4 + $0x18] sm:$0xff] %v244
  // Predicated region
  $region18: #{_lambda_.21} parent=0 // pred_check
    _
  $region19: #{_lambda_.21} parent=0 // pred_check_branch
    %250 = sbr.rel (0) target = $region21
  $region20: #{_lambda_.21} parent=0 // pred_region
    _
  $region21: #{_lambda_.21} parent=0 // pred_fallthru
    _
  // Predicated region
  $region22: #{_lambda_.21} parent=0 // pred_check
    _
  $region23: #{_lambda_.21} parent=0 // pred_check_branch
    %252 = sbr.rel (0) target = $region25
  $region24: #{_lambda_.21} parent=0 // pred_region
    _
  $region25: #{_lambda_.21} parent=0 // pred_fallthru
    _

// kernel: _lambda_.22
$region0: #{_lambda_.22}
  #allocation0 [shape = 'u32[]', space=smem, size = 0x4, offset = 0x4, fixed_abs, tag = 'smem constant byte address 0x4 - core index']
  #allocation1 [shape = 'u32[144,128]{1,0:T(1,128)}', space=vmem, size = 0x12000, scoped, tag = 'internal scratch']
  %s0 = inlined_call_operand.vmem [shape: bf16[128,256], index: 0, kind: input, shape index: {}]
  %s1 = inlined_call_operand.vmem [shape: bf16[256,128], index: 1, kind: input, shape index: {}]
  %s2 = inlined_call_operand.vmem [shape: f32[1,128], index: 2, kind: input, shape index: {}]
  %s3 = inlined_call_operand.vmem [shape: f32[1,128], index: 3, kind: input, shape index: {}]
  %s4 = inlined_call_operand.vmem [shape: f32[128,128], index: 4, kind: output, shape index: {}]
  %s5 = sld [smem:[#allocation0]]
  $region26: #{_lambda_.22} parent=0
    _
  %s7 = ssub.s32 1, %s5
  %s8 = scalar_select 0, %s7, %s5
  // Predicated region
  $region2: #{_lambda_.22} parent=0 // pred_check
    _
  $region3: #{_lambda_.22} parent=0 // pred_check_branch
    %10 = sbr.rel (0) target = $region5
  $region4: #{_lambda_.22} parent=0 // pred_region
    _
  $region5: #{_lambda_.22} parent=0 // pred_fallthru
    _
  // Predicated region
  $region6: #{_lambda_.22} parent=0 // pred_check
    _
  $region7: #{_lambda_.22} parent=0 // pred_check_branch
    %12 = sbr.rel (0) target = $region9
  $region8: #{_lambda_.22} parent=0 // pred_region
    _
  $region9: #{_lambda_.22} parent=0 // pred_fallthru
    _
  // Predicated region
  $region10: #{_lambda_.22} parent=0 // pred_check
    _
  $region11: #{_lambda_.22} parent=0 // pred_check_branch
    %14 = sbr.rel (0) target = $region13
  $region12: #{_lambda_.22} parent=0 // pred_region
    _
  $region13: #{_lambda_.22} parent=0 // pred_fallthru
    _
  // Predicated region
  $region14: #{_lambda_.22} parent=0 // pred_check
    _
  $region15: #{_lambda_.22} parent=0 // pred_check_branch
    %16 = sbr.rel (0) target = $region17
  $region16: #{_lambda_.22} parent=0 // pred_region
    _
  $region17: #{_lambda_.22} parent=0 // pred_fallthru
    _
  %v18 = vld [vmem:[%s0] sm:$0xff]
  %v19 = vld [vmem:[%s0 + $0x8] sm:$0xff]
  %v20 = vld [vmem:[%s0 + $0x10] sm:$0xff]
  %v21 = vld [vmem:[%s0 + $0x18] sm:$0xff]
  %v22 = vld [vmem:[%s0 + $0x20] sm:$0xff]
  %v23 = vld [vmem:[%s0 + $0x28] sm:$0xff]
  %v24 = vld [vmem:[%s0 + $0x30] sm:$0xff]
  %v25 = vld [vmem:[%s0 + $0x38] sm:$0xff]
  %v26 = vld [vmem:[%s0 + $0x40] sm:$0xff]
  %v27 = vld [vmem:[%s0 + $0x48] sm:$0xff]
  %v28 = vld [vmem:[%s0 + $0x50] sm:$0xff]
  %v29 = vld [vmem:[%s0 + $0x58] sm:$0xff]
  %v30 = vld [vmem:[%s0 + $0x60] sm:$0xff]
  %v31 = vld [vmem:[%s0 + $0x68] sm:$0xff]
  %v32 = vld [vmem:[%s0 + $0x70] sm:$0xff]
  %v33 = vld [vmem:[%s0 + $0x78] sm:$0xff]
  %v34 = vld [vmem:[%s1] sm:$0xf]
  %v35 = vld [vmem:[%s1 + $0x4] sm:$0xf]
  %v36 = vld [vmem:[%s1 + $0x8] sm:$0xf]
  %v37 = vld [vmem:[%s1 + $0xc] sm:$0xf]
  %v38 = vld [vmem:[%s1 + $0x10] sm:$0xf]
  %v39 = vld [vmem:[%s1 + $0x14] sm:$0xf]
  %v40 = vld [vmem:[%s1 + $0x18] sm:$0xf]
  %v41 = vld [vmem:[%s1 + $0x1c] sm:$0xf]
  %v42 = vld [vmem:[%s1 + $0x20] sm:$0xf]
  %v43 = vld [vmem:[%s1 + $0x24] sm:$0xf]
  %v44 = vld [vmem:[%s1 + $0x28] sm:$0xf]
  %v45 = vld [vmem:[%s1 + $0x2c] sm:$0xf]
  %v46 = vld [vmem:[%s1 + $0x30] sm:$0xf]
  %v47 = vld [vmem:[%s1 + $0x34] sm:$0xf]
  %v48 = vld [vmem:[%s1 + $0x38] sm:$0xf]
  %v49 = vld [vmem:[%s1 + $0x3c] sm:$0xf]
  %v50 = vld [vmem:[%s1 + $0x40] sm:$0xf]
  %v51 = vld [vmem:[%s1 + $0x44] sm:$0xf]
  %v52 = vld [vmem:[%s1 + $0x48] sm:$0xf]
  %v53 = vld [vmem:[%s1 + $0x4c] sm:$0xf]
  %v54 = vld [vmem:[%s1 + $0x50] sm:$0xf]
  %v55 = vld [vmem:[%s1 + $0x54] sm:$0xf]
  %v56 = vld [vmem:[%s1 + $0x58] sm:$0xf]
  %v57 = vld [vmem:[%s1 + $0x5c] sm:$0xf]
  %v58 = vld [vmem:[%s1 + $0x60] sm:$0xf]
  %v59 = vld [vmem:[%s1 + $0x64] sm:$0xf]
  %v60 = vld [vmem:[%s1 + $0x68] sm:$0xf]
  %v61 = vld [vmem:[%s1 + $0x6c] sm:$0xf]
  %v62 = vld [vmem:[%s1 + $0x70] sm:$0xf]
  %v63 = vld [vmem:[%s1 + $0x74] sm:$0xf]
  %v64 = vld [vmem:[%s1 + $0x78] sm:$0xf]
  %v65 = vld [vmem:[%s1 + $0x7c] sm:$0xf]
  %v82 = vunpack.c.l.b16 %v18
  %v83 = vunpack.c.h.b16 %v18
  %v84 = vunpack.c.l.b16 %v19
  %v85 = vunpack.c.h.b16 %v19
  %v86 = vunpack.c.l.b16 %v20
  %v87 = vunpack.c.h.b16 %v20
  %v88 = vunpack.c.l.b16 %v21
  %v89 = vunpack.c.h.b16 %v21
  %v90 = vunpack.c.l.b16 %v22
  %v91 = vunpack.c.h.b16 %v22
  %v92 = vunpack.c.l.b16 %v23
  %v93 = vunpack.c.h.b16 %v23
  %v94 = vunpack.c.l.b16 %v24
  %v95 = vunpack.c.h.b16 %v24
  %v96 = vunpack.c.l.b16 %v25
  %v97 = vunpack.c.h.b16 %v25
  %v98 = vunpack.c.l.b16 %v26
  %v99 = vunpack.c.h.b16 %v26
  %v100 = vunpack.c.l.b16 %v27
  %v101 = vunpack.c.h.b16 %v27
  %v102 = vunpack.c.l.b16 %v28
  %v103 = vunpack.c.h.b16 %v28
  %v104 = vunpack.c.l.b16 %v29
  %v105 = vunpack.c.h.b16 %v29
  %v106 = vunpack.c.l.b16 %v30
  %v107 = vunpack.c.h.b16 %v30
  %v108 = vunpack.c.l.b16 %v31
  %v109 = vunpack.c.h.b16 %v31
  %v110 = vunpack.c.l.b16 %v32
  %v111 = vunpack.c.h.b16 %v32
  %v112 = vunpack.c.l.b16 %v33
  %v113 = vunpack.c.h.b16 %v33
  %v114 = vpack.c.b16 %v84, %v82
  %v115 = vpack.c.b16 %v85, %v83
  %v116 = vpack.c.b16 %v88, %v86
  %v117 = vpack.c.b16 %v89, %v87
  %v118 = vpack.c.b16 %v92, %v90
  %v119 = vpack.c.b16 %v93, %v91
  %v120 = vpack.c.b16 %v96, %v94
  %v121 = vpack.c.b16 %v97, %v95
  %v122 = vpack.c.b16 %v100, %v98
  %v123 = vpack.c.b16 %v101, %v99
  %v124 = vpack.c.b16 %v104, %v102
  %v125 = vpack.c.b16 %v105, %v103
  %v126 = vpack.c.b16 %v108, %v106
  %v127 = vpack.c.b16 %v109, %v107
  %v128 = vpack.c.b16 %v112, %v110
  %v129 = vpack.c.b16 %v113, %v111
  %v178 = vunpack.c.l.b16 %v34
  %v179 = vunpack.c.l.b16 %v35
  %v180 = vunpack.c.l.b16 %v36
  %v181 = vunpack.c.l.b16 %v37
  %v182 = vunpack.c.l.b16 %v38
  %v183 = vunpack.c.l.b16 %v39
  %v184 = vunpack.c.l.b16 %v40
  %v185 = vunpack.c.l.b16 %v41
  %v186 = vunpack.c.l.b16 %v42
  %v187 = vunpack.c.l.b16 %v43
  %v188 = vunpack.c.l.b16 %v44
  %v189 = vunpack.c.l.b16 %v45
  %v190 = vunpack.c.l.b16 %v46
  %v191 = vunpack.c.l.b16 %v47
  %v192 = vunpack.c.l.b16 %v48
  %v193 = vunpack.c.l.b16 %v49
  %v194 = vunpack.c.l.b16 %v50
  %v195 = vunpack.c.l.b16 %v51
  %v196 = vunpack.c.l.b16 %v52
  %v197 = vunpack.c.l.b16 %v53
  %v198 = vunpack.c.l.b16 %v54
  %v199 = vunpack.c.l.b16 %v55
  %v200 = vunpack.c.l.b16 %v56
  %v201 = vunpack.c.l.b16 %v57
  %v202 = vunpack.c.l.b16 %v58
  %v203 = vunpack.c.l.b16 %v59
  %v204 = vunpack.c.l.b16 %v60
  %v205 = vunpack.c.l.b16 %v61
  %v206 = vunpack.c.l.b16 %v62
  %v207 = vunpack.c.l.b16 %v63
  %v208 = vunpack.c.l.b16 %v64
  %v209 = vunpack.c.l.b16 %v65
  %v210 = vpack.c.b16 %v179, %v178
  %v211 = vpack.c.b16 %v181, %v180
  %v212 = vpack.c.b16 %v183, %v182
  %v213 = vpack.c.b16 %v185, %v184
  %v214 = vpack.c.b16 %v187, %v186
  %v215 = vpack.c.b16 %v189, %v188
  %v216 = vpack.c.b16 %v191, %v190
  %v217 = vpack.c.b16 %v193, %v192
  %v218 = vpack.c.b16 %v195, %v194
  %v219 = vpack.c.b16 %v197, %v196
  %v220 = vpack.c.b16 %v199, %v198
  %v221 = vpack.c.b16 %v201, %v200
  %v222 = vpack.c.b16 %v203, %v202
  %v223 = vpack.c.b16 %v205, %v204
  %v224 = vpack.c.b16 %v207, %v206
  %v225 = vpack.c.b16 %v209, %v208
  %242 = vmatprep.subr.bf16.mxu0 0
  %243 = vmatpush1.bf16.msra.mxu0 %v217
  %244 = vmatprep.subr.bf16.mxu0 0
  %245 = vmatpush1.bf16.msra.mxu0 %v216
  %246 = vmatprep.subr.bf16.mxu0 0
  %247 = vmatpush1.bf16.msra.mxu0 %v215
  %248 = vmatprep.subr.bf16.mxu0 0
  %249 = vmatpush1.bf16.msra.mxu0 %v214
  %250 = vmatprep.subr.bf16.mxu0 0
  %251 = vmatpush1.bf16.msra.mxu0 %v213
  %252 = vmatprep.subr.bf16.mxu0 0
  %253 = vmatpush1.bf16.msra.mxu0 %v212
  %254 = vmatprep.subr.bf16.mxu0 0
  %255 = vmatpush1.bf16.msra.mxu0 %v211
  %256 = vmatprep.subr.bf16.mxu0 0
  %257 = vmatpush1.bf16.msra.mxu0 %v210
  %258 = vmatprep.subr.bf16.mxu0 0
  %259 = vmatpush2.bf16.msra.mxu0 %v225
  %260 = vmatprep.subr.bf16.mxu0 0
  %261 = vmatpush2.bf16.msra.mxu0 %v224
  %262 = vmatprep.subr.bf16.mxu0 0
  %263 = vmatpush2.bf16.msra.mxu0 %v223
  %264 = vmatprep.subr.bf16.mxu0 0
  %265 = vmatpush2.bf16.msra.mxu0 %v222
  %266 = vmatprep.subr.bf16.mxu0 0
  %267 = vmatpush2.bf16.msra.mxu0 %v221
  %268 = vmatprep.subr.bf16.mxu0 0
  %269 = vmatpush2.bf16.msra.mxu0 %v220
  %270 = vmatprep.subr.bf16.mxu0 0
  %271 = vmatpush2.bf16.msra.mxu0 %v219
  %272 = vmatprep.subr.bf16.mxu0 0
  %273 = vmatpush2.bf16.msra.mxu0 %v218
  %274 = vmatprep.mubr.bf16.mxu0 %v115
  %275 = vmatmul.mubr.bf16.gmra.mxu0 %v114
  %v276 = vpop.f32.mrf.mxu0
  %v277 = vadd.f32 0.0, %v276
  %v278 = vpop.f32.mrf.mxu0
  %v279 = vpop.f32.mrf.mxu0
  %v280 = vadd.f32 0.0, %v279
  %v281 = vpop.f32.mrf.mxu0
  %282 = vmatprep.mubr.bf16.mxu0 %v117
  %283 = vmatmul.mubr.bf16.gmra.mxu0 %v116
  %v284 = vpop.f32.mrf.mxu0
  %v285 = vadd.f32 0.0, %v284
  %v286 = vpop.f32.mrf.mxu0
  %v287 = vpop.f32.mrf.mxu0
  %v288 = vadd.f32 0.0, %v287
  %v289 = vpop.f32.mrf.mxu0
  %290 = vmatprep.mubr.bf16.mxu0 %v119
  %291 = vmatmul.mubr.bf16.gmra.mxu0 %v118
  %v292 = vpop.f32.mrf.mxu0
  %v293 = vadd.f32 0.0, %v292
  %v294 = vpop.f32.mrf.mxu0
  %v295 = vpop.f32.mrf.mxu0
  %v296 = vadd.f32 0.0, %v295
  %v297 = vpop.f32.mrf.mxu0
  %298 = vmatprep.mubr.bf16.mxu0 %v121
  %299 = vmatmul.mubr.bf16.gmra.mxu0 %v120
  %v300 = vpop.f32.mrf.mxu0
  %v301 = vadd.f32 0.0, %v300
  %v302 = vpop.f32.mrf.mxu0
  %v303 = vpop.f32.mrf.mxu0
  %v304 = vadd.f32 0.0, %v303
  %v305 = vpop.f32.mrf.mxu0
  %306 = vmatprep.mubr.bf16.mxu0 %v123
  %307 = vmatmul.mubr.bf16.gmra.mxu0 %v122
  %v308 = vpop.f32.mrf.mxu0
  %v309 = vadd.f32 0.0, %v308
  %v310 = vpop.f32.mrf.mxu0
  %v311 = vpop.f32.mrf.mxu0
  %v312 = vadd.f32 0.0, %v311
  %v313 = vpop.f32.mrf.mxu0
  %314 = vmatprep.mubr.bf16.mxu0 %v125
  %315 = vmatmul.mubr.bf16.gmra.mxu0 %v124
  %v316 = vpop.f32.mrf.mxu0
  %v317 = vadd.f32 0.0, %v316
  %v318 = vpop.f32.mrf.mxu0
  %v319 = vpop.f32.mrf.mxu0
  %v320 = vadd.f32 0.0, %v319
  %v321 = vpop.f32.mrf.mxu0
  %322 = vmatprep.mubr.bf16.mxu0 %v127
  %323 = vmatmul.mubr.bf16.gmra.mxu0 %v126
  %v324 = vpop.f32.mrf.mxu0
  %v325 = vadd.f32 0.0, %v324
  %v326 = vpop.f32.mrf.mxu0
  %v327 = vpop.f32.mrf.mxu0
  %v328 = vadd.f32 0.0, %v327
  %v329 = vpop.f32.mrf.mxu0
  %330 = vmatprep.mubr.bf16.mxu0 %v129
  %331 = vmatmul.mubr.bf16.gmra.mxu0 %v128
  %v332 = vpop.f32.mrf.mxu0
  %v333 = vadd.f32 0.0, %v332
  %v334 = vpop.f32.mrf.mxu0
  %v335 = vpop.f32.mrf.mxu0
  %v336 = vadd.f32 0.0, %v335
  %v337 = vpop.f32.mrf.mxu0
  %338 = vdwg.mxu0
  %v339 = vld [vmem:[%s2] sm:$0x1]
  %v341 = vlaneseq
  %v342 = vshrl.u32 %v341, 7
  %v343 = vsub.s32 0, %v342
  %v344 = vrot.slane %v339, %v343
  %v346 = vmul.f32 %v277, %v344
  %v347 = vmul.f32 %v280, %v344
  %v348 = vmul.f32 %v285, %v344
  %v349 = vmul.f32 %v288, %v344
  %v350 = vmul.f32 %v293, %v344
  %v351 = vmul.f32 %v296, %v344
  %v352 = vmul.f32 %v301, %v344
  %v353 = vmul.f32 %v304, %v344
  %v354 = vmul.f32 %v309, %v344
  %v355 = vmul.f32 %v312, %v344
  %v356 = vmul.f32 %v317, %v344
  %v357 = vmul.f32 %v320, %v344
  %v358 = vmul.f32 %v325, %v344
  %v359 = vmul.f32 %v328, %v344
  %v360 = vmul.f32 %v333, %v344
  %v361 = vmul.f32 %v336, %v344
  %v362 = vld [vmem:[%s3] sm:$0x1]
  %v364 = vlaneseq
  %v365 = vshrl.u32 %v364, 7
  %v366 = vsub.s32 0, %v365
  %v367 = vrot.slane %v362, %v366
  %v369 = vadd.f32 %v346, %v367
  %v370 = vadd.f32 %v347, %v367
  %v371 = vadd.f32 %v348, %v367
  %v372 = vadd.f32 %v349, %v367
  %v373 = vadd.f32 %v350, %v367
  %v374 = vadd.f32 %v351, %v367
  %v375 = vadd.f32 %v352, %v367
  %v376 = vadd.f32 %v353, %v367
  %v377 = vadd.f32 %v354, %v367
  %v378 = vadd.f32 %v355, %v367
  %v379 = vadd.f32 %v356, %v367
  %v380 = vadd.f32 %v357, %v367
  %v381 = vadd.f32 %v358, %v367
  %v382 = vadd.f32 %v359, %v367
  %v383 = vadd.f32 %v360, %v367
  %v384 = vadd.f32 %v361, %v367
  %v385 = vmax.f32 %v369, 0.0
  %v386 = vmax.f32 %v370, 0.0
  %v387 = vmax.f32 %v371, 0.0
  %v388 = vmax.f32 %v372, 0.0
  %v389 = vmax.f32 %v373, 0.0
  %v390 = vmax.f32 %v374, 0.0
  %v391 = vmax.f32 %v375, 0.0
  %v392 = vmax.f32 %v376, 0.0
  %v393 = vmax.f32 %v377, 0.0
  %v394 = vmax.f32 %v378, 0.0
  %v395 = vmax.f32 %v379, 0.0
  %v396 = vmax.f32 %v380, 0.0
  %v397 = vmax.f32 %v381, 0.0
  %v398 = vmax.f32 %v382, 0.0
  %v399 = vmax.f32 %v383, 0.0
  %v400 = vmax.f32 %v384, 0.0
  %401 = vst [vmem:[%s4] sm:$0xff] %v385
  %402 = vst [vmem:[%s4 + $0x8] sm:$0xff] %v386
  %403 = vst [vmem:[%s4 + $0x10] sm:$0xff] %v387
  %404 = vst [vmem:[%s4 + $0x18] sm:$0xff] %v388
  %405 = vst [vmem:[%s4 + $0x20] sm:$0xff] %v389
  %406 = vst [vmem:[%s4 + $0x28] sm:$0xff] %v390
  %407 = vst [vmem:[%s4 + $0x30] sm:$0xff] %v391
  %408 = vst [vmem:[%s4 + $0x38] sm:$0xff] %v392
  %409 = vst [vmem:[%s4 + $0x40] sm:$0xff] %v393
  %410 = vst [vmem:[%s4 + $0x48] sm:$0xff] %v394
  %411 = vst [vmem:[%s4 + $0x50] sm:$0xff] %v395
  %412 = vst [vmem:[%s4 + $0x58] sm:$0xff] %v396
  %413 = vst [vmem:[%s4 + $0x60] sm:$0xff] %v397
  %414 = vst [vmem:[%s4 + $0x68] sm:$0xff] %v398
  %415 = vst [vmem:[%s4 + $0x70] sm:$0xff] %v399
  %416 = vst [vmem:[%s4 + $0x78] sm:$0xff] %v400
  // Predicated region
  $region18: #{_lambda_.22} parent=0 // pred_check
    _
  $region19: #{_lambda_.22} parent=0 // pred_check_branch
    %418 = sbr.rel (0) target = $region21
  $region20: #{_lambda_.22} parent=0 // pred_region
    _
  $region21: #{_lambda_.22} parent=0 // pred_fallthru
    _
  // Predicated region
  $region22: #{_lambda_.22} parent=0 // pred_check
    _
  $region23: #{_lambda_.22} parent=0 // pred_check_branch
    %420 = sbr.rel (0) target = $region25
  $region24: #{_lambda_.22} parent=0 // pred_region
    _
  $region25: #{_lambda_.22} parent=0 // pred_fallthru
    _

// kernel: _lambda_.23
$region0: #{_lambda_.23}
  #allocation0 [shape = 'u32[]', space=smem, size = 0x4, offset = 0x4, fixed_abs, tag = 'smem constant byte address 0x4 - core index']
  #allocation1 [shape = 'u32[144,128]{1,0:T(1,128)}', space=vmem, size = 0x12000, scoped, tag = 'internal scratch']
  %s0 = inlined_call_operand.vmem [shape: bf16[512,256], index: 0, kind: input, shape index: {}]
  %s1 = inlined_call_operand.vmem [shape: bf16[256,128], index: 1, kind: input, shape index: {}]
  %s2 = inlined_call_operand.vmem [shape: f32[1,128], index: 2, kind: input, shape index: {}]
  %s3 = inlined_call_operand.vmem [shape: f32[1,128], index: 3, kind: input, shape index: {}]
  %s4 = inlined_call_operand.vmem [shape: f32[512,128], index: 4, kind: input, shape index: {}]
  %s5 = inlined_call_operand.vmem [shape: f32[512,128], index: 5, kind: output, shape index: {}]
  %s6 = sld [smem:[#allocation0]]
  $region53: #{_lambda_.23} parent=0
    _
  %s8 = ssub.s32 1, %s6
  %s9 = scalar_select 0, %s8, %s6
  loop: start=0, step=1, limit=4
  $region2: #{_lambda_.23} parent=0 // loop_pre_header
    _
  $region3: #{_lambda_.23} parent=0 // loop_header
    %s11 = sphi 0, %s15
    %p12 = scmp.ge.s32.totalorder %s11, 4
    %s21 = sphi 0, %s23
    %s24 = sphi 0, %s21
    %s25 = sphi 0, %s24
    %s41 = sphi 0, %s25
    %s45 = sphi 0, %s45
    %s47 = sphi 0, %s45
    %s48 = sphi 0, %s47
    %s62 = sphi 0, %s48
    %s66 = sphi 0, %s66
    %s68 = sphi 0, %s66
    %s69 = sphi 0, %s68
    %s83 = sphi 0, %s69
    %s87 = sphi 0, %s87
    %s89 = sphi 0, %s87
    %s90 = sphi 0, %s89
    %s104 = sphi 0, %s90
    %s110 = sphi 0, %s112
    %s113 = sphi 0, %s110
    %s114 = sphi 0, %s113
    %s130 = sphi 0, %s114
    %s136 = sphi 0, %s138
    %s139 = sphi 0, %s136
    %s140 = sphi 0, %s139
    %s156 = sphi 0, %s140
  $region4: #{_lambda_.23} parent=0 // loop_header_branch
    %14 = sbr.rel (%p12) target = $region8
  $region5: #{_lambda_.23} parent=0 // loop_body
    %s16 = ssub.s32 %s11, 1
    %s17 = ssub.s32 %s11, 2
    %s18 = sadd.s32 %s11, 1
    %s19 = ssub.s32 %s11, %s18
    %p20 = scmp.eq.s32.totalorder %s19, 0
    %s22 = sadd.s32 %s21, 1
    %s23 = scalar_select %p20, %s21, %s22
    %p26 = pneg %p20
    %p27 = scmp.eq.s32.totalorder %s11, 1
    %p28 = por %p26, %p27
    %p29 = scmp.ne.s32.totalorder %s21, %s24
    %p30 = scmp.eq.s32.totalorder %s11, 0
    %p31 = por %p29, %p30
    %p32 = scmp.ne.s32.totalorder %s21, %s24
    %p33 = scmp.eq.s32.totalorder %s16, 1
    %p34 = por %p32, %p33
    %p35 = scmp.ne.s32.totalorder %s24, %s25
    %p36 = scmp.eq.s32.totalorder %s16, 0
    %p37 = por %p35, %p36
    %p38 = scmp.ne.s32.totalorder %s24, %s25
    %p39 = scmp.eq.s32.totalorder %s17, 1
    %p40 = por %p38, %p39
    %p42 = scmp.ne.s32.totalorder %s25, %s41
    %p43 = scmp.eq.s32.totalorder %s17, 0
    %p44 = por %p42, %p43
    %s46 = sadd.s32 %s45, 1
    %p49 = scmp.eq.s32.totalorder %s11, 1
    %p50 = scmp.ne.s32.totalorder %s45, %s47
    %p51 = scmp.eq.s32.totalorder %s11, 0
    %p52 = por %p50, %p51
    %p53 = scmp.ne.s32.totalorder %s45, %s47
    %p54 = scmp.eq.s32.totalorder %s16, 1
    %p55 = por %p53, %p54
    %p56 = scmp.ne.s32.totalorder %s47, %s48
    %p57 = scmp.eq.s32.totalorder %s16, 0
    %p58 = por %p56, %p57
    %p59 = scmp.ne.s32.totalorder %s47, %s48
    %p60 = scmp.eq.s32.totalorder %s17, 1
    %p61 = por %p59, %p60
    %p63 = scmp.ne.s32.totalorder %s48, %s62
    %p64 = scmp.eq.s32.totalorder %s17, 0
    %p65 = por %p63, %p64
    %s67 = sadd.s32 %s66, 1
    %p70 = scmp.eq.s32.totalorder %s11, 1
    %p71 = scmp.ne.s32.totalorder %s66, %s68
    %p72 = scmp.eq.s32.totalorder %s11, 0
    %p73 = por %p71, %p72
    %p74 = scmp.ne.s32.totalorder %s66, %s68
    %p75 = scmp.eq.s32.totalorder %s16, 1
    %p76 = por %p74, %p75
    %p77 = scmp.ne.s32.totalorder %s68, %s69
    %p78 = scmp.eq.s32.totalorder %s16, 0
    %p79 = por %p77, %p78
    %p80 = scmp.ne.s32.totalorder %s68, %s69
    %p81 = scmp.eq.s32.totalorder %s17, 1
    %p82 = por %p80, %p81
    %p84 = scmp.ne.s32.totalorder %s69, %s83
    %p85 = scmp.eq.s32.totalorder %s17, 0
    %p86 = por %p84, %p85
    %s88 = sadd.s32 %s87, 1
    %p91 = scmp.eq.s32.totalorder %s11, 1
    %p92 = scmp.ne.s32.totalorder %s87, %s89
    %p93 = scmp.eq.s32.totalorder %s11, 0
    %p94 = por %p92, %p93
    %p95 = scmp.ne.s32.totalorder %s87, %s89
    %p96 = scmp.eq.s32.totalorder %s16, 1
    %p97 = por %p95, %p96
    %p98 = scmp.ne.s32.totalorder %s89, %s90
    %p99 = scmp.eq.s32.totalorder %s16, 0
    %p100 = por %p98, %p99
    %p101 = scmp.ne.s32.totalorder %s89, %s90
    %p102 = scmp.eq.s32.totalorder %s17, 1
    %p103 = por %p101, %p102
    %p105 = scmp.ne.s32.totalorder %s90, %s104
    %p106 = scmp.eq.s32.totalorder %s17, 0
    %p107 = por %p105, %p106
    %s108 = ssub.s32 %s11, %s18
    %p109 = scmp.eq.s32.totalorder %s108, 0
    %s111 = sadd.s32 %s110, 1
    %s112 = scalar_select %p109, %s110, %s111
    %p115 = pneg %p109
    %p116 = scmp.eq.s32.totalorder %s11, 1
    %p117 = por %p115, %p116
    %p118 = scmp.ne.s32.totalorder %s110, %s113
    %p119 = scmp.eq.s32.totalorder %s11, 0
    %p120 = por %p118, %p119
    %p121 = scmp.ne.s32.totalorder %s110, %s113
    %p122 = scmp.eq.s32.totalorder %s16, 1
    %p123 = por %p121, %p122
    %p124 = scmp.ne.s32.totalorder %s113, %s114
    %p125 = scmp.eq.s32.totalorder %s16, 0
    %p126 = por %p124, %p125
    %p127 = scmp.ne.s32.totalorder %s113, %s114
    %p128 = scmp.eq.s32.totalorder %s17, 1
    %p129 = por %p127, %p128
    %p131 = scmp.ne.s32.totalorder %s114, %s130
    %p132 = scmp.eq.s32.totalorder %s17, 0
    %p133 = por %p131, %p132
    %s134 = ssub.s32 %s11, %s18
    %p135 = scmp.eq.s32.totalorder %s134, 0
    %s137 = sadd.s32 %s136, 1
    %s138 = scalar_select %p135, %s136, %s137
    %p141 = pneg %p135
    %p142 = scmp.eq.s32.totalorder %s11, 1
    %p143 = por %p141, %p142
    %p144 = scmp.ne.s32.totalorder %s136, %s139
    %p145 = scmp.eq.s32.totalorder %s11, 0
    %p146 = por %p144, %p145
    %p147 = scmp.ne.s32.totalorder %s136, %s139
    %p148 = scmp.eq.s32.totalorder %s16, 1
    %p149 = por %p147, %p148
    %p150 = scmp.ne.s32.totalorder %s139, %s140
    %p151 = scmp.eq.s32.totalorder %s16, 0
    %p152 = por %p150, %p151
    %p153 = scmp.ne.s32.totalorder %s139, %s140
    %p154 = scmp.eq.s32.totalorder %s17, 1
    %p155 = por %p153, %p154
    %p157 = scmp.ne.s32.totalorder %s140, %s156
    %p158 = scmp.eq.s32.totalorder %s17, 0
    %p159 = por %p157, %p158
    %p160 = scmp.le.s32.totalorder 1, %s11
    %p161 = scmp.lt.s32.totalorder %s11, 3
    %p162 = pnand %p160, %p161
    %p163 = pneg %p162
    // Predicated region
    $region9: #{_lambda_.23} parent=5 // pred_check
      _
    $region10: #{_lambda_.23} parent=5 // pred_check_branch
      %165 = sbr.rel (%p162) target = $region12
    $region11: #{_lambda_.23} parent=5 // pred_region
      %s166 = ssub.s32 %s11, 1
      // Predicated region
      $region13: #{_lambda_.23} parent=11 // pred_check
        %p167 = pneg %p58
      $region14: #{_lambda_.23} parent=11 // pred_check_branch
        %169 = sbr.rel (%p167) target = $region16
      $region15: #{_lambda_.23} parent=11 // pred_region
        _
      $region16: #{_lambda_.23} parent=11 // pred_fallthru
        _
      // Predicated region
      $region17: #{_lambda_.23} parent=11 // pred_check
        %p170 = pneg %p79
      $region18: #{_lambda_.23} parent=11 // pred_check_branch
        %172 = sbr.rel (%p170) target = $region20
      $region19: #{_lambda_.23} parent=11 // pred_region
        _
      $region20: #{_lambda_.23} parent=11 // pred_fallthru
        _
      // Predicated region
      $region21: #{_lambda_.23} parent=11 // pred_check
        %p173 = pneg %p100
      $region22: #{_lambda_.23} parent=11 // pred_check_branch
        %175 = sbr.rel (%p173) target = $region24
      $region23: #{_lambda_.23} parent=11 // pred_region
        _
      $region24: #{_lambda_.23} parent=11 // pred_fallthru
        _
    $region12: #{_lambda_.23} parent=5 // pred_fallthru
      _
    %p176 = scmp.lt.s32.totalorder %s11, 2
    // Predicated region
    $region25: #{_lambda_.23} parent=5 // pred_check
      %p177 = pneg %p176
    $region26: #{_lambda_.23} parent=5 // pred_check_branch
      %179 = sbr.rel (%p177) target = $region28
    $region27: #{_lambda_.23} parent=5 // pred_region
      // Predicated region
      $region29: #{_lambda_.23} parent=27 // pred_check
        %p180 = pneg %p31
      $region30: #{_lambda_.23} parent=27 // pred_check_branch
        %182 = sbr.rel (%p180) target = $region32
      $region31: #{_lambda_.23} parent=27 // pred_region
        %s183 = smul.u32 32, %s11
        %p184 = scmp.lt.s32.totalorder %s183, 63
        %s185 = scalar_select %p184, %s183, 63
        %s186 = smul.addr %s185, 2
        %s187 = smul.addr %s186, 4
        %s188 = scalar_lea.vmem %s0, %s187
        %s189 = smul.u32 32, %s11
      $region32: #{_lambda_.23} parent=27 // pred_fallthru
        _
      // Predicated region
      $region33: #{_lambda_.23} parent=27 // pred_check
        %p190 = pneg %p120
      $region34: #{_lambda_.23} parent=27 // pred_check_branch
        %192 = sbr.rel (%p190) target = $region36
      $region35: #{_lambda_.23} parent=27 // pred_region
        %s193 = smul.u32 32, %s11
        %p194 = scmp.lt.s32.totalorder %s193, 63
        %s195 = scalar_select %p194, %s193, 63
        %s196 = smul.addr %s195, 8
        %s197 = scalar_lea.vmem %s4, %s196
        %s198 = smul.u32 32, %s11
      $region36: #{_lambda_.23} parent=27 // pred_fallthru
        _
    $region28: #{_lambda_.23} parent=5 // pred_fallthru
      _
    %p199 = scmp.le.s32.totalorder 1, %s11
    %p200 = scmp.lt.s32.totalorder %s11, 3
    %p201 = pnand %p199, %p200
    %p202 = pneg %p201
    // Predicated region
    $region37: #{_lambda_.23} parent=5 // pred_check
      _
    $region38: #{_lambda_.23} parent=5 // pred_check_branch
      %204 = sbr.rel (%p201) target = $region40
    $region39: #{_lambda_.23} parent=5 // pred_region
      %s205 = ssub.s32 %s11, 1
      %s206 = smul.u32 32, %s16
      %p207 = scmp.lt.s32.totalorder %s206, 63
      %s208 = scalar_select %p207, %s206, 63
      %s209 = smul.addr %s208, 2
      %s210 = smul.addr %s209, 4
      %s211 = scalar_lea.vmem %s0, %s210
      %p212 = pneg %p37
      %p213 = pneg %p34
      %p214 = pneg %p58
      %p215 = pneg %p55
      %p216 = pneg %p79
      %p217 = pneg %p76
      %p218 = pneg %p100
      %p219 = pneg %p97
      %s220 = smul.u32 32, %s16
      %p221 = scmp.lt.s32.totalorder %s220, 63
      %s222 = scalar_select %p221, %s220, 63
      %s223 = smul.addr %s222, 8
      %s224 = scalar_lea.vmem %s4, %s223
      %p225 = pneg %p126
      %p226 = pneg %p123
      %p227 = pneg %p152
      %p228 = pneg %p149
      %s229 = smul.u32 32, %s16
      %p230 = scmp.lt.s32.totalorder %s229, 63
      %s231 = scalar_select %p230, %s229, 63
      %s232 = smul.addr %s231, 8
      %s233 = scalar_lea.vmem %s5, %s232
      %s234 = smul.u32 32, %s16
      %p235 = scmp.lt.s32.totalorder %s234, 63
      %s236 = scalar_select %p235, %s234, 63
      %s237 = smul.addr %s236, 2
      %s238 = smul.addr %s237, 4
      %s239 = scalar_lea.vmem %s0, %s238
      %s240 = smul.u32 32, %s16
      %s241 = smul.u32 32, %s16
      %p242 = scmp.lt.s32.totalorder %s241, 63
      %s243 = scalar_select %p242, %s241, 63
      %s244 = smul.addr %s243, 8
      %s245 = scalar_lea.vmem %s4, %s244
      %s246 = smul.u32 32, %s16
      %s247 = smul.u32 32, %s16
      %p248 = scmp.lt.s32.totalorder %s247, 63
      %s249 = scalar_select %p248, %s247, 63
      %s250 = smul.addr %s249, 8
      %s251 = scalar_lea.vmem %s5, %s250
      %s252 = smul.u32 32, %s16
      %v254 = vld [vmem:[%s239] sm:$0xff]
      %v255 = vld [vmem:[%s239 + $0x8] sm:$0xff]
      %v256 = vld [vmem:[%s239 + $0x10] sm:$0xff]
      %v257 = vld [vmem:[%s239 + $0x18] sm:$0xff]
      %v258 = vld [vmem:[%s239 + $0x20] sm:$0xff]
      %v259 = vld [vmem:[%s239 + $0x28] sm:$0xff]
      %v260 = vld [vmem:[%s239 + $0x30] sm:$0xff]
      %v261 = vld [vmem:[%s239 + $0x38] sm:$0xff]
      %v262 = vld [vmem:[%s239 + $0x40] sm:$0xff]
      %v263 = vld [vmem:[%s239 + $0x48] sm:$0xff]
      %v264 = vld [vmem:[%s239 + $0x50] sm:$0xff]
      %v265 = vld [vmem:[%s239 + $0x58] sm:$0xff]
      %v266 = vld [vmem:[%s239 + $0x60] sm:$0xff]
      %v267 = vld [vmem:[%s239 + $0x68] sm:$0xff]
      %v268 = vld [vmem:[%s239 + $0x70] sm:$0xff]
      %v269 = vld [vmem:[%s239 + $0x78] sm:$0xff]
      %v270 = vld [vmem:[%s239 + $0x80] sm:$0xff]
      %v271 = vld [vmem:[%s239 + $0x88] sm:$0xff]
      %v272 = vld [vmem:[%s239 + $0x90] sm:$0xff]
      %v273 = vld [vmem:[%s239 + $0x98] sm:$0xff]
      %v274 = vld [vmem:[%s239 + $0xa0] sm:$0xff]
      %v275 = vld [vmem:[%s239 + $0xa8] sm:$0xff]
      %v276 = vld [vmem:[%s239 + $0xb0] sm:$0xff]
      %v277 = vld [vmem:[%s239 + $0xb8] sm:$0xff]
      %v278 = vld [vmem:[%s239 + $0xc0] sm:$0xff]
      %v279 = vld [vmem:[%s239 + $0xc8] sm:$0xff]
      %v280 = vld [vmem:[%s239 + $0xd0] sm:$0xff]
      %v281 = vld [vmem:[%s239 + $0xd8] sm:$0xff]
      %v282 = vld [vmem:[%s239 + $0xe0] sm:$0xff]
      %v283 = vld [vmem:[%s239 + $0xe8] sm:$0xff]
      %v284 = vld [vmem:[%s239 + $0xf0] sm:$0xff]
      %v285 = vld [vmem:[%s239 + $0xf8] sm:$0xff]
      %v286 = vld [vmem:[%s1] sm:$0xf]
      %v287 = vld [vmem:[%s1 + $0x4] sm:$0xf]
      %v288 = vld [vmem:[%s1 + $0x8] sm:$0xf]
      %v289 = vld [vmem:[%s1 + $0xc] sm:$0xf]
      %v290 = vld [vmem:[%s1 + $0x10] sm:$0xf]
      %v291 = vld [vmem:[%s1 + $0x14] sm:$0xf]
      %v292 = vld [vmem:[%s1 + $0x18] sm:$0xf]
      %v293 = vld [vmem:[%s1 + $0x1c] sm:$0xf]
      %v294 = vld [vmem:[%s1 + $0x20] sm:$0xf]
      %v295 = vld [vmem:[%s1 + $0x24] sm:$0xf]
      %v296 = vld [vmem:[%s1 + $0x28] sm:$0xf]
      %v297 = vld [vmem:[%s1 + $0x2c] sm:$0xf]
      %v298 = vld [vmem:[%s1 + $0x30] sm:$0xf]
      %v299 = vld [vmem:[%s1 + $0x34] sm:$0xf]
      %v300 = vld [vmem:[%s1 + $0x38] sm:$0xf]
      %v301 = vld [vmem:[%s1 + $0x3c] sm:$0xf]
      %v302 = vld [vmem:[%s1 + $0x40] sm:$0xf]
      %v303 = vld [vmem:[%s1 + $0x44] sm:$0xf]
      %v304 = vld [vmem:[%s1 + $0x48] sm:$0xf]
      %v305 = vld [vmem:[%s1 + $0x4c] sm:$0xf]
      %v306 = vld [vmem:[%s1 + $0x50] sm:$0xf]
      %v307 = vld [vmem:[%s1 + $0x54] sm:$0xf]
      %v308 = vld [vmem:[%s1 + $0x58] sm:$0xf]
      %v309 = vld [vmem:[%s1 + $0x5c] sm:$0xf]
      %v310 = vld [vmem:[%s1 + $0x60] sm:$0xf]
      %v311 = vld [vmem:[%s1 + $0x64] sm:$0xf]
      %v312 = vld [vmem:[%s1 + $0x68] sm:$0xf]
      %v313 = vld [vmem:[%s1 + $0x6c] sm:$0xf]
      %v314 = vld [vmem:[%s1 + $0x70] sm:$0xf]
      %v315 = vld [vmem:[%s1 + $0x74] sm:$0xf]
      %v316 = vld [vmem:[%s1 + $0x78] sm:$0xf]
      %v317 = vld [vmem:[%s1 + $0x7c] sm:$0xf]
      %v350 = vunpack.c.l.b16 %v254
      %v351 = vunpack.c.h.b16 %v254
      %v352 = vunpack.c.l.b16 %v255
      %v353 = vunpack.c.h.b16 %v255
      %v354 = vunpack.c.l.b16 %v256
      %v355 = vunpack.c.h.b16 %v256
      %v356 = vunpack.c.l.b16 %v257
      %v357 = vunpack.c.h.b16 %v257
      %v358 = vunpack.c.l.b16 %v258
      %v359 = vunpack.c.h.b16 %v258
      %v360 = vunpack.c.l.b16 %v259
      %v361 = vunpack.c.h.b16 %v259
      %v362 = vunpack.c.l.b16 %v260
      %v363 = vunpack.c.h.b16 %v260
      %v364 = vunpack.c.l.b16 %v261
      %v365 = vunpack.c.h.b16 %v261
      %v366 = vunpack.c.l.b16 %v262
      %v367 = vunpack.c.h.b16 %v262
      %v368 = vunpack.c.l.b16 %v263
      %v369 = vunpack.c.h.b16 %v263
      %v370 = vunpack.c.l.b16 %v264
      %v371 = vunpack.c.h.b16 %v264
      %v372 = vunpack.c.l.b16 %v265
      %v373 = vunpack.c.h.b16 %v265
      %v374 = vunpack.c.l.b16 %v266
      %v375 = vunpack.c.h.b16 %v266
      %v376 = vunpack.c.l.b16 %v267
      %v377 = vunpack.c.h.b16 %v267
      %v378 = vunpack.c.l.b16 %v268
      %v379 = vunpack.c.h.b16 %v268
      %v380 = vunpack.c.l.b16 %v269
      %v381 = vunpack.c.h.b16 %v269
      %v382 = vunpack.c.l.b16 %v270
      %v383 = vunpack.c.h.b16 %v270
      %v384 = vunpack.c.l.b16 %v271
      %v385 = vunpack.c.h.b16 %v271
      %v386 = vunpack.c.l.b16 %v272
      %v387 = vunpack.c.h.b16 %v272
      %v388 = vunpack.c.l.b16 %v273
      %v389 = vunpack.c.h.b16 %v273
      %v390 = vunpack.c.l.b16 %v274
      %v391 = vunpack.c.h.b16 %v274
      %v392 = vunpack.c.l.b16 %v275
      %v393 = vunpack.c.h.b16 %v275
      %v394 = vunpack.c.l.b16 %v276
      %v395 = vunpack.c.h.b16 %v276
      %v396 = vunpack.c.l.b16 %v277
      %v397 = vunpack.c.h.b16 %v277
      %v398 = vunpack.c.l.b16 %v278
      %v399 = vunpack.c.h.b16 %v278
      %v400 = vunpack.c.l.b16 %v279
      %v401 = vunpack.c.h.b16 %v279
      %v402 = vunpack.c.l.b16 %v280
      %v403 = vunpack.c.h.b16 %v280
      %v404 = vunpack.c.l.b16 %v281
      %v405 = vunpack.c.h.b16 %v281
      %v406 = vunpack.c.l.b16 %v282
      %v407 = vunpack.c.h.b16 %v282
      %v408 = vunpack.c.l.b16 %v283
      %v409 = vunpack.c.h.b16 %v283
      %v410 = vunpack.c.l.b16 %v284
      %v411 = vunpack.c.h.b16 %v284
      %v412 = vunpack.c.l.b16 %v285
      %v413 = vunpack.c.h.b16 %v285
      %v414 = vpack.c.b16 %v352, %v350
      %v415 = vpack.c.b16 %v353, %v351
      %v416 = vpack.c.b16 %v356, %v354
      %v417 = vpack.c.b16 %v357, %v355
      %v418 = vpack.c.b16 %v360, %v358
      %v419 = vpack.c.b16 %v361, %v359
      %v420 = vpack.c.b16 %v364, %v362
      %v421 = vpack.c.b16 %v365, %v363
      %v422 = vpack.c.b16 %v368, %v366
      %v423 = vpack.c.b16 %v369, %v367
      %v424 = vpack.c.b16 %v372, %v370
      %v425 = vpack.c.b16 %v373, %v371
      %v426 = vpack.c.b16 %v376, %v374
      %v427 = vpack.c.b16 %v377, %v375
      %v428 = vpack.c.b16 %v380, %v378
      %v429 = vpack.c.b16 %v381, %v379
      %v430 = vpack.c.b16 %v384, %v382
      %v431 = vpack.c.b16 %v385, %v383
      %v432 = vpack.c.b16 %v388, %v386
      %v433 = vpack.c.b16 %v389, %v387
      %v434 = vpack.c.b16 %v392, %v390
      %v435 = vpack.c.b16 %v393, %v391
      %v436 = vpack.c.b16 %v396, %v394
      %v437 = vpack.c.b16 %v397, %v395
      %v438 = vpack.c.b16 %v400, %v398
      %v439 = vpack.c.b16 %v401, %v399
      %v440 = vpack.c.b16 %v404, %v402
      %v441 = vpack.c.b16 %v405, %v403
      %v442 = vpack.c.b16 %v408, %v406
      %v443 = vpack.c.b16 %v409, %v407
      %v444 = vpack.c.b16 %v412, %v410
      %v445 = vpack.c.b16 %v413, %v411
      %v510 = vunpack.c.l.b16 %v286
      %v511 = vunpack.c.l.b16 %v287
      %v512 = vunpack.c.l.b16 %v288
      %v513 = vunpack.c.l.b16 %v289
      %v514 = vunpack.c.l.b16 %v290
      %v515 = vunpack.c.l.b16 %v291
      %v516 = vunpack.c.l.b16 %v292
      %v517 = vunpack.c.l.b16 %v293
      %v518 = vunpack.c.l.b16 %v294
      %v519 = vunpack.c.l.b16 %v295
      %v520 = vunpack.c.l.b16 %v296
      %v521 = vunpack.c.l.b16 %v297
      %v522 = vunpack.c.l.b16 %v298
      %v523 = vunpack.c.l.b16 %v299
      %v524 = vunpack.c.l.b16 %v300
      %v525 = vunpack.c.l.b16 %v301
      %v526 = vunpack.c.l.b16 %v302
      %v527 = vunpack.c.l.b16 %v303
      %v528 = vunpack.c.l.b16 %v304
      %v529 = vunpack.c.l.b16 %v305
      %v530 = vunpack.c.l.b16 %v306
      %v531 = vunpack.c.l.b16 %v307
      %v532 = vunpack.c.l.b16 %v308
      %v533 = vunpack.c.l.b16 %v309
      %v534 = vunpack.c.l.b16 %v310
      %v535 = vunpack.c.l.b16 %v311
      %v536 = vunpack.c.l.b16 %v312
      %v537 = vunpack.c.l.b16 %v313
      %v538 = vunpack.c.l.b16 %v314
      %v539 = vunpack.c.l.b16 %v315
      %v540 = vunpack.c.l.b16 %v316
      %v541 = vunpack.c.l.b16 %v317
      %v542 = vpack.c.b16 %v511, %v510
      %v543 = vpack.c.b16 %v513, %v512
      %v544 = vpack.c.b16 %v515, %v514
      %v545 = vpack.c.b16 %v517, %v516
      %v546 = vpack.c.b16 %v519, %v518
      %v547 = vpack.c.b16 %v521, %v520
      %v548 = vpack.c.b16 %v523, %v522
      %v549 = vpack.c.b16 %v525, %v524
      %v550 = vpack.c.b16 %v527, %v526
      %v551 = vpack.c.b16 %v529, %v528
      %v552 = vpack.c.b16 %v531, %v530
      %v553 = vpack.c.b16 %v533, %v532
      %v554 = vpack.c.b16 %v535, %v534
      %v555 = vpack.c.b16 %v537, %v536
      %v556 = vpack.c.b16 %v539, %v538
      %v557 = vpack.c.b16 %v541, %v540
      %574 = vmatprep.subr.bf16.mxu0 0
      %575 = vmatpush1.bf16.msra.mxu0 %v549
      %576 = vmatprep.subr.bf16.mxu0 0
      %577 = vmatpush1.bf16.msra.mxu0 %v548
      %578 = vmatprep.subr.bf16.mxu0 0
      %579 = vmatpush1.bf16.msra.mxu0 %v547
      %580 = vmatprep.subr.bf16.mxu0 0
      %581 = vmatpush1.bf16.msra.mxu0 %v546
      %582 = vmatprep.subr.bf16.mxu0 0
      %583 = vmatpush1.bf16.msra.mxu0 %v545
      %584 = vmatprep.subr.bf16.mxu0 0
      %585 = vmatpush1.bf16.msra.mxu0 %v544
      %586 = vmatprep.subr.bf16.mxu0 0
      %587 = vmatpush1.bf16.msra.mxu0 %v543
      %588 = vmatprep.subr.bf16.mxu0 0
      %589 = vmatpush1.bf16.msra.mxu0 %v542
      %590 = vmatprep.subr.bf16.mxu0 0
      %591 = vmatpush2.bf16.msra.mxu0 %v557
      %592 = vmatprep.subr.bf16.mxu0 0
      %593 = vmatpush2.bf16.msra.mxu0 %v556
      %594 = vmatprep.subr.bf16.mxu0 0
      %595 = vmatpush2.bf16.msra.mxu0 %v555
      %596 = vmatprep.subr.bf16.mxu0 0
      %597 = vmatpush2.bf16.msra.mxu0 %v554
      %598 = vmatprep.subr.bf16.mxu0 0
      %599 = vmatpush2.bf16.msra.mxu0 %v553
      %600 = vmatprep.subr.bf16.mxu0 0
      %601 = vmatpush2.bf16.msra.mxu0 %v552
      %602 = vmatprep.subr.bf16.mxu0 0
      %603 = vmatpush2.bf16.msra.mxu0 %v551
      %604 = vmatprep.subr.bf16.mxu0 0
      %605 = vmatpush2.bf16.msra.mxu0 %v550
      %606 = vmatprep.mubr.bf16.mxu0 %v415
      %607 = vmatmul.mubr.bf16.gmra.mxu0 %v414
      %v608 = vpop.f32.mrf.mxu0
      %v609 = vadd.f32 0.0, %v608
      %v610 = vpop.f32.mrf.mxu0
      %v611 = vpop.f32.mrf.mxu0
      %v612 = vadd.f32 0.0, %v611
      %v613 = vpop.f32.mrf.mxu0
      %614 = vmatprep.mubr.bf16.mxu0 %v417
      %615 = vmatmul.mubr.bf16.gmra.mxu0 %v416
      %v616 = vpop.f32.mrf.mxu0
      %v617 = vadd.f32 0.0, %v616
      %v618 = vpop.f32.mrf.mxu0
      %v619 = vpop.f32.mrf.mxu0
      %v620 = vadd.f32 0.0, %v619
      %v621 = vpop.f32.mrf.mxu0
      %622 = vmatprep.mubr.bf16.mxu0 %v419
      %623 = vmatmul.mubr.bf16.gmra.mxu0 %v418
      %v624 = vpop.f32.mrf.mxu0
      %v625 = vadd.f32 0.0, %v624
      %v626 = vpop.f32.mrf.mxu0
      %v627 = vpop.f32.mrf.mxu0
      %v628 = vadd.f32 0.0, %v627
      %v629 = vpop.f32.mrf.mxu0
      %630 = vmatprep.mubr.bf16.mxu0 %v421
      %631 = vmatmul.mubr.bf16.gmra.mxu0 %v420
      %v632 = vpop.f32.mrf.mxu0
      %v633 = vadd.f32 0.0, %v632
      %v634 = vpop.f32.mrf.mxu0
      %v635 = vpop.f32.mrf.mxu0
      %v636 = vadd.f32 0.0, %v635
      %v637 = vpop.f32.mrf.mxu0
      %638 = vmatprep.mubr.bf16.mxu0 %v423
      %639 = vmatmul.mubr.bf16.gmra.mxu0 %v422
      %v640 = vpop.f32.mrf.mxu0
      %v641 = vadd.f32 0.0, %v640
      %v642 = vpop.f32.mrf.mxu0
      %v643 = vpop.f32.mrf.mxu0
      %v644 = vadd.f32 0.0, %v643
      %v645 = vpop.f32.mrf.mxu0
      %646 = vmatprep.mubr.bf16.mxu0 %v425
      %647 = vmatmul.mubr.bf16.gmra.mxu0 %v424
      %v648 = vpop.f32.mrf.mxu0
      %v649 = vadd.f32 0.0, %v648
      %v650 = vpop.f32.mrf.mxu0
      %v651 = vpop.f32.mrf.mxu0
      %v652 = vadd.f32 0.0, %v651
      %v653 = vpop.f32.mrf.mxu0
      %654 = vmatprep.mubr.bf16.mxu0 %v427
      %655 = vmatmul.mubr.bf16.gmra.mxu0 %v426
      %v656 = vpop.f32.mrf.mxu0
      %v657 = vadd.f32 0.0, %v656
      %v658 = vpop.f32.mrf.mxu0
      %v659 = vpop.f32.mrf.mxu0
      %v660 = vadd.f32 0.0, %v659
      %v661 = vpop.f32.mrf.mxu0
      %662 = vmatprep.mubr.bf16.mxu0 %v429
      %663 = vmatmul.mubr.bf16.gmra.mxu0 %v428
      %v664 = vpop.f32.mrf.mxu0
      %v665 = vadd.f32 0.0, %v664
      %v666 = vpop.f32.mrf.mxu0
      %v667 = vpop.f32.mrf.mxu0
      %v668 = vadd.f32 0.0, %v667
      %v669 = vpop.f32.mrf.mxu0
      %670 = vmatprep.mubr.bf16.mxu0 %v431
      %671 = vmatmul.mubr.bf16.gmra.mxu0 %v430
      %v672 = vpop.f32.mrf.mxu0
      %v673 = vadd.f32 0.0, %v672
      %v674 = vpop.f32.mrf.mxu0
      %v675 = vpop.f32.mrf.mxu0
      %v676 = vadd.f32 0.0, %v675
      %v677 = vpop.f32.mrf.mxu0
      %678 = vmatprep.mubr.bf16.mxu0 %v433
      %679 = vmatmul.mubr.bf16.gmra.mxu0 %v432
      %v680 = vpop.f32.mrf.mxu0
      %v681 = vadd.f32 0.0, %v680
      %v682 = vpop.f32.mrf.mxu0
      %v683 = vpop.f32.mrf.mxu0
      %v684 = vadd.f32 0.0, %v683
      %v685 = vpop.f32.mrf.mxu0
      %686 = vmatprep.mubr.bf16.mxu0 %v435
      %687 = vmatmul.mubr.bf16.gmra.mxu0 %v434
      %v688 = vpop.f32.mrf.mxu0
      %v689 = vadd.f32 0.0, %v688
      %v690 = vpop.f32.mrf.mxu0
      %v691 = vpop.f32.mrf.mxu0
      %v692 = vadd.f32 0.0, %v691
      %v693 = vpop.f32.mrf.mxu0
      %694 = vmatprep.mubr.bf16.mxu0 %v437
      %695 = vmatmul.mubr.bf16.gmra.mxu0 %v436
      %v696 = vpop.f32.mrf.mxu0
      %v697 = vadd.f32 0.0, %v696
      %v698 = vpop.f32.mrf.mxu0
      %v699 = vpop.f32.mrf.mxu0
      %v700 = vadd.f32 0.0, %v699
      %v701 = vpop.f32.mrf.mxu0
      %702 = vmatprep.mubr.bf16.mxu0 %v439
      %703 = vmatmul.mubr.bf16.gmra.mxu0 %v438
      %v704 = vpop.f32.mrf.mxu0
      %v705 = vadd.f32 0.0, %v704
      %v706 = vpop.f32.mrf.mxu0
      %v707 = vpop.f32.mrf.mxu0
      %v708 = vadd.f32 0.0, %v707
      %v709 = vpop.f32.mrf.mxu0
      %710 = vmatprep.mubr.bf16.mxu0 %v441
      %711 = vmatmul.mubr.bf16.gmra.mxu0 %v440
      %v712 = vpop.f32.mrf.mxu0
      %v713 = vadd.f32 0.0, %v712
      %v714 = vpop.f32.mrf.mxu0
      %v715 = vpop.f32.mrf.mxu0
      %v716 = vadd.f32 0.0, %v715
      %v717 = vpop.f32.mrf.mxu0
      %718 = vmatprep.mubr.bf16.mxu0 %v443
      %719 = vmatmul.mubr.bf16.gmra.mxu0 %v442
      %v720 = vpop.f32.mrf.mxu0
      %v721 = vadd.f32 0.0, %v720
      %v722 = vpop.f32.mrf.mxu0
      %v723 = vpop.f32.mrf.mxu0
      %v724 = vadd.f32 0.0, %v723
      %v725 = vpop.f32.mrf.mxu0
      %726 = vmatprep.mubr.bf16.mxu0 %v445
      %727 = vmatmul.mubr.bf16.gmra.mxu0 %v444
      %v728 = vpop.f32.mrf.mxu0
      %v729 = vadd.f32 0.0, %v728
      %v730 = vpop.f32.mrf.mxu0
      %v731 = vpop.f32.mrf.mxu0
      %v732 = vadd.f32 0.0, %v731
      %v733 = vpop.f32.mrf.mxu0
      %734 = vdwg.mxu0
      %v735 = vld [vmem:[%s2] sm:$0x1]
      %v737 = vlaneseq
      %v738 = vshrl.u32 %v737, 7
      %v739 = vsub.s32 0, %v738
      %v740 = vrot.slane %v735, %v739
      %v742 = vmul.f32 %v609, %v740
      %v743 = vmul.f32 %v612, %v740
      %v744 = vmul.f32 %v617, %v740
      %v745 = vmul.f32 %v620, %v740
      %v746 = vmul.f32 %v625, %v740
      %v747 = vmul.f32 %v628, %v740
      %v748 = vmul.f32 %v633, %v740
      %v749 = vmul.f32 %v636, %v740
      %v750 = vmul.f32 %v641, %v740
      %v751 = vmul.f32 %v644, %v740
      %v752 = vmul.f32 %v649, %v740
      %v753 = vmul.f32 %v652, %v740
      %v754 = vmul.f32 %v657, %v740
      %v755 = vmul.f32 %v660, %v740
      %v756 = vmul.f32 %v665, %v740
      %v757 = vmul.f32 %v668, %v740
      %v758 = vmul.f32 %v673, %v740
      %v759 = vmul.f32 %v676, %v740
      %v760 = vmul.f32 %v681, %v740
      %v761 = vmul.f32 %v684, %v740
      %v762 = vmul.f32 %v689, %v740
      %v763 = vmul.f32 %v692, %v740
      %v764 = vmul.f32 %v697, %v740
      %v765 = vmul.f32 %v700, %v740
      %v766 = vmul.f32 %v705, %v740
      %v767 = vmul.f32 %v708, %v740
      %v768 = vmul.f32 %v713, %v740
      %v769 = vmul.f32 %v716, %v740
      %v770 = vmul.f32 %v721, %v740
      %v771 = vmul.f32 %v724, %v740
      %v772 = vmul.f32 %v729, %v740
      %v773 = vmul.f32 %v732, %v740
      %v774 = vld [vmem:[%s3] sm:$0x1]
      %v776 = vlaneseq
      %v777 = vshrl.u32 %v776, 7
      %v778 = vsub.s32 0, %v777
      %v779 = vrot.slane %v774, %v778
      %v781 = vadd.f32 %v742, %v779
      %v782 = vadd.f32 %v743, %v779
      %v783 = vadd.f32 %v744, %v779
      %v784 = vadd.f32 %v745, %v779
      %v785 = vadd.f32 %v746, %v779
      %v786 = vadd.f32 %v747, %v779
      %v787 = vadd.f32 %v748, %v779
      %v788 = vadd.f32 %v749, %v779
      %v789 = vadd.f32 %v750, %v779
      %v790 = vadd.f32 %v751, %v779
      %v791 = vadd.f32 %v752, %v779
      %v792 = vadd.f32 %v753, %v779
      %v793 = vadd.f32 %v754, %v779
      %v794 = vadd.f32 %v755, %v779
      %v795 = vadd.f32 %v756, %v779
      %v796 = vadd.f32 %v757, %v779
      %v797 = vadd.f32 %v758, %v779
      %v798 = vadd.f32 %v759, %v779
      %v799 = vadd.f32 %v760, %v779
      %v800 = vadd.f32 %v761, %v779
      %v801 = vadd.f32 %v762, %v779
      %v802 = vadd.f32 %v763, %v779
      %v803 = vadd.f32 %v764, %v779
      %v804 = vadd.f32 %v765, %v779
      %v805 = vadd.f32 %v766, %v779
      %v806 = vadd.f32 %v767, %v779
      %v807 = vadd.f32 %v768, %v779
      %v808 = vadd.f32 %v769, %v779
      %v809 = vadd.f32 %v770, %v779
      %v810 = vadd.f32 %v771, %v779
      %v811 = vadd.f32 %v772, %v779
      %v812 = vadd.f32 %v773, %v779
      %v813 = vmax.f32 %v781, 0.0
      %v814 = vmax.f32 %v782, 0.0
      %v815 = vmax.f32 %v783, 0.0
      %v816 = vmax.f32 %v784, 0.0
      %v817 = vmax.f32 %v785, 0.0
      %v818 = vmax.f32 %v786, 0.0
      %v819 = vmax.f32 %v787, 0.0
      %v820 = vmax.f32 %v788, 0.0
      %v821 = vmax.f32 %v789, 0.0
      %v822 = vmax.f32 %v790, 0.0
      %v823 = vmax.f32 %v791, 0.0
      %v824 = vmax.f32 %v792, 0.0
      %v825 = vmax.f32 %v793, 0.0
      %v826 = vmax.f32 %v794, 0.0
      %v827 = vmax.f32 %v795, 0.0
      %v828 = vmax.f32 %v796, 0.0
      %v829 = vmax.f32 %v797, 0.0
      %v830 = vmax.f32 %v798, 0.0
      %v831 = vmax.f32 %v799, 0.0
      %v832 = vmax.f32 %v800, 0.0
      %v833 = vmax.f32 %v801, 0.0
      %v834 = vmax.f32 %v802, 0.0
      %v835 = vmax.f32 %v803, 0.0
      %v836 = vmax.f32 %v804, 0.0
      %v837 = vmax.f32 %v805, 0.0
      %v838 = vmax.f32 %v806, 0.0
      %v839 = vmax.f32 %v807, 0.0
      %v840 = vmax.f32 %v808, 0.0
      %v841 = vmax.f32 %v809, 0.0
      %v842 = vmax.f32 %v810, 0.0
      %v843 = vmax.f32 %v811, 0.0
      %v844 = vmax.f32 %v812, 0.0
      %v845 = vld [vmem:[%s245] sm:$0xff]
      %v846 = vld [vmem:[%s245 + $0x8] sm:$0xff]
      %v847 = vld [vmem:[%s245 + $0x10] sm:$0xff]
      %v848 = vld [vmem:[%s245 + $0x18] sm:$0xff]
      %v849 = vld [vmem:[%s245 + $0x20] sm:$0xff]
      %v850 = vld [vmem:[%s245 + $0x28] sm:$0xff]
      %v851 = vld [vmem:[%s245 + $0x30] sm:$0xff]
      %v852 = vld [vmem:[%s245 + $0x38] sm:$0xff]
      %v853 = vld [vmem:[%s245 + $0x40] sm:$0xff]
      %v854 = vld [vmem:[%s245 + $0x48] sm:$0xff]
      %v855 = vld [vmem:[%s245 + $0x50] sm:$0xff]
      %v856 = vld [vmem:[%s245 + $0x58] sm:$0xff]
      %v857 = vld [vmem:[%s245 + $0x60] sm:$0xff]
      %v858 = vld [vmem:[%s245 + $0x68] sm:$0xff]
      %v859 = vld [vmem:[%s245 + $0x70] sm:$0xff]
      %v860 = vld [vmem:[%s245 + $0x78] sm:$0xff]
      %v861 = vld [vmem:[%s245 + $0x80] sm:$0xff]
      %v862 = vld [vmem:[%s245 + $0x88] sm:$0xff]
      %v863 = vld [vmem:[%s245 + $0x90] sm:$0xff]
      %v864 = vld [vmem:[%s245 + $0x98] sm:$0xff]
      %v865 = vld [vmem:[%s245 + $0xa0] sm:$0xff]
      %v866 = vld [vmem:[%s245 + $0xa8] sm:$0xff]
      %v867 = vld [vmem:[%s245 + $0xb0] sm:$0xff]
      %v868 = vld [vmem:[%s245 + $0xb8] sm:$0xff]
      %v869 = vld [vmem:[%s245 + $0xc0] sm:$0xff]
      %v870 = vld [vmem:[%s245 + $0xc8] sm:$0xff]
      %v871 = vld [vmem:[%s245 + $0xd0] sm:$0xff]
      %v872 = vld [vmem:[%s245 + $0xd8] sm:$0xff]
      %v873 = vld [vmem:[%s245 + $0xe0] sm:$0xff]
      %v874 = vld [vmem:[%s245 + $0xe8] sm:$0xff]
      %v875 = vld [vmem:[%s245 + $0xf0] sm:$0xff]
      %v876 = vld [vmem:[%s245 + $0xf8] sm:$0xff]
      %v877 = vadd.f32 %v813, %v845
      %v878 = vadd.f32 %v814, %v846
      %v879 = vadd.f32 %v815, %v847
      %v880 = vadd.f32 %v816, %v848
      %v881 = vadd.f32 %v817, %v849
      %v882 = vadd.f32 %v818, %v850
      %v883 = vadd.f32 %v819, %v851
      %v884 = vadd.f32 %v820, %v852
      %v885 = vadd.f32 %v821, %v853
      %v886 = vadd.f32 %v822, %v854
      %v887 = vadd.f32 %v823, %v855
      %v888 = vadd.f32 %v824, %v856
      %v889 = vadd.f32 %v825, %v857
      %v890 = vadd.f32 %v826, %v858
      %v891 = vadd.f32 %v827, %v859
      %v892 = vadd.f32 %v828, %v860
      %v893 = vadd.f32 %v829, %v861
      %v894 = vadd.f32 %v830, %v862
      %v895 = vadd.f32 %v831, %v863
      %v896 = vadd.f32 %v832, %v864
      %v897 = vadd.f32 %v833, %v865
      %v898 = vadd.f32 %v834, %v866
      %v899 = vadd.f32 %v835, %v867
      %v900 = vadd.f32 %v836, %v868
      %v901 = vadd.f32 %v837, %v869
      %v902 = vadd.f32 %v838, %v870
      %v903 = vadd.f32 %v839, %v871
      %v904 = vadd.f32 %v840, %v872
      %v905 = vadd.f32 %v841, %v873
      %v906 = vadd.f32 %v842, %v874
      %v907 = vadd.f32 %v843, %v875
      %v908 = vadd.f32 %v844, %v876
      %909 = vst [vmem:[%s251] sm:$0xff] %v877
      %910 = vst [vmem:[%s251 + $0x8] sm:$0xff] %v878
      %911 = vst [vmem:[%s251 + $0x10] sm:$0xff] %v879
      %912 = vst [vmem:[%s251 + $0x18] sm:$0xff] %v880
      %913 = vst [vmem:[%s251 + $0x20] sm:$0xff] %v881
      %914 = vst [vmem:[%s251 + $0x28] sm:$0xff] %v882
      %915 = vst [vmem:[%s251 + $0x30] sm:$0xff] %v883
      %916 = vst [vmem:[%s251 + $0x38] sm:$0xff] %v884
      %917 = vst [vmem:[%s251 + $0x40] sm:$0xff] %v885
      %918 = vst [vmem:[%s251 + $0x48] sm:$0xff] %v886
      %919 = vst [vmem:[%s251 + $0x50] sm:$0xff] %v887
      %920 = vst [vmem:[%s251 + $0x58] sm:$0xff] %v888
      %921 = vst [vmem:[%s251 + $0x60] sm:$0xff] %v889
      %922 = vst [vmem:[%s251 + $0x68] sm:$0xff] %v890
      %923 = vst [vmem:[%s251 + $0x70] sm:$0xff] %v891
      %924 = vst [vmem:[%s251 + $0x78] sm:$0xff] %v892
      %925 = vst [vmem:[%s251 + $0x80] sm:$0xff] %v893
      %926 = vst [vmem:[%s251 + $0x88] sm:$0xff] %v894
      %927 = vst [vmem:[%s251 + $0x90] sm:$0xff] %v895
      %928 = vst [vmem:[%s251 + $0x98] sm:$0xff] %v896
      %929 = vst [vmem:[%s251 + $0xa0] sm:$0xff] %v897
      %930 = vst [vmem:[%s251 + $0xa8] sm:$0xff] %v898
      %931 = vst [vmem:[%s251 + $0xb0] sm:$0xff] %v899
      %932 = vst [vmem:[%s251 + $0xb8] sm:$0xff] %v900
      %933 = vst [vmem:[%s251 + $0xc0] sm:$0xff] %v901
      %934 = vst [vmem:[%s251 + $0xc8] sm:$0xff] %v902
      %935 = vst [vmem:[%s251 + $0xd0] sm:$0xff] %v903
      %936 = vst [vmem:[%s251 + $0xd8] sm:$0xff] %v904
      %937 = vst [vmem:[%s251 + $0xe0] sm:$0xff] %v905
      %938 = vst [vmem:[%s251 + $0xe8] sm:$0xff] %v906
      %939 = vst [vmem:[%s251 + $0xf0] sm:$0xff] %v907
      %940 = vst [vmem:[%s251 + $0xf8] sm:$0xff] %v908
      %s941 = smul.u32 32, %s16
      %p942 = scmp.lt.s32.totalorder %s941, 63
      %s943 = scalar_select %p942, %s941, 63
      %s944 = smul.addr %s943, 8
      %s945 = scalar_lea.vmem %s5, %s944
      // Predicated region
      $region41: #{_lambda_.23} parent=39 // pred_check
        %p946 = pneg %p149
      $region42: #{_lambda_.23} parent=39 // pred_check_branch
        %948 = sbr.rel (%p946) target = $region44
      $region43: #{_lambda_.23} parent=39 // pred_region
        %s949 = smul.u32 32, %s16
      $region44: #{_lambda_.23} parent=39 // pred_fallthru
        _
    $region40: #{_lambda_.23} parent=5 // pred_fallthru
      _
    %p950 = scmp.le.s32.totalorder 2, %s11
    // Predicated region
    $region45: #{_lambda_.23} parent=5 // pred_check
      %p951 = pneg %p950
    $region46: #{_lambda_.23} parent=5 // pred_check_branch
      %953 = sbr.rel (%p951) target = $region48
    $region47: #{_lambda_.23} parent=5 // pred_region
      %s954 = ssub.s32 %s11, 2
      // Predicated region
      $region49: #{_lambda_.23} parent=47 // pred_check
        %p955 = pneg %p155
      $region50: #{_lambda_.23} parent=47 // pred_check_branch
        %957 = sbr.rel (%p955) target = $region52
      $region51: #{_lambda_.23} parent=47 // pred_region
        %s958 = smul.u32 32, %s17
        %p959 = scmp.lt.s32.totalorder %s958, 63
        %s960 = scalar_select %p959, %s958, 63
        %s961 = smul.addr %s960, 8
        %s962 = scalar_lea.vmem %s5, %s961
      $region52: #{_lambda_.23} parent=47 // pred_fallthru
        _
    $region48: #{_lambda_.23} parent=5 // pred_fallthru
      _
  $region6: #{_lambda_.23} parent=0 // loop_footer
    %s15 = sadd.s32 1, %s11
  $region7: #{_lambda_.23} parent=0 // loop_footer_branch
    %10 = sbr.rel target = $region3
  $region8: #{_lambda_.23} parent=0 // loop_exit
    _

</llo_original>
